<compile_context>
chip_gen: v5e
topology: v5e:2x2
jax: 0.10.0
libtpu: 0.0.40
codegen_flags: <defaults>
</compile_context>

<pallas_src>
import functools
import math

import jax
import jax.numpy as jnp
from jax import lax
from jax.experimental import pallas as pl
from jax.experimental.pallas import tpu as pltpu

LN_EPS = 1e-5
_TILE_M = 512          # fused_linear row tile target (K <= H, fits easily)
_TILE_N = 256          # fused_linear col tile target (MXU/lane aligned)
_MLP_TILE_M = 512      # fused MLP row tile target
_MLP_TILE_F = 256      # fused MLP 4H (accumulation) tile target
_SEQ_ALIGN = 16        # pad sequence once to this multiple
_VMEM_LIMIT = 32 * 1024 * 1024   # explicit scoped-VMEM budget (safe on v5e/v6e/v7x)


# ------------------------------ tiling helpers ------------------------------

def _round_up(x, m):
    return x + ((-x) % m)


def _pick_tile(dim, target, align):
    """Largest `align`-aligned tile <= target, preferring one that divides dim."""
    if dim <= target:
        return dim                        # full dim: always a legal block
    t = (target // align) * align
    lo = max(align, (target // 2 // align) * align)
    while t >= lo:
        if dim % t == 0:
            return t
        t -= align
    return (target // align) * align      # does not divide: wrapper pads


def _pad_axis(x, multiple, axis):
    size = x.shape[axis]
    rem = (-size) % multiple
    if rem == 0:
        return x
    pad = [(0, 0)] * x.ndim
    pad[axis] = (0, rem)
    return jnp.pad(x, pad)


# ---------------------- fused LN + matmul + epilogue kernel ------------------

def _fused_linear_kernel(*refs, has_ln, has_bias, has_res, activation):
    idx = 0
    x_ref = refs[idx]; idx += 1
    w_ref = refs[idx]; idx += 1
    b_ref = g_ref = beta_ref = res_ref = None
    if has_bias:
        b_ref = refs[idx]; idx += 1
    if has_ln:
        g_ref = refs[idx]; idx += 1
        beta_ref = refs[idx]; idx += 1
    if has_res:
        res_ref = refs[idx]; idx += 1
    o_ref = refs[idx]; idx += 1
    xn_ref = refs[idx] if has_ln else None          # VMEM scratch (tm, K) bf16

    if has_ln:
        # LayerNorm over the full K row; computed ONCE per row tile (j == 0),
        # cached in VMEM scratch and reused for every N tile.
        @pl.when(pl.program_id(1) == 0)
        def _():
            x = x_ref[...].astype(jnp.float32)
            mu = jnp.mean(x, axis=-1, keepdims=True)
            xc = x - mu
            var = jnp.mean(xc * xc, axis=-1, keepdims=True)
            xn = xc * lax.rsqrt(var + LN_EPS) * g_ref[...] + beta_ref[...]
            xn_ref[...] = xn.astype(jnp.bfloat16)
        x_mxu = xn_ref[...]
    else:
        x_mxu = x_ref[...].astype(jnp.bfloat16)     # no-op when already bf16

    y = jnp.dot(x_mxu, w_ref[...], preferred_element_type=jnp.float32)
    if has_bias:
        y = y + b_ref[...]
    if activation == "quick_gelu":                   # x * sigmoid(1.702 x)
        y = y * jax.nn.sigmoid(1.702 * y)
    if has_res:
        y = y + res_ref[...].astype(jnp.float32)
    o_ref[...] = y.astype(o_ref.dtype)


def fused_linear(x, w, b=None, *, ln=None, residual=None, activation=None,
                 out_dtype=jnp.bfloat16):
    """y = [LN](x) @ w (+ b) (+ QuickGELU) (+ residual).

    x: (M, K) bf16/f32, w: (K, N) bf16, b: (N,) f32, ln: (gamma, beta) f32 each,
    residual: (M, N).  Tiled over (M rows, N cols); full K per block.
    """
    M, K = x.shape
    N = w.shape[1]
    tm = _pick_tile(M, _TILE_M, 16)
    tn = _pick_tile(N, _TILE_N, 128)

    xp = _pad_axis(x, tm, 0)
    wp = _pad_axis(w.astype(jnp.bfloat16), tn, 1)
    Mp, Np = xp.shape[0], wp.shape[1]
    grid = (Mp // tm, Np // tn)

    inputs = [xp, wp]
    in_specs = [
        pl.BlockSpec((tm, K), lambda i, j: (i, 0)),
        pl.BlockSpec((K, tn), lambda i, j: (0, j)),
    ]
    res_bytes = 0
    if b is not None:
        bp = _pad_axis(b.reshape(1, N).astype(jnp.float32), tn, 1)
        inputs.append(bp)
        in_specs.append(pl.BlockSpec((1, tn), lambda i, j: (0, j)))
    if ln is not None:
        g, beta = ln
        inputs += [g.reshape(1, K).astype(jnp.float32),
                   beta.reshape(1, K).astype(jnp.float32)]
        in_specs += [pl.BlockSpec((1, K), lambda i, j: (0, 0)),
                     pl.BlockSpec((1, K), lambda i, j: (0, 0))]
    if residual is not None:
        rp = _pad_axis(_pad_axis(residual, tm, 0), tn, 1)
        inputs.append(rp)
        in_specs.append(pl.BlockSpec((tm, tn), lambda i, j: (i, j)))
        res_bytes = Mp * Np * rp.dtype.itemsize

    kernel = functools.partial(
        _fused_linear_kernel,
        has_ln=ln is not None, has_bias=b is not None,
        has_res=residual is not None, activation=activation)

    scratch = [pltpu.VMEM((tm, K), jnp.bfloat16)] if ln is not None else []

    out = pl.pallas_call(
        kernel,
        out_shape=jax.ShapeDtypeStruct((Mp, Np), out_dtype),
        grid=grid,
        in_specs=in_specs,
        out_specs=pl.BlockSpec((tm, tn), lambda i, j: (i, j)),
        scratch_shapes=scratch,
        compiler_params=pltpu.CompilerParams(
            dimension_semantics=(
                "parallel", "arbitrary" if ln is not None else "parallel"),
            vmem_limit_bytes=_VMEM_LIMIT),
        cost_estimate=pl.CostEstimate(
            flops=int(2 * Mp * K * Np),
            transcendentals=int(Mp * Np) if activation == "quick_gelu" else 0,
            bytes_accessed=int(Mp * K * xp.dtype.itemsize
                               + (Mp // tm) * K * Np * 2
                               + Mp * Np * jnp.dtype(out_dtype).itemsize
                               + res_bytes)),
    )(*inputs)

    if (Mp, Np) != (M, N):
        out = out[:M, :N]
    return out


# ---------------- fused MLP: LN2 + c_fc + QuickGELU + c_proj + residual ------

def _fused_mlp_kernel(x_ref, g_ref, beta_ref, fcw_ref, fcb_ref, pjw_ref, pjb_ref,
                      o_ref, xn_ref, acc_ref):
    k = pl.program_id(1)

    @pl.when(k == 0)
    def _():
        x = x_ref[...].astype(jnp.float32)
        mu = jnp.mean(x, axis=-1, keepdims=True)
        xc = x - mu
        var = jnp.mean(xc * xc, axis=-1, keepdims=True)
        xn = xc * lax.rsqrt(var + LN_EPS) * g_ref[...] + beta_ref[...]
        xn_ref[...] = xn.astype(jnp.bfloat16)
        acc_ref[...] = jnp.zeros_like(acc_ref)

    h = jnp.dot(xn_ref[...], fcw_ref[...], preferred_element_type=jnp.float32)
    h = h + fcb_ref[...]
    h = h * jax.nn.sigmoid(1.702 * h)                 # QuickGELU
    acc_ref[...] += jnp.dot(h.astype(jnp.bfloat16), pjw_ref[...],
                            preferred_element_type=jnp.float32)

    @pl.when(k == pl.num_programs(1) - 1)
    def _():
        o_ref[...] = (acc_ref[...] + pjb_ref[...]
                      + x_ref[...].astype(jnp.float32)).astype(o_ref.dtype)


def fused_mlp(x, c_fc_w, c_fc_b, c_proj_w, c_proj_b, *, ln,
              out_dtype=jnp.float32):
    """x + c_proj(QuickGELU(c_fc(LN2(x)))) without materializing (M,4H) in HBM."""
    M, H = x.shape
    F = c_fc_w.shape[1]
    tm = _pick_tile(M, _MLP_TILE_M, 16)
    tf = _pick_tile(F, _MLP_TILE_F, 128)

    xp = _pad_axis(x, tm, 0)
    Mp = xp.shape[0]
    fcw = _pad_axis(c_fc_w.astype(jnp.bfloat16), tf, 1)
    fcb = _pad_axis(c_fc_b.reshape(1, F).astype(jnp.float32), tf, 1)
    pjw = _pad_axis(c_proj_w.astype(jnp.bfloat16), tf, 0)
    Fp = fcw.shape[1]
    g, beta = ln
    grid = (Mp // tm, Fp // tf)

    out = pl.pallas_call(
        _fused_mlp_kernel,
        out_shape=jax.ShapeDtypeStruct((Mp, H), out_dtype),
        grid=grid,
        in_specs=[
            pl.BlockSpec((tm, H), lambda i, k: (i, 0)),      # x (also residual)
            pl.BlockSpec((1, H), lambda i, k: (0, 0)),       # ln gamma
            pl.BlockSpec((1, H), lambda i, k: (0, 0)),       # ln beta
            pl.BlockSpec((H, tf), lambda i, k: (0, k)),      # c_fc_w tile
            pl.BlockSpec((1, tf), lambda i, k: (0, k)),      # c_fc_b tile
            pl.BlockSpec((tf, H), lambda i, k: (k, 0)),      # c_proj_w tile
            pl.BlockSpec((1, H), lambda i, k: (0, 0)),       # c_proj_b
        ],
        out_specs=pl.BlockSpec((tm, H), lambda i, k: (i, 0)),
        scratch_shapes=[pltpu.VMEM((tm, H), jnp.bfloat16),   # cached LN2(x)
                        pltpu.VMEM((tm, H), jnp.float32)],   # f32 accumulator
        compiler_params=pltpu.CompilerParams(
            dimension_semantics=("parallel", "arbitrary"),
            vmem_limit_bytes=_VMEM_LIMIT),
        cost_estimate=pl.CostEstimate(
            flops=int(4 * Mp * H * Fp),
            transcendentals=int(Mp * Fp),
            bytes_accessed=int(Mp * H * (xp.dtype.itemsize
                                         + jnp.dtype(out_dtype).itemsize)
                               + (Mp // tm) * 2 * H * Fp * 2)),
    )(xp,
      g.reshape(1, H).astype(jnp.float32), beta.reshape(1, H).astype(jnp.float32),
      fcw, fcb, pjw, c_proj_b.reshape(1, H).astype(jnp.float32))
    return out[:M] if Mp != M else out


# ------------------------------ LayerNorm kernel -----------------------------

def _layernorm_kernel(x_ref, g_ref, b_ref, o_ref):
    x = x_ref[...].astype(jnp.float32)
    mu = jnp.mean(x, axis=-1, keepdims=True)
    xc = x - mu
    var = jnp.mean(xc * xc, axis=-1, keepdims=True)
    o_ref[...] = (xc * lax.rsqrt(var + LN_EPS) * g_ref[...] + b_ref[...]
                  ).astype(o_ref.dtype)


def pallas_layernorm(x, g, b, out_dtype=jnp.bfloat16):
    """Row-tiled LayerNorm over last dim. x:(M,H), g/b:(H,)."""
    M, H = x.shape
    tm = _pick_tile(M, _TILE_M, 16)
    xp = _pad_axis(x, tm, 0)
    Mp = xp.shape[0]
    out = pl.pallas_call(
        _layernorm_kernel,
        out_shape=jax.ShapeDtypeStruct((Mp, H), out_dtype),
        grid=(Mp // tm,),
        in_specs=[pl.BlockSpec((tm, H), lambda i: (i, 0)),
                  pl.BlockSpec((1, H), lambda i: (0, 0)),
                  pl.BlockSpec((1, H), lambda i: (0, 0))],
        out_specs=pl.BlockSpec((tm, H), lambda i: (i, 0)),
        compiler_params=pltpu.CompilerParams(
            dimension_semantics=("parallel",),
            vmem_limit_bytes=_VMEM_LIMIT),
    )(xp, g.reshape(1, H).astype(jnp.float32), b.reshape(1, H).astype(jnp.float32))
    return out[:M] if Mp != M else out


# ------------------------- multi-head attention kernel -----------------------

def _head_group_size(nh, dh):
    g = max(1, 128 // dh)                 # group heads so a group is >=128 lanes
    if nh % g != 0 or (g * dh) % 128 != 0:
        g = nh                            # fall back: one full-width group
    return g


def _qkv_col_perm(nh, dh, gsz):
    """Column permutation of the (H, 3H) in_proj so QKV is grouped per head-group."""
    H = nh * dh
    idx = []
    for g0 in range(0, nh, gsz):
        for part in range(3):             # Q, K, V of this group, contiguous
            for h in range(g0, g0 + gsz):
                idx.extend(range(part * H + h * dh, part * H + (h + 1) * dh))
    return jnp.asarray(idx, dtype=jnp.int32)


def _mha_kernel(qkv_ref, o_ref, *, gsz, head_dim, scale, s_real):
    qkv = qkv_ref[0]                                  # (S_pad, 3*gsz*dh) bf16
    S = qkv.shape[0]
    col = lax.broadcasted_iota(jnp.int32, (1, S), 1)
    kmask = col < s_real                              # static pad mask on keys
    outs = []
    for h in range(gsz):                              # small static group (e.g. 2)
        q = qkv[:, h * head_dim:(h + 1) * head_dim]
        k = qkv[:, (gsz + h) * head_dim:(gsz + h + 1) * head_dim]
        v = qkv[:, (2 * gsz + h) * head_dim:(2 * gsz + h + 1) * head_dim]
        s = lax.dot_general(q, k, (((1,), (1,)), ((), ())),
                            preferred_element_type=jnp.float32) * scale
        s = jnp.where(kmask, s, -1e30)
        m = jnp.max(s, axis=-1, keepdims=True)
        p = jnp.exp(s - m)
        p = p / jnp.sum(p, axis=-1, keepdims=True)
        o_h = jnp.dot(p.astype(jnp.bfloat16), v,
                      preferred_element_type=jnp.float32)
        outs.append(o_h.astype(o_ref.dtype))
    o_ref[0] = outs[0] if gsz == 1 else jnp.concatenate(outs, axis=-1)


def pallas_mha(qkv, num_heads, head_dim, s_real):
    """qkv: (B, S_pad, 3H) bf16, columns grouped per head-group -> (B, S_pad, H)."""
    B, S, threeH = qkv.shape
    H = num_heads * head_dim
    gsz = _head_group_size(num_heads, head_dim)
    n_groups = num_heads // gsz
    gw = 3 * gsz * head_dim
    scale = 1.0 / math.sqrt(head_dim)
    kernel = functools.partial(_mha_kernel, gsz=gsz, head_dim=head_dim,
                               scale=scale, s_real=s_real)
    return pl.pallas_call(
        kernel,
        out_shape=jax.ShapeDtypeStruct((B, S, H), jnp.bfloat16),
        grid=(B, n_groups),
        in_specs=[pl.BlockSpec((1, S, gw), lambda b, g: (b, 0, g))],
        out_specs=pl.BlockSpec((1, S, gsz * head_dim), lambda b, g: (b, 0, g)),
        compiler_params=pltpu.CompilerParams(
            dimension_semantics=("parallel", "parallel"),
            vmem_limit_bytes=_VMEM_LIMIT),
        cost_estimate=pl.CostEstimate(
            flops=int(4 * B * num_heads * S * S * head_dim),
            transcendentals=int(B * num_heads * S * S),
            bytes_accessed=int(B * S * (threeH + H) * 2)),
    )(qkv.astype(jnp.bfloat16))


# --------------------------- parameters (synthetic) --------------------------

def init_params(key, cfg):
    H = cfg["hidden"]
    C = cfg["channels"]
    P = cfg["patch"]
    S = (cfg["image"] // P) ** 2 + 1
    CH = cfg["cross_hidden"]
    nh = cfg["heads"]
    dh = H // nh
    gsz = _head_group_size(nh, dh)
    perm = _qkv_col_perm(nh, dh, gsz)
    bf16 = jnp.bfloat16

    def nrm(k, shape):
        return jax.random.normal(k, shape, jnp.float32) * 0.02

    keys = iter(jax.random.split(key, 8 * cfg["layers"] + 16))
    params = {
        # BridgeTowerVisionEmbeddings
        "class_embedding": nrm(next(keys), (H,)).astype(bf16),
        # Conv2d weight (H, C, P, P), bias=False -> pre-flattened/transposed (C*P*P, H)
        "patch_w": nrm(next(keys), (H, C, P, P)).reshape(H, C * P * P).T.astype(bf16),
        "pos_emb": nrm(next(keys), (S, H)).astype(bf16),
        # ln_pre / ln_post (shared) — LN params kept in f32
        "ln_pre_g": jnp.ones((H,), jnp.float32),
        "ln_pre_b": jnp.zeros((H,), jnp.float32),
        "ln_post_g": jnp.ones((H,), jnp.float32),
        "ln_post_b": jnp.zeros((H,), jnp.float32),
        "layers": [],
        # Created in __init__ but unused in forward() (kept for fidelity):
        "cross_modal_image_transform_w": nrm(next(keys), (H, CH)),
        "cross_modal_image_transform_b": jnp.zeros((CH,), jnp.float32),
        "token_type_embeddings": nrm(next(keys), (2, CH)),
    }
    for _ in range(cfg["layers"]):
        # nn.MultiheadAttention in_proj_weight (3H,H) -> transposed to (H,3H) and
        # column-permuted into per-head-group [Q|K|V] layout (pure layout change,
        # matched by the grouped MHA kernel; output head order is preserved).
        in_w = nrm(next(keys), (3 * H, H)).T
        in_b = jnp.zeros((3 * H,), jnp.float32)
        lp = {
            "ln1_g": jnp.ones((H,), jnp.float32),
            "ln1_b": jnp.zeros((H,), jnp.float32),
            "in_proj_w": in_w[:, perm].astype(bf16),
            "in_proj_b": in_b[perm],
            "out_proj_w": nrm(next(keys), (H, H)).T.astype(bf16),
            "out_proj_b": jnp.zeros((H,), jnp.float32),
            "ln2_g": jnp.ones((H,), jnp.float32),
            "ln2_b": jnp.zeros((H,), jnp.float32),
            "c_fc_w": nrm(next(keys), (4 * H, H)).T.astype(bf16),
            "c_fc_b": jnp.zeros((4 * H,), jnp.float32),
            "c_proj_w": nrm(next(keys), (H, 4 * H)).T.astype(bf16),
            "c_proj_b": jnp.zeros((H,), jnp.float32),
        }
        params["layers"].append(lp)
    return params


# ------------------------------- forward pass --------------------------------

def bridgetower_vision_forward(pixel_values, params, cfg):
    B, C, Himg, Wimg = pixel_values.shape
    P = cfg["patch"]
    Hp, Wp = Himg // P, Wimg // P
    Np_ = Hp * Wp
    H = cfg["hidden"]
    nh = cfg["heads"]
    dh = H // nh
    S = Np_ + 1
    S_pad = _round_up(S, _SEQ_ALIGN)

    # 1) Patch embedding: Conv2d(kernel=stride=patch, bias=False) == im2col + matmul.
    # TODO(synk): im2col reshape/transpose is done by XLA; a dedicated Pallas conv
    # kernel could avoid this one-time layout pass.
    x = pixel_values.astype(jnp.bfloat16)
    patches = x.reshape(B, C, Hp, P, Wp, P).transpose(0, 2, 4, 1, 3, 5)
    patches = patches.reshape(B * Np_, C * P * P)
    patch_embeds = fused_linear(patches, params["patch_w"])           # (B*Np, H)
    patch_embeds = patch_embeds.reshape(B, Np_, H)

    cls = jnp.broadcast_to(params["class_embedding"][None, None, :], (B, 1, H))
    h = jnp.concatenate([cls, patch_embeds], axis=1) + params["pos_emb"][None]
    if S_pad != S:
        # Pad the sequence ONCE; padded rows are carried through all layers
        # (attention masks padded keys) and sliced off at the very end.
        h = jnp.pad(h, ((0, 0), (0, S_pad - S), (0, 0)))

    # 2) ln_pre — residual stream carried in f32 from here on
    h2 = pallas_layernorm(h.reshape(B * S_pad, H),
                          params["ln_pre_g"], params["ln_pre_b"],
                          out_dtype=jnp.float32)                      # (B*S_pad, H)

    # 3) residual attention blocks; shared ln_post applied per layer output
    layer_outputs = []
    for lp in params["layers"]:
        # LN1 + QKV projection (fused; LN cached across N tiles)
        qkv = fused_linear(h2, lp["in_proj_w"], lp["in_proj_b"],
                           ln=(lp["ln1_g"], lp["ln1_b"]))             # (B*S_pad, 3H)
        # grouped multi-head attention (lane-dense per-group output)
        attn = pallas_mha(qkv.reshape(B, S_pad, 3 * H), nh, dh, s_real=S)
        # out_proj + residual add (fused), residual kept in f32
        h2 = fused_linear(attn.reshape(B * S_pad, H),
                          lp["out_proj_w"], lp["out_proj_b"],
                          residual=h2, out_dtype=jnp.float32)
        # LN2 + c_fc + QuickGELU + c_proj + residual — single fused kernel,
        # (M, 4H) intermediate never written to HBM
        h2 = fused_mlp(h2, lp["c_fc_w"], lp["c_fc_b"],
                       lp["c_proj_w"], lp["c_proj_b"],
                       ln=(lp["ln2_g"], lp["ln2_b"]))                 # f32
        # shared ln_post applied per layer (no intermediate stacked tensor)
        layer_outputs.append(
            pallas_layernorm(h2, params["ln_post_g"], params["ln_post_b"],
                             out_dtype=jnp.float32).reshape(B, S_pad, H))

    # 4) (L, B, S, H) in f32
    out = jnp.stack(layer_outputs, axis=0)
    return out[:, :, :S, :]


# ---------------------------------- main -------------------------------------

if __name__ == "__main__":
    cfg = {
        "hidden": 128,         # vision_config.hidden_size (small demo size)
        "heads": 2,            # hidden_size // 64, as in BridgeTowerResidualAttention
        "channels": 3,
        "image": 16,
        "patch": 8,
        "layers": 2,           # vision_config.num_hidden_layers
        "cross_hidden": 128,   # config.hidden_size (unused in forward)
    }

    key = jax.random.PRNGKey(0)
    k_params, k_input = jax.random.split(key)
    params = init_params(k_params, cfg)

    pixel_values = jax.random.normal(
        k_input, (2, cfg["channels"], cfg["image"], cfg["image"]), jnp.float32)

    fwd = jax.jit(functools.partial(bridgetower_vision_forward, cfg=cfg))
    out = jax.block_until_ready(fwd(pixel_values, params))

    L = cfg["layers"]
    S = (cfg["image"] // cfg["patch"]) ** 2 + 1
    assert out.shape == (L, 2, S, cfg["hidden"]), out.shape
    assert out.dtype == jnp.float32
    assert bool(jnp.all(jnp.isfinite(out)))
    print("KERNEL_OK")
</pallas_src>

<mosaic_0001>
module attributes {stable_mosaic.version = 11 : i64} {
  func.func @_fused_linear_kernel(%arg0: i32, %arg1: i32, %arg2: memref<8x192xbf16, #tpu.memory_space<vmem>>, %arg3: memref<192x128xbf16, #tpu.memory_space<vmem>>, %arg4: memref<8x128xbf16, #tpu.memory_space<vmem>>) attributes {dimension_semantics = [#tpu.dimension_semantics<parallel>, #tpu.dimension_semantics<parallel>], iteration_bounds = array<i64: 1, 1>, scalar_prefetch = 0 : i64, scratch_operands = 0 : i64, tpu.core_type = #tpu.core_type<tc>, window_params = [{transform_indices = @transform_0, window_bounds = array<i64: 8, 192>}, {transform_indices = @transform_1, window_bounds = array<i64: 192, 128>}, {transform_indices = @transform_2, window_bounds = array<i64: 8, 128>}]} {
    %c0 = arith.constant 0 : index
    %c0_0 = arith.constant 0 : index
    %0 = vector.load %arg2[%c0, %c0_0] : memref<8x192xbf16, #tpu.memory_space<vmem>>, vector<8x192xbf16>
    %c0_1 = arith.constant 0 : index
    %c0_2 = arith.constant 0 : index
    %1 = vector.load %arg3[%c0_1, %c0_2] : memref<192x128xbf16, #tpu.memory_space<vmem>>, vector<192x128xbf16>
    %cst = arith.constant dense<0.000000e+00> : vector<8x128xf32>
    %2 = tpu.matmul %0, %1, %cst {dimension_numbers = #tpu.dot_dimension_numbers<[1], [0], [0], [1], [0, 0, 1, 1], [], []>} : vector<8x192xbf16>, vector<192x128xbf16>, vector<8x128xf32> -> vector<8x128xf32>
    %3 = arith.truncf %2 : vector<8x128xf32> to vector<8x128xbf16>
    %c0_3 = arith.constant 0 : index
    %c0_4 = arith.constant 0 : index
    %4 = vector.load %arg4[%c0_3, %c0_4] : memref<8x128xbf16, #tpu.memory_space<vmem>>, vector<8x128xbf16>
    tpu.vector_store %arg4[%c0_3, %c0_4], %3 {strides = array<i32>} : memref<8x128xbf16, #tpu.memory_space<vmem>>, vector<8x128xbf16>,
    return
  }
  func.func @transform_0(%arg0: i32, %arg1: i32) -> (i32, i32) {
    %c0_i32 = arith.constant 0 : i32
    %c0_i32_0 = arith.constant 0 : i32
    return %arg0, %c0_i32 : i32, i32
  }
  func.func @transform_1(%arg0: i32, %arg1: i32) -> (i32, i32) {
    %c0_i32 = arith.constant 0 : i32
    %c0_i32_0 = arith.constant 0 : i32
    return %c0_i32, %arg1 : i32, i32
  }
  func.func @transform_2(%arg0: i32, %arg1: i32) -> (i32, i32) {
    %c0_i32 = arith.constant 0 : i32
    return %arg0, %arg1 : i32, i32
  }
}

module attributes {stable_mosaic.version = 11 : i64} {
  func.func @_layernorm_kernel(%arg0: i32, %arg1: memref<32x128xbf16, #tpu.memory_space<vmem>>, %arg2: memref<1x128xf32, #tpu.memory_space<vmem>>, %arg3: memref<1x128xf32, #tpu.memory_space<vmem>>, %arg4: memref<32x128xf32, #tpu.memory_space<vmem>>) attributes {dimension_semantics = [#tpu.dimension_semantics<parallel>], iteration_bounds = array<i64: 1>, scalar_prefetch = 0 : i64, scratch_operands = 0 : i64, tpu.core_type = #tpu.core_type<tc>, window_params = [{transform_indices = @transform_0, window_bounds = array<i64: 32, 128>}, {pipeline_mode = #tpu.pipeline_mode<synchronous>, transform_indices = @transform_1, window_bounds = array<i64: 1, 128>}, {pipeline_mode = #tpu.pipeline_mode<synchronous>, transform_indices = @transform_2, window_bounds = array<i64: 1, 128>}, {transform_indices = @transform_3, window_bounds = array<i64: 32, 128>}]} {
    %c0 = arith.constant 0 : index
    %c0_0 = arith.constant 0 : index
    %0 = vector.load %arg1[%c0, %c0_0] : memref<32x128xbf16, #tpu.memory_space<vmem>>, vector<32x128xbf16>
    %1 = arith.extf %0 : vector<32x128xbf16> to vector<32x128xf32>
    %cst = arith.constant dense<0.000000e+00> : vector<32xf32>
    %2 = vector.multi_reduction <add>, %1, %cst [1] : vector<32x128xf32> to vector<32xf32>
    %3 = vector.shape_cast %2 : vector<32xf32> to vector<32x1xf32>
    %cst_1 = arith.constant 1.280000e+02 : f32
    %4 = vector.broadcast %cst_1 : f32 to vector<32x1xf32>
    %5 = arith.divf %3, %4 : vector<32x1xf32>
    %6 = vector.broadcast %5 : vector<32x1xf32> to vector<32x128xf32>
    %7 = arith.subf %1, %6 : vector<32x128xf32>
    %8 = arith.mulf %7, %7 : vector<32x128xf32>
    %cst_2 = arith.constant dense<0.000000e+00> : vector<32xf32>
    %9 = vector.multi_reduction <add>, %8, %cst_2 [1] : vector<32x128xf32> to vector<32xf32>
    %10 = vector.shape_cast %9 : vector<32xf32> to vector<32x1xf32>
    %cst_3 = arith.constant 1.280000e+02 : f32
    %11 = vector.broadcast %cst_3 : f32 to vector<32x1xf32>
    %12 = arith.divf %10, %11 : vector<32x1xf32>
    %cst_4 = arith.constant 9.99999974E-6 : f32
    %13 = vector.broadcast %cst_4 : f32 to vector<32x1xf32>
    %14 = arith.addf %12, %13 : vector<32x1xf32>
    %15 = math.rsqrt %14 : vector<32x1xf32>
    %16 = vector.broadcast %15 : vector<32x1xf32> to vector<32x128xf32>
    %17 = arith.mulf %7, %16 : vector<32x128xf32>
    %c0_5 = arith.constant 0 : index
    %c0_6 = arith.constant 0 : index
    %18 = vector.load %arg2[%c0_5, %c0_6] : memref<1x128xf32, #tpu.memory_space<vmem>>, vector<1x128xf32>
    %19 = vector.broadcast %18 : vector<1x128xf32> to vector<32x128xf32>
    %20 = arith.mulf %17, %19 : vector<32x128xf32>
    %c0_7 = arith.constant 0 : index
    %c0_8 = arith.constant 0 : index
    %21 = vector.load %arg3[%c0_7, %c0_8] : memref<1x128xf32, #tpu.memory_space<vmem>>, vector<1x128xf32>
    %22 = vector.broadcast %21 : vector<1x128xf32> to vector<32x128xf32>
    %23 = arith.addf %20, %22 : vector<32x128xf32>
    %c0_9 = arith.constant 0 : index
    %c0_10 = arith.constant 0 : index
    %24 = vector.load %arg4[%c0_9, %c0_10] : memref<32x128xf32, #tpu.memory_space<vmem>>, vector<32x128xf32>
    tpu.vector_store %arg4[%c0_9, %c0_10], %23 {strides = array<i32>} : memref<32x128xf32, #tpu.memory_space<vmem>>, vector<32x128xf32>,
    return
  }
  func.func @transform_0(%arg0: i32) -> (i32, i32) {
    %c0_i32 = arith.constant 0 : i32
    %c0_i32_0 = arith.constant 0 : i32
    return %arg0, %c0_i32 : i32, i32
  }
  func.func @transform_1(%arg0: i32) -> (i32, i32) {
    %c0_i32 = arith.constant 0 : i32
    %c0_i32_0 = arith.constant 0 : i32
    %c0_i32_1 = arith.constant 0 : i32
    return %c0_i32, %c0_i32_0 : i32, i32
  }
  func.func @transform_2(%arg0: i32) -> (i32, i32) {
    %c0_i32 = arith.constant 0 : i32
    %c0_i32_0 = arith.constant 0 : i32
    %c0_i32_1 = arith.constant 0 : i32
    return %c0_i32, %c0_i32_0 : i32, i32
  }
  func.func @transform_3(%arg0: i32) -> (i32, i32) {
    %c0_i32 = arith.constant 0 : i32
    %c0_i32_0 = arith.constant 0 : i32
    return %arg0, %c0_i32 : i32, i32
  }
}

module attributes {stable_mosaic.version = 11 : i64} {
  func.func @_fused_linear_kernel(%arg0: i32, %arg1: i32, %arg2: memref<32x128xf32, #tpu.memory_space<vmem>>, %arg3: memref<128x128xbf16, #tpu.memory_space<vmem>>, %arg4: memref<1x128xf32, #tpu.memory_space<vmem>>, %arg5: memref<1x128xf32, #tpu.memory_space<vmem>>, %arg6: memref<1x128xf32, #tpu.memory_space<vmem>>, %arg7: memref<32x128xbf16, #tpu.memory_space<vmem>>, %arg8: memref<32x128xbf16, #tpu.memory_space<vmem>>) attributes {dimension_semantics = [#tpu.dimension_semantics<parallel>, #tpu.dimension_semantics<arbitrary>], iteration_bounds = array<i64: 1, 3>, scalar_prefetch = 0 : i64, scratch_operands = 1 : i64, tpu.core_type = #tpu.core_type<tc>, window_params = [{transform_indices = @transform_0, window_bounds = array<i64: 32, 128>}, {transform_indices = @transform_1, window_bounds = array<i64: 128, 128>}, {transform_indices = @transform_2, window_bounds = array<i64: 1, 128>}, {pipeline_mode = #tpu.pipeline_mode<synchronous>, transform_indices = @transform_3, window_bounds = array<i64: 1, 128>}, {pipeline_mode = #tpu.pipeline_mode<synchronous>, transform_indices = @transform_4, window_bounds = array<i64: 1, 128>}, {transform_indices = @transform_5, window_bounds = array<i64: 32, 128>}]} {
    %c0_i32 = arith.constant 0 : i32
    %0 = arith.cmpi eq, %arg1, %c0_i32 : i32
    %1 = arith.extui %0 : i1 to i32
    %c0_i32_0 = arith.constant 0 : i32
    %2 = arith.cmpi ne, %1, %c0_i32_0 : i32
    scf.if %2 {
      %c0_8 = arith.constant 0 : index
      %c0_9 = arith.constant 0 : index
      %11 = vector.load %arg2[%c0_8, %c0_9] : memref<32x128xf32, #tpu.memory_space<vmem>>, vector<32x128xf32>
      %cst_10 = arith.constant dense<0.000000e+00> : vector<32xf32>
      %12 = vector.multi_reduction <add>, %11, %cst_10 [1] : vector<32x128xf32> to vector<32xf32>
      %13 = vector.shape_cast %12 : vector<32xf32> to vector<32x1xf32>
      %cst_11 = arith.constant 1.280000e+02 : f32
      %14 = vector.broadcast %cst_11 : f32 to vector<32x1xf32>
      %15 = arith.divf %13, %14 : vector<32x1xf32>
      %16 = vector.broadcast %15 : vector<32x1xf32> to vector<32x128xf32>
      %17 = arith.subf %11, %16 : vector<32x128xf32>
      %18 = arith.mulf %17, %17 : vector<32x128xf32>
      %cst_12 = arith.constant dense<0.000000e+00> : vector<32xf32>
      %19 = vector.multi_reduction <add>, %18, %cst_12 [1] : vector<32x128xf32> to vector<32xf32>
      %20 = vector.shape_cast %19 : vector<32xf32> to vector<32x1xf32>
      %cst_13 = arith.constant 1.280000e+02 : f32
      %21 = vector.broadcast %cst_13 : f32 to vector<32x1xf32>
      %22 = arith.divf %20, %21 : vector<32x1xf32>
      %cst_14 = arith.constant 9.99999974E-6 : f32
      %23 = vector.broadcast %cst_14 : f32 to vector<32x1xf32>
      %24 = arith.addf %22, %23 : vector<32x1xf32>
      %25 = math.rsqrt %24 : vector<32x1xf32>
      %26 = vector.broadcast %25 : vector<32x1xf32> to vector<32x128xf32>
      %27 = arith.mulf %17, %26 : vector<32x128xf32>
      %c0_15 = arith.constant 0 : index
      %c0_16 = arith.constant 0 : index
      %28 = vector.load %arg5[%c0_15, %c0_16] : memref<1x128xf32, #tpu.memory_space<vmem>>, vector<1x128xf32>
      %29 = vector.broadcast %28 : vector<1x128xf32> to vector<32x128xf32>
      %30 = arith.mulf %27, %29 : vector<32x128xf32>
      %c0_17 = arith.constant 0 : index
      %c0_18 = arith.constant 0 : index
      %31 = vector.load %arg6[%c0_17, %c0_18] : memref<1x128xf32, #tpu.memory_space<vmem>>, vector<1x128xf32>
      %32 = vector.broadcast %31 : vector<1x128xf32> to vector<32x128xf32>
      %33 = arith.addf %30, %32 : vector<32x128xf32>
      %34 = arith.truncf %33 : vector<32x128xf32> to vector<32x128xbf16>
      %c0_19 = arith.constant 0 : index
      %c0_20 = arith.constant 0 : index
      %35 = vector.load %arg8[%c0_19, %c0_20] : memref<32x128xbf16, #tpu.memory_space<vmem>>, vector<32x128xbf16>
      tpu.vector_store %arg8[%c0_19, %c0_20], %34 {strides = array<i32>} : memref<32x128xbf16, #tpu.memory_space<vmem>>, vector<32x128xbf16>,
    } else {
    }
    %c0 = arith.constant 0 : index
    %c0_1 = arith.constant 0 : index
    %3 = vector.load %arg8[%c0, %c0_1] : memref<32x128xbf16, #tpu.memory_space<vmem>>, vector<32x128xbf16>
    %c0_2 = arith.constant 0 : index
    %c0_3 = arith.constant 0 : index
    %4 = vector.load %arg3[%c0_2, %c0_3] : memref<128x128xbf16, #tpu.memory_space<vmem>>, vector<128x128xbf16>
    %cst = arith.constant dense<0.000000e+00> : vector<32x128xf32>
    %5 = tpu.matmul %3, %4, %cst {dimension_numbers = #tpu.dot_dimension_numbers<[1], [0], [0], [1], [0, 0, 1, 1], [], []>} : vector<32x128xbf16>, vector<128x128xbf16>, vector<32x128xf32> -> vector<32x128xf32>
    %c0_4 = arith.constant 0 : index
    %c0_5 = arith.constant 0 : index
    %6 = vector.load %arg4[%c0_4, %c0_5] : memref<1x128xf32, #tpu.memory_space<vmem>>, vector<1x128xf32>
    %7 = vector.broadcast %6 : vector<1x128xf32> to vector<32x128xf32>
    %8 = arith.addf %5, %7 : vector<32x128xf32>
    %9 = arith.truncf %8 : vector<32x128xf32> to vector<32x128xbf16>
    %c0_6 = arith.constant 0 : index
    %c0_7 = arith.constant 0 : index
    %10 = vector.load %arg7[%c0_6, %c0_7] : memref<32x128xbf16, #tpu.memory_space<vmem>>, vector<32x128xbf16>
    tpu.vector_store %arg7[%c0_6, %c0_7], %9 {strides = array<i32>} : memref<32x128xbf16, #tpu.memory_space<vmem>>, vector<32x128xbf16>,
    return
  }
  func.func @transform_0(%arg0: i32, %arg1: i32) -> (i32, i32) {
    %c0_i32 = arith.constant 0 : i32
    %c0_i32_0 = arith.constant 0 : i32
    return %arg0, %c0_i32 : i32, i32
  }
  func.func @transform_1(%arg0: i32, %arg1: i32) -> (i32, i32) {
    %c0_i32 = arith.constant 0 : i32
    %c0_i32_0 = arith.constant 0 : i32
    return %c0_i32, %arg1 : i32, i32
  }
  func.func @transform_2(%arg0: i32, %arg1: i32) -> (i32, i32) {
    %c0_i32 = arith.constant 0 : i32
    %c0_i32_0 = arith.constant 0 : i32
    return %c0_i32, %arg1 : i32, i32
  }
  func.func @transform_3(%arg0: i32, %arg1: i32) -> (i32, i32) {
    %c0_i32 = arith.constant 0 : i32
    %c0_i32_0 = arith.constant 0 : i32
    %c0_i32_1 = arith.constant 0 : i32
    return %c0_i32, %c0_i32_0 : i32, i32
  }
  func.func @transform_4(%arg0: i32, %arg1: i32) -> (i32, i32) {
    %c0_i32 = arith.constant 0 : i32
    %c0_i32_0 = arith.constant 0 : i32
    %c0_i32_1 = arith.constant 0 : i32
    return %c0_i32, %c0_i32_0 : i32, i32
  }
  func.func @transform_5(%arg0: i32, %arg1: i32) -> (i32, i32) {
    %c0_i32 = arith.constant 0 : i32
    return %arg0, %arg1 : i32, i32
  }
}

module attributes {stable_mosaic.version = 11 : i64} {
  func.func @_mha_kernel(%arg0: i32, %arg1: i32, %arg2: memref<1x16x384xbf16, #tpu.memory_space<vmem>>, %arg3: memref<1x16x128xbf16, #tpu.memory_space<vmem>>) attributes {dimension_semantics = [#tpu.dimension_semantics<parallel>, #tpu.dimension_semantics<parallel>], iteration_bounds = array<i64: 2, 1>, scalar_prefetch = 0 : i64, scratch_operands = 0 : i64, tpu.core_type = #tpu.core_type<tc>, window_params = [{transform_indices = @transform_0, window_bounds = array<i64: 1, 16, 384>}, {transform_indices = @transform_1, window_bounds = array<i64: 1, 16, 128>}]} {
    %c0 = arith.constant 0 : index
    %c0_0 = arith.constant 0 : index
    %c0_1 = arith.constant 0 : index
    %0 = vector.load %arg2[%c0, %c0_0, %c0_1] : memref<1x16x384xbf16, #tpu.memory_space<vmem>>, vector<1x16x384xbf16>
    %1 = vector.shape_cast %0 : vector<1x16x384xbf16> to vector<16x384xbf16>
    %2 = tpu.iota {dimensions = array<i32: 1>} : vector<1x16xi32>
    %c5_i32 = arith.constant 5 : i32
    %3 = vector.broadcast %c5_i32 : i32 to vector<1x16xi32>
    %4 = arith.cmpi slt, %2, %3 : vector<1x16xi32>
    %5 = vector.extract_strided_slice %1 {offsets = [0, 0], sizes = [16, 64], strides = [1, 1]} : vector<16x384xbf16> to vector<16x64xbf16>
    %6 = vector.extract_strided_slice %1 {offsets = [0, 128], sizes = [16, 64], strides = [1, 1]} : vector<16x384xbf16> to vector<16x64xbf16>
    %7 = vector.extract_strided_slice %1 {offsets = [0, 256], sizes = [16, 64], strides = [1, 1]} : vector<16x384xbf16> to vector<16x64xbf16>
    %cst = arith.constant dense<0.000000e+00> : vector<16x16xf32>
    %8 = tpu.matmul %5, %6, %cst {dimension_numbers = #tpu.dot_dimension_numbers<[1], [1], [0], [0], [0, 0, 1, 0], [], []>} : vector<16x64xbf16>, vector<16x64xbf16>, vector<16x16xf32> -> vector<16x16xf32>
    %cst_2 = arith.constant 1.250000e-01 : f32
    %9 = vector.broadcast %cst_2 : f32 to vector<16x16xf32>
    %10 = arith.mulf %8, %9 : vector<16x16xf32>
    %cst_3 = arith.constant -1.000000e+30 : f32
    %11 = vector.shape_cast %4 : vector<1x16xi1> to vector<1x16xi1>
    %12 = vector.broadcast %11 : vector<1x16xi1> to vector<16x16xi1>
    %13 = vector.broadcast %cst_3 : f32 to vector<16x16xf32>
    %14 = arith.select %12, %10, %13 : vector<16x16xi1>, vector<16x16xf32>
    %cst_4 = arith.constant dense<0xFF800000> : vector<16xf32>
    %15 = vector.multi_reduction <maximumf>, %14, %cst_4 [1] : vector<16x16xf32> to vector<16xf32>
    %16 = vector.shape_cast %15 : vector<16xf32> to vector<16x1xf32>
    %17 = vector.broadcast %16 : vector<16x1xf32> to vector<16x16xf32>
    %18 = arith.subf %14, %17 : vector<16x16xf32>
    %19 = math.exp %18 : vector<16x16xf32>
    %cst_5 = arith.constant dense<0.000000e+00> : vector<16xf32>
    %20 = vector.multi_reduction <add>, %19, %cst_5 [1] : vector<16x16xf32> to vector<16xf32>
    %21 = vector.shape_cast %20 : vector<16xf32> to vector<16x1xf32>
    %22 = vector.broadcast %21 : vector<16x1xf32> to vector<16x16xf32>
    %23 = arith.divf %19, %22 : vector<16x16xf32>
    %24 = arith.truncf %23 : vector<16x16xf32> to vector<16x16xbf16>
    %cst_6 = arith.constant dense<0.000000e+00> : vector<16x64xf32>
    %25 = tpu.matmul %24, %7, %cst_6 {dimension_numbers = #tpu.dot_dimension_numbers<[1], [0], [0], [1], [0, 0, 1, 1], [], []>} : vector<16x16xbf16>, vector<16x64xbf16>, vector<16x64xf32> -> vector<16x64xf32>
    %26 = arith.truncf %25 : vector<16x64xf32> to vector<16x64xbf16>
    %27 = vector.extract_strided_slice %1 {offsets = [0, 64], sizes = [16, 64], strides = [1, 1]} : vector<16x384xbf16> to vector<16x64xbf16>
    %28 = vector.extract_strided_slice %1 {offsets = [0, 192], sizes = [16, 64], strides = [1, 1]} : vector<16x384xbf16> to vector<16x64xbf16>
    %29 = vector.extract_strided_slice %1 {offsets = [0, 320], sizes = [16, 64], strides = [1, 1]} : vector<16x384xbf16> to vector<16x64xbf16>
    %cst_7 = arith.constant dense<0.000000e+00> : vector<16x16xf32>
    %30 = tpu.matmul %27, %28, %cst_7 {dimension_numbers = #tpu.dot_dimension_numbers<[1], [1], [0], [0], [0, 0, 1, 0], [], []>} : vector<16x64xbf16>, vector<16x64xbf16>, vector<16x16xf32> -> vector<16x16xf32>
    %cst_8 = arith.constant 1.250000e-01 : f32
    %31 = vector.broadcast %cst_8 : f32 to vector<16x16xf32>
    %32 = arith.mulf %30, %31 : vector<16x16xf32>
    %cst_9 = arith.constant -1.000000e+30 : f32
    %33 = vector.shape_cast %4 : vector<1x16xi1> to vector<1x16xi1>
    %34 = vector.broadcast %33 : vector<1x16xi1> to vector<16x16xi1>
    %35 = vector.broadcast %cst_9 : f32 to vector<16x16xf32>
    %36 = arith.select %34, %32, %35 : vector<16x16xi1>, vector<16x16xf32>
    %cst_10 = arith.constant dense<0xFF800000> : vector<16xf32>
    %37 = vector.multi_reduction <maximumf>, %36, %cst_10 [1] : vector<16x16xf32> to vector<16xf32>
    %38 = vector.shape_cast %37 : vector<16xf32> to vector<16x1xf32>
    %39 = vector.broadcast %38 : vector<16x1xf32> to vector<16x16xf32>
    %40 = arith.subf %36, %39 : vector<16x16xf32>
    %41 = math.exp %40 : vector<16x16xf32>
    %cst_11 = arith.constant dense<0.000000e+00> : vector<16xf32>
    %42 = vector.multi_reduction <add>, %41, %cst_11 [1] : vector<16x16xf32> to vector<16xf32>
    %43 = vector.shape_cast %42 : vector<16xf32> to vector<16x1xf32>
    %44 = vector.broadcast %43 : vector<16x1xf32> to vector<16x16xf32>
    %45 = arith.divf %41, %44 : vector<16x16xf32>
    %46 = arith.truncf %45 : vector<16x16xf32> to vector<16x16xbf16>
    %cst_12 = arith.constant dense<0.000000e+00> : vector<16x64xf32>
    %47 = tpu.matmul %46, %29, %cst_12 {dimension_numbers = #tpu.dot_dimension_numbers<[1], [0], [0], [1], [0, 0, 1, 1], [], []>} : vector<16x16xbf16>, vector<16x64xbf16>, vector<16x64xf32> -> vector<16x64xf32>
    %48 = arith.truncf %47 : vector<16x64xf32> to vector<16x64xbf16>
    %49 = tpu.concatenate %26, %48 in 1 : vector<16x64xbf16>, vector<16x64xbf16> -> vector<16x128xbf16>
    %c0_13 = arith.constant 0 : index
    %c0_14 = arith.constant 0 : index
    %c0_15 = arith.constant 0 : index
    %50 = vector.load %arg3[%c0_13, %c0_14, %c0_15] : memref<1x16x128xbf16, #tpu.memory_space<vmem>>, vector<1x16x128xbf16>
    %51 = vector.shape_cast %50 : vector<1x16x128xbf16> to vector<16x128xbf16>
    %52 = vector.shape_cast %49 : vector<16x128xbf16> to vector<1x16x128xbf16>
    tpu.vector_store %arg3[%c0_13, %c0_14, %c0_15], %52 {strides = array<i32>} : memref<1x16x128xbf16, #tpu.memory_space<vmem>>, vector<1x16x128xbf16>,
    return
  }
  func.func @transform_0(%arg0: i32, %arg1: i32) -> (i32, i32, i32) {
    %c0_i32 = arith.constant 0 : i32
    %c0_i32_0 = arith.constant 0 : i32
    return %arg0, %c0_i32, %arg1 : i32, i32, i32
  }
  func.func @transform_1(%arg0: i32, %arg1: i32) -> (i32, i32, i32) {
    %c0_i32 = arith.constant 0 : i32
    %c0_i32_0 = arith.constant 0 : i32
    return %arg0, %c0_i32, %arg1 : i32, i32, i32
  }
}

module attributes {stable_mosaic.version = 11 : i64} {
  func.func @_fused_linear_kernel(%arg0: i32, %arg1: i32, %arg2: memref<32x128xbf16, #tpu.memory_space<vmem>>, %arg3: memref<128x128xbf16, #tpu.memory_space<vmem>>, %arg4: memref<1x128xf32, #tpu.memory_space<vmem>>, %arg5: memref<32x128xf32, #tpu.memory_space<vmem>>, %arg6: memref<32x128xf32, #tpu.memory_space<vmem>>) attributes {dimension_semantics = [#tpu.dimension_semantics<parallel>, #tpu.dimension_semantics<parallel>], iteration_bounds = array<i64: 1, 1>, scalar_prefetch = 0 : i64, scratch_operands = 0 : i64, tpu.core_type = #tpu.core_type<tc>, window_params = [{transform_indices = @transform_0, window_bounds = array<i64: 32, 128>}, {transform_indices = @transform_1, window_bounds = array<i64: 128, 128>}, {transform_indices = @transform_2, window_bounds = array<i64: 1, 128>}, {transform_indices = @transform_3, window_bounds = array<i64: 32, 128>}, {transform_indices = @transform_4, window_bounds = array<i64: 32, 128>}]} {
    %c0 = arith.constant 0 : index
    %c0_0 = arith.constant 0 : index
    %0 = vector.load %arg2[%c0, %c0_0] : memref<32x128xbf16, #tpu.memory_space<vmem>>, vector<32x128xbf16>
    %c0_1 = arith.constant 0 : index
    %c0_2 = arith.constant 0 : index
    %1 = vector.load %arg3[%c0_1, %c0_2] : memref<128x128xbf16, #tpu.memory_space<vmem>>, vector<128x128xbf16>
    %cst = arith.constant dense<0.000000e+00> : vector<32x128xf32>
    %2 = tpu.matmul %0, %1, %cst {dimension_numbers = #tpu.dot_dimension_numbers<[1], [0], [0], [1], [0, 0, 1, 1], [], []>} : vector<32x128xbf16>, vector<128x128xbf16>, vector<32x128xf32> -> vector<32x128xf32>
    %c0_3 = arith.constant 0 : index
    %c0_4 = arith.constant 0 : index
    %3 = vector.load %arg4[%c0_3, %c0_4] : memref<1x128xf32, #tpu.memory_space<vmem>>, vector<1x128xf32>
    %4 = vector.broadcast %3 : vector<1x128xf32> to vector<32x128xf32>
    %5 = arith.addf %2, %4 : vector<32x128xf32>
    %c0_5 = arith.constant 0 : index
    %c0_6 = arith.constant 0 : index
    %6 = vector.load %arg5[%c0_5, %c0_6] : memref<32x128xf32, #tpu.memory_space<vmem>>, vector<32x128xf32>
    %7 = arith.addf %5, %6 : vector<32x128xf32>
    %c0_7 = arith.constant 0 : index
    %c0_8 = arith.constant 0 : index
    %8 = vector.load %arg6[%c0_7, %c0_8] : memref<32x128xf32, #tpu.memory_space<vmem>>, vector<32x128xf32>
    tpu.vector_store %arg6[%c0_7, %c0_8], %7 {strides = array<i32>} : memref<32x128xf32, #tpu.memory_space<vmem>>, vector<32x128xf32>,
    return
  }
  func.func @transform_0(%arg0: i32, %arg1: i32) -> (i32, i32) {
    %c0_i32 = arith.constant 0 : i32
    %c0_i32_0 = arith.constant 0 : i32
    return %arg0, %c0_i32 : i32, i32
  }
  func.func @transform_1(%arg0: i32, %arg1: i32) -> (i32, i32) {
    %c0_i32 = arith.constant 0 : i32
    %c0_i32_0 = arith.constant 0 : i32
    return %c0_i32, %arg1 : i32, i32
  }
  func.func @transform_2(%arg0: i32, %arg1: i32) -> (i32, i32) {
    %c0_i32 = arith.constant 0 : i32
    %c0_i32_0 = arith.constant 0 : i32
    return %c0_i32, %arg1 : i32, i32
  }
  func.func @transform_3(%arg0: i32, %arg1: i32) -> (i32, i32) {
    %c0_i32 = arith.constant 0 : i32
    return %arg0, %arg1 : i32, i32
  }
  func.func @transform_4(%arg0: i32, %arg1: i32) -> (i32, i32) {
    %c0_i32 = arith.constant 0 : i32
    return %arg0, %arg1 : i32, i32
  }
}

module attributes {stable_mosaic.version = 11 : i64} {
  func.func @_fused_mlp_kernel(%arg0: i32, %arg1: i32, %arg2: memref<32x128xf32, #tpu.memory_space<vmem>>, %arg3: memref<1x128xf32, #tpu.memory_space<vmem>>, %arg4: memref<1x128xf32, #tpu.memory_space<vmem>>, %arg5: memref<128x256xbf16, #tpu.memory_space<vmem>>, %arg6: memref<1x256xf32, #tpu.memory_space<vmem>>, %arg7: memref<256x128xbf16, #tpu.memory_space<vmem>>, %arg8: memref<1x128xf32, #tpu.memory_space<vmem>>, %arg9: memref<32x128xf32, #tpu.memory_space<vmem>>, %arg10: memref<32x128xbf16, #tpu.memory_space<vmem>>, %arg11: memref<32x128xf32, #tpu.memory_space<vmem>>) attributes {dimension_semantics = [#tpu.dimension_semantics<parallel>, #tpu.dimension_semantics<arbitrary>], iteration_bounds = array<i64: 1, 2>, scalar_prefetch = 0 : i64, scratch_operands = 2 : i64, tpu.core_type = #tpu.core_type<tc>, window_params = [{transform_indices = @transform_0, window_bounds = array<i64: 32, 128>}, {pipeline_mode = #tpu.pipeline_mode<synchronous>, transform_indices = @transform_1, window_bounds = array<i64: 1, 128>}, {pipeline_mode = #tpu.pipeline_mode<synchronous>, transform_indices = @transform_2, window_bounds = array<i64: 1, 128>}, {transform_indices = @transform_3, window_bounds = array<i64: 128, 256>}, {transform_indices = @transform_4, window_bounds = array<i64: 1, 256>}, {transform_indices = @transform_5, window_bounds = array<i64: 256, 128>}, {pipeline_mode = #tpu.pipeline_mode<synchronous>, transform_indices = @transform_6, window_bounds = array<i64: 1, 128>}, {transform_indices = @transform_7, window_bounds = array<i64: 32, 128>}]} {
    %c0_i32 = arith.constant 0 : i32
    %0 = arith.cmpi eq, %arg1, %c0_i32 : i32
    %1 = arith.extui %0 : i1 to i32
    %c0_i32_0 = arith.constant 0 : i32
    %2 = arith.cmpi ne, %1, %c0_i32_0 : i32
    scf.if %2 {
      %c0_16 = arith.constant 0 : index
      %c0_17 = arith.constant 0 : index
      %26 = vector.load %arg2[%c0_16, %c0_17] : memref<32x128xf32, #tpu.memory_space<vmem>>, vector<32x128xf32>
      %cst_18 = arith.constant dense<0.000000e+00> : vector<32xf32>
      %27 = vector.multi_reduction <add>, %26, %cst_18 [1] : vector<32x128xf32> to vector<32xf32>
      %28 = vector.shape_cast %27 : vector<32xf32> to vector<32x1xf32>
      %cst_19 = arith.constant 1.280000e+02 : f32
      %29 = vector.broadcast %cst_19 : f32 to vector<32x1xf32>
      %30 = arith.divf %28, %29 : vector<32x1xf32>
      %31 = vector.broadcast %30 : vector<32x1xf32> to vector<32x128xf32>
      %32 = arith.subf %26, %31 : vector<32x128xf32>
      %33 = arith.mulf %32, %32 : vector<32x128xf32>
      %cst_20 = arith.constant dense<0.000000e+00> : vector<32xf32>
      %34 = vector.multi_reduction <add>, %33, %cst_20 [1] : vector<32x128xf32> to vector<32xf32>
      %35 = vector.shape_cast %34 : vector<32xf32> to vector<32x1xf32>
      %cst_21 = arith.constant 1.280000e+02 : f32
      %36 = vector.broadcast %cst_21 : f32 to vector<32x1xf32>
      %37 = arith.divf %35, %36 : vector<32x1xf32>
      %cst_22 = arith.constant 9.99999974E-6 : f32
      %38 = vector.broadcast %cst_22 : f32 to vector<32x1xf32>
      %39 = arith.addf %37, %38 : vector<32x1xf32>
      %40 = math.rsqrt %39 : vector<32x1xf32>
      %41 = vector.broadcast %40 : vector<32x1xf32> to vector<32x128xf32>
      %42 = arith.mulf %32, %41 : vector<32x128xf32>
      %c0_23 = arith.constant 0 : index
      %c0_24 = arith.constant 0 : index
      %43 = vector.load %arg3[%c0_23, %c0_24] : memref<1x128xf32, #tpu.memory_space<vmem>>, vector<1x128xf32>
      %44 = vector.broadcast %43 : vector<1x128xf32> to vector<32x128xf32>
      %45 = arith.mulf %42, %44 : vector<32x128xf32>
      %c0_25 = arith.constant 0 : index
      %c0_26 = arith.constant 0 : index
      %46 = vector.load %arg4[%c0_25, %c0_26] : memref<1x128xf32, #tpu.memory_space<vmem>>, vector<1x128xf32>
      %47 = vector.broadcast %46 : vector<1x128xf32> to vector<32x128xf32>
      %48 = arith.addf %45, %47 : vector<32x128xf32>
      %49 = arith.truncf %48 : vector<32x128xf32> to vector<32x128xbf16>
      %c0_27 = arith.constant 0 : index
      %c0_28 = arith.constant 0 : index
      %50 = vector.load %arg10[%c0_27, %c0_28] : memref<32x128xbf16, #tpu.memory_space<vmem>>, vector<32x128xbf16>
      tpu.vector_store %arg10[%c0_27, %c0_28], %49 {strides = array<i32>} : memref<32x128xbf16, #tpu.memory_space<vmem>>, vector<32x128xbf16>,
      %cst_29 = arith.constant 0.000000e+00 : f32
      %51 = vector.broadcast %cst_29 : f32 to vector<32x128xf32>
      %c0_30 = arith.constant 0 : index
      %c0_31 = arith.constant 0 : index
      %52 = vector.load %arg11[%c0_30, %c0_31] : memref<32x128xf32, #tpu.memory_space<vmem>>, vector<32x128xf32>
      tpu.vector_store %arg11[%c0_30, %c0_31], %51 {strides = array<i32>} : memref<32x128xf32, #tpu.memory_space<vmem>>, vector<32x128xf32>,
    } else {
    }
    %c0 = arith.constant 0 : index
    %c0_1 = arith.constant 0 : index
    %3 = vector.load %arg10[%c0, %c0_1] : memref<32x128xbf16, #tpu.memory_space<vmem>>, vector<32x128xbf16>
    %c0_2 = arith.constant 0 : index
    %c0_3 = arith.constant 0 : index
    %4 = vector.load %arg5[%c0_2, %c0_3] : memref<128x256xbf16, #tpu.memory_space<vmem>>, vector<128x256xbf16>
    %cst = arith.constant dense<0.000000e+00> : vector<32x256xf32>
    %5 = tpu.matmul %3, %4, %cst {dimension_numbers = #tpu.dot_dimension_numbers<[1], [0], [0], [1], [0, 0, 1, 1], [], []>} : vector<32x128xbf16>, vector<128x256xbf16>, vector<32x256xf32> -> vector<32x256xf32>
    %c0_4 = arith.constant 0 : index
    %c0_5 = arith.constant 0 : index
    %6 = vector.load %arg6[%c0_4, %c0_5] : memref<1x256xf32, #tpu.memory_space<vmem>>, vector<1x256xf32>
    %7 = vector.broadcast %6 : vector<1x256xf32> to vector<32x256xf32>
    %8 = arith.addf %5, %7 : vector<32x256xf32>
    %cst_6 = arith.constant 1.702000e+00 : f32
    %9 = vector.broadcast %cst_6 : f32 to vector<32x256xf32>
    %10 = arith.mulf %9, %8 : vector<32x256xf32>
    %11 = arith.negf %10 : vector<32x256xf32>
    %12 = math.exp %11 : vector<32x256xf32>
    %cst_7 = arith.constant 1.000000e+00 : f32
    %13 = vector.broadcast %cst_7 : f32 to vector<32x256xf32>
    %14 = arith.addf %13, %12 : vector<32x256xf32>
    %15 = arith.divf %13, %14 : vector<32x256xf32>
    %16 = arith.mulf %8, %15 : vector<32x256xf32>
    %c0_8 = arith.constant 0 : index
    %c0_9 = arith.constant 0 : index
    %17 = vector.load %arg11[%c0_8, %c0_9] : memref<32x128xf32, #tpu.memory_space<vmem>>, vector<32x128xf32>
    %18 = arith.truncf %16 : vector<32x256xf32> to vector<32x256xbf16>
    %c0_10 = arith.constant 0 : index
    %c0_11 = arith.constant 0 : index
    %19 = vector.load %arg7[%c0_10, %c0_11] : memref<256x128xbf16, #tpu.memory_space<vmem>>, vector<256x128xbf16>
    %cst_12 = arith.constant dense<0.000000e+00> : vector<32x128xf32>
    %20 = tpu.matmul %18, %19, %cst_12 {dimension_numbers = #tpu.dot_dimension_numbers<[1], [0], [0], [1], [0, 0, 1, 1], [], []>} : vector<32x256xbf16>, vector<256x128xbf16>, vector<32x128xf32> -> vector<32x128xf32>
    %21 = arith.addf %17, %20 : vector<32x128xf32>
    %c0_13 = arith.constant 0 : index
    %c0_14 = arith.constant 0 : index
    %22 = vector.load %arg11[%c0_13, %c0_14] : memref<32x128xf32, #tpu.memory_space<vmem>>, vector<32x128xf32>
    tpu.vector_store %arg11[%c0_13, %c0_14], %21 {strides = array<i32>} : memref<32x128xf32, #tpu.memory_space<vmem>>, vector<32x128xf32>,
    %c1_i32 = arith.constant 1 : i32
    %23 = arith.cmpi eq, %arg1, %c1_i32 : i32
    %24 = arith.extui %23 : i1 to i32
    %c0_i32_15 = arith.constant 0 : i32
    %25 = arith.cmpi ne, %24, %c0_i32_15 : i32
    scf.if %25 {
      %c0_16 = arith.constant 0 : index
      %c0_17 = arith.constant 0 : index
      %26 = vector.load %arg11[%c0_16, %c0_17] : memref<32x128xf32, #tpu.memory_space<vmem>>, vector<32x128xf32>
      %c0_18 = arith.constant 0 : index
      %c0_19 = arith.constant 0 : index
      %27 = vector.load %arg8[%c0_18, %c0_19] : memref<1x128xf32, #tpu.memory_space<vmem>>, vector<1x128xf32>
      %28 = vector.broadcast %27 : vector<1x128xf32> to vector<32x128xf32>
      %29 = arith.addf %26, %28 : vector<32x128xf32>
      %c0_20 = arith.constant 0 : index
      %c0_21 = arith.constant 0 : index
      %30 = vector.load %arg2[%c0_20, %c0_21] : memref<32x128xf32, #tpu.memory_space<vmem>>, vector<32x128xf32>
      %31 = arith.addf %29, %30 : vector<32x128xf32>
      %c0_22 = arith.constant 0 : index
      %c0_23 = arith.constant 0 : index
      %32 = vector.load %arg9[%c0_22, %c0_23] : memref<32x128xf32, #tpu.memory_space<vmem>>, vector<32x128xf32>
      tpu.vector_store %arg9[%c0_22, %c0_23], %31 {strides = array<i32>} : memref<32x128xf32, #tpu.memory_space<vmem>>, vector<32x128xf32>,
    } else {
    }
    return
  }
  func.func @transform_0(%arg0: i32, %arg1: i32) -> (i32, i32) {
    %c0_i32 = arith.constant 0 : i32
    %c0_i32_0 = arith.constant 0 : i32
    return %arg0, %c0_i32 : i32, i32
  }
  func.func @transform_1(%arg0: i32, %arg1: i32) -> (i32, i32) {
    %c0_i32 = arith.constant 0 : i32
    %c0_i32_0 = arith.constant 0 : i32
    %c0_i32_1 = arith.constant 0 : i32
    return %c0_i32, %c0_i32_0 : i32, i32
  }
  func.func @transform_2(%arg0: i32, %arg1: i32) -> (i32, i32) {
    %c0_i32 = arith.constant 0 : i32
    %c0_i32_0 = arith.constant 0 : i32
    %c0_i32_1 = arith.constant 0 : i32
    return %c0_i32, %c0_i32_0 : i32, i32
  }
  func.func @transform_3(%arg0: i32, %arg1: i32) -> (i32, i32) {
    %c0_i32 = arith.constant 0 : i32
    %c0_i32_0 = arith.constant 0 : i32
    return %c0_i32, %arg1 : i32, i32
  }
  func.func @transform_4(%arg0: i32, %arg1: i32) -> (i32, i32) {
    %c0_i32 = arith.constant 0 : i32
    %c0_i32_0 = arith.constant 0 : i32
    return %c0_i32, %arg1 : i32, i32
  }
  func.func @transform_5(%arg0: i32, %arg1: i32) -> (i32, i32) {
    %c0_i32 = arith.constant 0 : i32
    %c0_i32_0 = arith.constant 0 : i32
    return %arg1, %c0_i32 : i32, i32
  }
  func.func @transform_6(%arg0: i32, %arg1: i32) -> (i32, i32) {
    %c0_i32 = arith.constant 0 : i32
    %c0_i32_0 = arith.constant 0 : i32
    %c0_i32_1 = arith.constant 0 : i32
    return %c0_i32, %c0_i32_0 : i32, i32
  }
  func.func @transform_7(%arg0: i32, %arg1: i32) -> (i32, i32) {
    %c0_i32 = arith.constant 0 : i32
    %c0_i32_0 = arith.constant 0 : i32
    return %arg0, %c0_i32 : i32, i32
  }
}

module attributes {stable_mosaic.version = 11 : i64} {
  func.func @_layernorm_kernel(%arg0: i32, %arg1: memref<32x128xf32, #tpu.memory_space<vmem>>, %arg2: memref<1x128xf32, #tpu.memory_space<vmem>>, %arg3: memref<1x128xf32, #tpu.memory_space<vmem>>, %arg4: memref<32x128xf32, #tpu.memory_space<vmem>>) attributes {dimension_semantics = [#tpu.dimension_semantics<parallel>], iteration_bounds = array<i64: 1>, scalar_prefetch = 0 : i64, scratch_operands = 0 : i64, tpu.core_type = #tpu.core_type<tc>, window_params = [{transform_indices = @transform_0, window_bounds = array<i64: 32, 128>}, {pipeline_mode = #tpu.pipeline_mode<synchronous>, transform_indices = @transform_1, window_bounds = array<i64: 1, 128>}, {pipeline_mode = #tpu.pipeline_mode<synchronous>, transform_indices = @transform_2, window_bounds = array<i64: 1, 128>}, {transform_indices = @transform_3, window_bounds = array<i64: 32, 128>}]} {
    %c0 = arith.constant 0 : index
    %c0_0 = arith.constant 0 : index
    %0 = vector.load %arg1[%c0, %c0_0] : memref<32x128xf32, #tpu.memory_space<vmem>>, vector<32x128xf32>
    %cst = arith.constant dense<0.000000e+00> : vector<32xf32>
    %1 = vector.multi_reduction <add>, %0, %cst [1] : vector<32x128xf32> to vector<32xf32>
    %2 = vector.shape_cast %1 : vector<32xf32> to vector<32x1xf32>
    %cst_1 = arith.constant 1.280000e+02 : f32
    %3 = vector.broadcast %cst_1 : f32 to vector<32x1xf32>
    %4 = arith.divf %2, %3 : vector<32x1xf32>
    %5 = vector.broadcast %4 : vector<32x1xf32> to vector<32x128xf32>
    %6 = arith.subf %0, %5 : vector<32x128xf32>
    %7 = arith.mulf %6, %6 : vector<32x128xf32>
    %cst_2 = arith.constant dense<0.000000e+00> : vector<32xf32>
    %8 = vector.multi_reduction <add>, %7, %cst_2 [1] : vector<32x128xf32> to vector<32xf32>
    %9 = vector.shape_cast %8 : vector<32xf32> to vector<32x1xf32>
    %cst_3 = arith.constant 1.280000e+02 : f32
    %10 = vector.broadcast %cst_3 : f32 to vector<32x1xf32>
    %11 = arith.divf %9, %10 : vector<32x1xf32>
    %cst_4 = arith.constant 9.99999974E-6 : f32
    %12 = vector.broadcast %cst_4 : f32 to vector<32x1xf32>
    %13 = arith.addf %11, %12 : vector<32x1xf32>
    %14 = math.rsqrt %13 : vector<32x1xf32>
    %15 = vector.broadcast %14 : vector<32x1xf32> to vector<32x128xf32>
    %16 = arith.mulf %6, %15 : vector<32x128xf32>
    %c0_5 = arith.constant 0 : index
    %c0_6 = arith.constant 0 : index
    %17 = vector.load %arg2[%c0_5, %c0_6] : memref<1x128xf32, #tpu.memory_space<vmem>>, vector<1x128xf32>
    %18 = vector.broadcast %17 : vector<1x128xf32> to vector<32x128xf32>
    %19 = arith.mulf %16, %18 : vector<32x128xf32>
    %c0_7 = arith.constant 0 : index
    %c0_8 = arith.constant 0 : index
    %20 = vector.load %arg3[%c0_7, %c0_8] : memref<1x128xf32, #tpu.memory_space<vmem>>, vector<1x128xf32>
    %21 = vector.broadcast %20 : vector<1x128xf32> to vector<32x128xf32>
    %22 = arith.addf %19, %21 : vector<32x128xf32>
    %c0_9 = arith.constant 0 : index
    %c0_10 = arith.constant 0 : index
    %23 = vector.load %arg4[%c0_9, %c0_10] : memref<32x128xf32, #tpu.memory_space<vmem>>, vector<32x128xf32>
    tpu.vector_store %arg4[%c0_9, %c0_10], %22 {strides = array<i32>} : memref<32x128xf32, #tpu.memory_space<vmem>>, vector<32x128xf32>,
    return
  }
  func.func @transform_0(%arg0: i32) -> (i32, i32) {
    %c0_i32 = arith.constant 0 : i32
    %c0_i32_0 = arith.constant 0 : i32
    return %arg0, %c0_i32 : i32, i32
  }
  func.func @transform_1(%arg0: i32) -> (i32, i32) {
    %c0_i32 = arith.constant 0 : i32
    %c0_i32_0 = arith.constant 0 : i32
    %c0_i32_1 = arith.constant 0 : i32
    return %c0_i32, %c0_i32_0 : i32, i32
  }
  func.func @transform_2(%arg0: i32) -> (i32, i32) {
    %c0_i32 = arith.constant 0 : i32
    %c0_i32_0 = arith.constant 0 : i32
    %c0_i32_1 = arith.constant 0 : i32
    return %c0_i32, %c0_i32_0 : i32, i32
  }
  func.func @transform_3(%arg0: i32) -> (i32, i32) {
    %c0_i32 = arith.constant 0 : i32
    %c0_i32_0 = arith.constant 0 : i32
    return %arg0, %c0_i32 : i32, i32
  }
}

</mosaic_0001>

<llo_original>
// kernel: bridgetower_vision_forward.12
$region0: #{bridgetower_vision_forward.12}
  #allocation0 [shape = 'u32[]', space=smem, size = 0x4, offset = 0x4, fixed_abs, tag = 'smem constant byte address 0x4 - core index']
  #allocation1 [shape = 'u32[72,128]{1,0:T(1,128)}', space=vmem, size = 0x9000, scoped, tag = 'internal scratch']
  %s0 = inlined_call_operand.vmem [shape: bf16[8,192], index: 0, kind: input, shape index: {}]
  %s1 = inlined_call_operand.vmem [shape: bf16[192,128], index: 1, kind: input, shape index: {}]
  %s2 = inlined_call_operand.vmem [shape: bf16[8,128], index: 2, kind: output, shape index: {}]
  %s3 = sld [smem:[#allocation0]]
  $region18: #{bridgetower_vision_forward.12} parent=0
    _
  %s5 = ssub.s32 1, %s3
  %s6 = scalar_select 0, %s5, %s3
  // Predicated region
  $region2: #{bridgetower_vision_forward.12} parent=0 // pred_check
    _
  $region3: #{bridgetower_vision_forward.12} parent=0 // pred_check_branch
    %8 = sbr.rel (0) target = $region5
  $region4: #{bridgetower_vision_forward.12} parent=0 // pred_region
    _
  $region5: #{bridgetower_vision_forward.12} parent=0 // pred_fallthru
    _
  // Predicated region
  $region6: #{bridgetower_vision_forward.12} parent=0 // pred_check
    _
  $region7: #{bridgetower_vision_forward.12} parent=0 // pred_check_branch
    %10 = sbr.rel (0) target = $region9
  $region8: #{bridgetower_vision_forward.12} parent=0 // pred_region
    _
  $region9: #{bridgetower_vision_forward.12} parent=0 // pred_fallthru
    _
  %v12 = vld [vmem:[%s0] sm:$0xff]
  %v13 = vld [vmem:[%s1] sm:$0xf]
  %v14 = vld [vmem:[%s1 + $0x4] sm:$0xf]
  %v15 = vld [vmem:[%s1 + $0x8] sm:$0xf]
  %v16 = vld [vmem:[%s1 + $0xc] sm:$0xf]
  %v17 = vld [vmem:[%s1 + $0x10] sm:$0xf]
  %v18 = vld [vmem:[%s1 + $0x14] sm:$0xf]
  %v19 = vld [vmem:[%s1 + $0x18] sm:$0xf]
  %v20 = vld [vmem:[%s1 + $0x1c] sm:$0xf]
  %v21 = vld [vmem:[%s1 + $0x20] sm:$0xf]
  %v22 = vld [vmem:[%s1 + $0x24] sm:$0xf]
  %v23 = vld [vmem:[%s1 + $0x28] sm:$0xf]
  %v24 = vld [vmem:[%s1 + $0x2c] sm:$0xf]
  %v25 = vld [vmem:[%s1 + $0x30] sm:$0xf]
  %v26 = vld [vmem:[%s1 + $0x34] sm:$0xf]
  %v27 = vld [vmem:[%s1 + $0x38] sm:$0xf]
  %v28 = vld [vmem:[%s1 + $0x3c] sm:$0xf]
  %v29 = vld [vmem:[%s1 + $0x40] sm:$0xf]
  %v30 = vld [vmem:[%s1 + $0x44] sm:$0xf]
  %v31 = vld [vmem:[%s1 + $0x48] sm:$0xf]
  %v32 = vld [vmem:[%s1 + $0x4c] sm:$0xf]
  %v33 = vld [vmem:[%s1 + $0x50] sm:$0xf]
  %v34 = vld [vmem:[%s1 + $0x54] sm:$0xf]
  %v35 = vld [vmem:[%s1 + $0x58] sm:$0xf]
  %v36 = vld [vmem:[%s1 + $0x5c] sm:$0xf]
  %v38 = vunpack.c.l.b16 %v12
  %v39 = vunpack.c.h.b16 %v12
  %v40 = vpack.c.b16 %v38, %v38
  %v41 = vpack.c.b16 %v39, %v39
  %v67 = vunpack.c.l.b16 %v13
  %v68 = vunpack.c.l.b16 %v14
  %v69 = vunpack.c.l.b16 %v15
  %v70 = vunpack.c.l.b16 %v16
  %v71 = vunpack.c.l.b16 %v17
  %v72 = vunpack.c.l.b16 %v18
  %v73 = vunpack.c.l.b16 %v19
  %v74 = vunpack.c.l.b16 %v20
  %v75 = vunpack.c.l.b16 %v21
  %v76 = vunpack.c.l.b16 %v22
  %v77 = vunpack.c.l.b16 %v23
  %v78 = vunpack.c.l.b16 %v24
  %v79 = vunpack.c.l.b16 %v25
  %v80 = vunpack.c.l.b16 %v26
  %v81 = vunpack.c.l.b16 %v27
  %v82 = vunpack.c.l.b16 %v28
  %v83 = vunpack.c.l.b16 %v29
  %v84 = vunpack.c.l.b16 %v30
  %v85 = vunpack.c.l.b16 %v31
  %v86 = vunpack.c.l.b16 %v32
  %v87 = vunpack.c.l.b16 %v33
  %v88 = vunpack.c.l.b16 %v34
  %v89 = vunpack.c.l.b16 %v35
  %v90 = vunpack.c.l.b16 %v36
  %v91 = vpack.c.b16 %v68, %v67
  %v92 = vpack.c.b16 %v70, %v69
  %v93 = vpack.c.b16 %v72, %v71
  %v94 = vpack.c.b16 %v74, %v73
  %v95 = vpack.c.b16 %v76, %v75
  %v96 = vpack.c.b16 %v78, %v77
  %v97 = vpack.c.b16 %v80, %v79
  %v98 = vpack.c.b16 %v82, %v81
  %v99 = vpack.c.b16 %v84, %v83
  %v100 = vpack.c.b16 %v86, %v85
  %v101 = vpack.c.b16 %v88, %v87
  %v102 = vpack.c.b16 %v90, %v89
  %vm115 = vcmask 523264
  %v117 = vsel %vm115, %v41, 0
  %119 = vmatpush.bf16.msra.mxu0 %v98
  %120 = vmatpush.bf16.msra.mxu0 %v97
  %121 = vmatpush.bf16.msra.mxu0 %v96
  %122 = vmatpush.bf16.msra.mxu0 %v95
  %123 = vmatpush.bf16.msra.mxu0 %v94
  %124 = vmatpush.bf16.msra.mxu0 %v93
  %125 = vmatpush.bf16.msra.mxu0 %v92
  %126 = vmatpush.bf16.msra.mxu0 %v91
  %127 = vmatmul.bf16.gmra.mxu0 %v40
  %v128 = vpop.f32.mrf.mxu0
  %v129 = vadd.f32 0.0, %v128
  %v130 = vpop.f32.mrf.mxu0
  %131 = vdwg.mxu0
  %132 = vmatpush.bf16.msra.mxu0 0
  %133 = vmatpush.bf16.msra.mxu0 0
  %134 = vmatpush.bf16.msra.mxu0 0
  %135 = vmatpush.bf16.msra.mxu0 0
  %136 = vmatpush.bf16.msra.mxu0 %v102
  %137 = vmatpush.bf16.msra.mxu0 %v101
  %138 = vmatpush.bf16.msra.mxu0 %v100
  %139 = vmatpush.bf16.msra.mxu0 %v99
  %140 = vmatmul.bf16.gmra.mxu0 %v117
  %v141 = vpop.f32.mrf.mxu0
  %v142 = vadd.f32 %v129, %v141
  %v143 = vpop.f32.mrf.mxu0
  %144 = vdwg.mxu0
  %v145 = vpack.c.bf16 %v142, %v142
  %146 = vst [vmem:[%s2] sm:$0xf] %v145
  // Predicated region
  $region10: #{bridgetower_vision_forward.12} parent=0 // pred_check
    _
  $region11: #{bridgetower_vision_forward.12} parent=0 // pred_check_branch
    %148 = sbr.rel (0) target = $region13
  $region12: #{bridgetower_vision_forward.12} parent=0 // pred_region
    _
  $region13: #{bridgetower_vision_forward.12} parent=0 // pred_fallthru
    _
  // Predicated region
  $region14: #{bridgetower_vision_forward.12} parent=0 // pred_check
    _
  $region15: #{bridgetower_vision_forward.12} parent=0 // pred_check_branch
    %150 = sbr.rel (0) target = $region17
  $region16: #{bridgetower_vision_forward.12} parent=0 // pred_region
    _
  $region17: #{bridgetower_vision_forward.12} parent=0 // pred_fallthru
    _

// kernel: bridgetower_vision_forward.13
$region0: #{bridgetower_vision_forward.13}
  #allocation0 [shape = 'u32[]', space=smem, size = 0x4, offset = 0x4, fixed_abs, tag = 'smem constant byte address 0x4 - core index']
  #allocation1 [shape = 'u32[72,128]{1,0:T(1,128)}', space=vmem, size = 0x9000, scoped, tag = 'internal scratch']
  %s0 = inlined_call_operand.vmem [shape: bf16[32,128], index: 0, kind: input, shape index: {}]
  %s1 = inlined_call_operand.vmem [shape: f32[1,128], index: 1, kind: input, shape index: {}]
  %s2 = inlined_call_operand.vmem [shape: f32[1,128], index: 2, kind: input, shape index: {}]
  %s3 = inlined_call_operand.vmem [shape: f32[32,128], index: 3, kind: output, shape index: {}]
  %s4 = sld [smem:[#allocation0]]
  $region22: #{bridgetower_vision_forward.13} parent=0
    _
  %s6 = ssub.s32 1, %s4
  %s7 = scalar_select 0, %s6, %s4
  // Predicated region
  $region2: #{bridgetower_vision_forward.13} parent=0 // pred_check
    _
  $region3: #{bridgetower_vision_forward.13} parent=0 // pred_check_branch
    %9 = sbr.rel (0) target = $region5
  $region4: #{bridgetower_vision_forward.13} parent=0 // pred_region
    _
  $region5: #{bridgetower_vision_forward.13} parent=0 // pred_fallthru
    _
  // Predicated region
  $region6: #{bridgetower_vision_forward.13} parent=0 // pred_check
    _
  $region7: #{bridgetower_vision_forward.13} parent=0 // pred_check_branch
    %11 = sbr.rel (0) target = $region9
  $region8: #{bridgetower_vision_forward.13} parent=0 // pred_region
    _
  $region9: #{bridgetower_vision_forward.13} parent=0 // pred_fallthru
    _
  // Predicated region
  $region10: #{bridgetower_vision_forward.13} parent=0 // pred_check
    _
  $region11: #{bridgetower_vision_forward.13} parent=0 // pred_check_branch
    %13 = sbr.rel (0) target = $region13
  $region12: #{bridgetower_vision_forward.13} parent=0 // pred_region
    _
  $region13: #{bridgetower_vision_forward.13} parent=0 // pred_fallthru
    _
  %v14 = vld [vmem:[%s0] sm:$0xf]
  %v15 = vld [vmem:[%s0 + $0x4] sm:$0xf]
  %v16 = vld [vmem:[%s0 + $0x8] sm:$0xf]
  %v17 = vld [vmem:[%s0 + $0xc] sm:$0xf]
  %v18 = vunpack.c.l.bf16 %v14
  %v19 = vunpack.c.l.bf16 %v15
  %v20 = vunpack.c.l.bf16 %v16
  %v21 = vunpack.c.l.bf16 %v17
  %22 = vadd.xlane.f32.xlu0 %v18
  %v23 = vpop.xlane.xlu0 %22
  %24 = vadd.xlane.f32.xlu0 %v19
  %v25 = vpop.xlane.xlu0 %24
  %26 = vadd.xlane.f32.xlu0 %v20
  %v27 = vpop.xlane.xlu0 %26
  %28 = vadd.xlane.f32.xlu0 %v21
  %v29 = vpop.xlane.xlu0 %28
  %v30 = vrcp.pop 128.0
  %v31 = vmul.f32 128.0, %v30
  %v32 = vsub.f32 1.0, %v31
  %v33 = vmul.f32 %v30, %v32
  %v34 = vadd.f32 %v30, %v33
  %vm35 = vweird.f32 %v30
  %v36 = vsel %vm35, %v30, %v34
  %v37 = vmul.f32 %v23, %v36
  %v38 = vmul.f32 %v25, %v36
  %v39 = vmul.f32 %v27, %v36
  %v40 = vmul.f32 %v29, %v36
  %v41 = vsub.f32 %v18, %v37
  %v42 = vsub.f32 %v19, %v38
  %v43 = vsub.f32 %v20, %v39
  %v44 = vsub.f32 %v21, %v40
  %v45 = vmul.f32 %v41, %v41
  %v46 = vmul.f32 %v42, %v42
  %v47 = vmul.f32 %v43, %v43
  %v48 = vmul.f32 %v44, %v44
  %49 = vadd.xlane.f32.xlu0 %v45
  %v50 = vpop.xlane.xlu0 %49
  %51 = vadd.xlane.f32.xlu0 %v46
  %v52 = vpop.xlane.xlu0 %51
  %53 = vadd.xlane.f32.xlu0 %v47
  %v54 = vpop.xlane.xlu0 %53
  %55 = vadd.xlane.f32.xlu0 %v48
  %v56 = vpop.xlane.xlu0 %55
  %v57 = vmul.f32 %v50, %v36
  %v58 = vmul.f32 %v52, %v36
  %v59 = vmul.f32 %v54, %v36
  %v60 = vmul.f32 %v56, %v36
  %v61 = vadd.f32 %v57, 1e-05
  %v62 = vadd.f32 %v58, 1e-05
  %v63 = vadd.f32 %v59, 1e-05
  %v64 = vadd.f32 %v60, 1e-05
  %v65 = vrsqrt.pop %v61
  %v66 = vmul.f32 %v65, %v61
  %v67 = vmul.f32 %v66, %v65
  %v68 = vmul.f32 0.5, %v67
  %v69 = vsub.f32 1.5, %v68
  %v70 = vmul.f32 %v65, %v69
  %vm71 = vweird.f32 %v61
  %vm72 = vweird.f32 %v65
  %vm73 = vmor %vm71, %vm72
  %v74 = vsel %vm73, %v65, %v70
  %v75 = vrsqrt.pop %v62
  %v76 = vmul.f32 %v75, %v62
  %v77 = vmul.f32 %v76, %v75
  %v78 = vmul.f32 0.5, %v77
  %v79 = vsub.f32 1.5, %v78
  %v80 = vmul.f32 %v75, %v79
  %vm81 = vweird.f32 %v62
  %vm82 = vweird.f32 %v75
  %vm83 = vmor %vm81, %vm82
  %v84 = vsel %vm83, %v75, %v80
  %v85 = vrsqrt.pop %v63
  %v86 = vmul.f32 %v85, %v63
  %v87 = vmul.f32 %v86, %v85
  %v88 = vmul.f32 0.5, %v87
  %v89 = vsub.f32 1.5, %v88
  %v90 = vmul.f32 %v85, %v89
  %vm91 = vweird.f32 %v63
  %vm92 = vweird.f32 %v85
  %vm93 = vmor %vm91, %vm92
  %v94 = vsel %vm93, %v85, %v90
  %v95 = vrsqrt.pop %v64
  %v96 = vmul.f32 %v95, %v64
  %v97 = vmul.f32 %v96, %v95
  %v98 = vmul.f32 0.5, %v97
  %v99 = vsub.f32 1.5, %v98
  %v100 = vmul.f32 %v95, %v99
  %vm101 = vweird.f32 %v64
  %vm102 = vweird.f32 %v95
  %vm103 = vmor %vm101, %vm102
  %v104 = vsel %vm103, %v95, %v100
  %v105 = vmul.f32 %v41, %v74
  %v106 = vmul.f32 %v42, %v84
  %v107 = vmul.f32 %v43, %v94
  %v108 = vmul.f32 %v44, %v104
  %v109 = vld [vmem:[%s1] sm:$0x1]
  %v111 = vperm.slane %v109, 0
  %v113 = vmul.f32 %v105, %v111
  %v114 = vmul.f32 %v106, %v111
  %v115 = vmul.f32 %v107, %v111
  %v116 = vmul.f32 %v108, %v111
  %v117 = vld [vmem:[%s2] sm:$0x1]
  %v119 = vperm.slane %v117, 0
  %v121 = vadd.f32 %v113, %v119
  %v122 = vadd.f32 %v114, %v119
  %v123 = vadd.f32 %v115, %v119
  %v124 = vadd.f32 %v116, %v119
  %125 = vst [vmem:[%s3] sm:$0xff] %v121
  %126 = vst [vmem:[%s3 + $0x8] sm:$0xff] %v122
  %127 = vst [vmem:[%s3 + $0x10] sm:$0xff] %v123
  %128 = vst [vmem:[%s3 + $0x18] sm:$0xff] %v124
  // Predicated region
  $region14: #{bridgetower_vision_forward.13} parent=0 // pred_check
    _
  $region15: #{bridgetower_vision_forward.13} parent=0 // pred_check_branch
    %130 = sbr.rel (0) target = $region17
  $region16: #{bridgetower_vision_forward.13} parent=0 // pred_region
    _
  $region17: #{bridgetower_vision_forward.13} parent=0 // pred_fallthru
    _
  // Predicated region
  $region18: #{bridgetower_vision_forward.13} parent=0 // pred_check
    _
  $region19: #{bridgetower_vision_forward.13} parent=0 // pred_check_branch
    %132 = sbr.rel (0) target = $region21
  $region20: #{bridgetower_vision_forward.13} parent=0 // pred_region
    _
  $region21: #{bridgetower_vision_forward.13} parent=0 // pred_fallthru
    _

// kernel: bridgetower_vision_forward.15
$region0: #{bridgetower_vision_forward.15}
  #allocation0 [shape = 'u32[]', space=smem, size = 0x4, offset = 0x4, fixed_abs, tag = 'smem constant byte address 0x4 - core index']
  #allocation1 [shape = 'u32[72,128]{1,0:T(1,128)}', space=vmem, size = 0x9000, scoped, tag = 'internal scratch']
  %s0 = inlined_call_operand.vmem [shape: bf16[2,16,384], index: 0, kind: input, shape index: {}]
  %s1 = inlined_call_operand.vmem [shape: bf16[2,16,128], index: 1, kind: output, shape index: {}]
  %s2 = sld [smem:[#allocation0]]
  $region37: #{bridgetower_vision_forward.15} parent=0
    _
  %s4 = ssub.s32 1, %s2
  %s5 = scalar_select 0, %s4, %s2
  loop: start=0, step=1, limit=4
  $region2: #{bridgetower_vision_forward.15} parent=0 // loop_pre_header
    _
  $region3: #{bridgetower_vision_forward.15} parent=0 // loop_header
    %s7 = sphi 0, %s11
    %p8 = scmp.ge.s32.totalorder %s7, 4
    %s14 = sphi 0, %s26
    %s15 = sphi 0, %s22
    %s16 = sphi 0, %s14
    %s17 = sphi 0, %s15
    %s18 = sphi 0, %s16
    %s19 = sphi 0, %s17
    %s31 = sphi 0, %s33
    %s34 = sphi 0, %s31
    %s35 = sphi 0, %s34
    %s51 = sphi 0, %s35
    %s59 = sphi 0, %s61
    %s62 = sphi 0, %s59
    %s63 = sphi 0, %s62
    %s79 = sphi 0, %s63
  $region4: #{bridgetower_vision_forward.15} parent=0 // loop_header_branch
    %10 = sbr.rel (%p8) target = $region8
  $region5: #{bridgetower_vision_forward.15} parent=0 // loop_body
    %s12 = ssub.s32 %s7, 1
    %s13 = ssub.s32 %s7, 2
    %s20 = sadd.s32 1, %s15
    %p21 = scmp.ge.s32.totalorder %s20, 1
    %s22 = scalar_select %p21, 0, %s20
    %s23 = sadd.s32 1, %s14
    %s24 = scalar_select %p21, %s23, %s14
    %p25 = scmp.ge.s32.totalorder %s24, 2
    %s26 = scalar_select %p25, 0, %s24
    %s27 = ssub.s32 %s14, %s26
    %s28 = ssub.s32 %s15, %s22
    %s29 = sor.u32 %s27, %s28
    %p30 = scmp.eq.s32.totalorder %s29, 0
    %s32 = sadd.s32 %s31, 1
    %s33 = scalar_select %p30, %s31, %s32
    %p36 = pneg %p30
    %p37 = scmp.eq.s32.totalorder %s7, 1
    %p38 = por %p36, %p37
    %p39 = scmp.ne.s32.totalorder %s31, %s34
    %p40 = scmp.eq.s32.totalorder %s7, 0
    %p41 = por %p39, %p40
    %p42 = scmp.ne.s32.totalorder %s31, %s34
    %p43 = scmp.eq.s32.totalorder %s12, 1
    %p44 = por %p42, %p43
    %p45 = scmp.ne.s32.totalorder %s34, %s35
    %p46 = scmp.eq.s32.totalorder %s12, 0
    %p47 = por %p45, %p46
    %p48 = scmp.ne.s32.totalorder %s34, %s35
    %p49 = scmp.eq.s32.totalorder %s13, 1
    %p50 = por %p48, %p49
    %p52 = scmp.ne.s32.totalorder %s35, %s51
    %p53 = scmp.eq.s32.totalorder %s13, 0
    %p54 = por %p52, %p53
    %s55 = ssub.s32 %s14, %s26
    %s56 = ssub.s32 %s15, %s22
    %s57 = sor.u32 %s55, %s56
    %p58 = scmp.eq.s32.totalorder %s57, 0
    %s60 = sadd.s32 %s59, 1
    %s61 = scalar_select %p58, %s59, %s60
    %p64 = pneg %p58
    %p65 = scmp.eq.s32.totalorder %s7, 1
    %p66 = por %p64, %p65
    %p67 = scmp.ne.s32.totalorder %s59, %s62
    %p68 = scmp.eq.s32.totalorder %s7, 0
    %p69 = por %p67, %p68
    %p70 = scmp.ne.s32.totalorder %s59, %s62
    %p71 = scmp.eq.s32.totalorder %s12, 1
    %p72 = por %p70, %p71
    %p73 = scmp.ne.s32.totalorder %s62, %s63
    %p74 = scmp.eq.s32.totalorder %s12, 0
    %p75 = por %p73, %p74
    %p76 = scmp.ne.s32.totalorder %s62, %s63
    %p77 = scmp.eq.s32.totalorder %s13, 1
    %p78 = por %p76, %p77
    %p80 = scmp.ne.s32.totalorder %s63, %s79
    %p81 = scmp.eq.s32.totalorder %s13, 0
    %p82 = por %p80, %p81
    %p83 = scmp.le.s32.totalorder 1, %s7
    %p84 = scmp.lt.s32.totalorder %s7, 3
    %p85 = pnand %p83, %p84
    %p86 = pneg %p85
    // Predicated region
    $region9: #{bridgetower_vision_forward.15} parent=5 // pred_check
      _
    $region10: #{bridgetower_vision_forward.15} parent=5 // pred_check_branch
      %88 = sbr.rel (%p85) target = $region12
    $region11: #{bridgetower_vision_forward.15} parent=5 // pred_region
      %s89 = ssub.s32 %s7, 1
    $region12: #{bridgetower_vision_forward.15} parent=5 // pred_fallthru
      _
    %p90 = scmp.lt.s32.totalorder %s7, 2
    // Predicated region
    $region13: #{bridgetower_vision_forward.15} parent=5 // pred_check
      %p91 = pneg %p90
    $region14: #{bridgetower_vision_forward.15} parent=5 // pred_check_branch
      %93 = sbr.rel (%p91) target = $region16
    $region15: #{bridgetower_vision_forward.15} parent=5 // pred_region
      // Predicated region
      $region17: #{bridgetower_vision_forward.15} parent=15 // pred_check
        %p94 = pneg %p41
      $region18: #{bridgetower_vision_forward.15} parent=15 // pred_check_branch
        %96 = sbr.rel (%p94) target = $region20
      $region19: #{bridgetower_vision_forward.15} parent=15 // pred_region
        %s97 = smul.u32 3, %s15
        %p98 = scmp.lt.s32.totalorder %s14, 1
        %s99 = scalar_select %p98, %s14, 1
        %p100 = scmp.lt.s32.totalorder %s97, 2
        %s101 = scalar_select %p100, %s97, 2
        %s102 = smul.addr %s99, 6
        %s103 = sadd.s32 %s101, %s102
        %s104 = smul.addr %s103, 4
        %s105 = scalar_lea.vmem %s0, %s104
        %s106 = smul.u32 3, %s15
      $region20: #{bridgetower_vision_forward.15} parent=15 // pred_fallthru
        _
    $region16: #{bridgetower_vision_forward.15} parent=5 // pred_fallthru
      _
    %p107 = scmp.le.s32.totalorder 1, %s7
    %p108 = scmp.lt.s32.totalorder %s7, 3
    %p109 = pnand %p107, %p108
    %p110 = pneg %p109
    // Predicated region
    $region21: #{bridgetower_vision_forward.15} parent=5 // pred_check
      _
    $region22: #{bridgetower_vision_forward.15} parent=5 // pred_check_branch
      %112 = sbr.rel (%p109) target = $region24
    $region23: #{bridgetower_vision_forward.15} parent=5 // pred_region
      %s113 = ssub.s32 %s7, 1
      %s114 = smul.u32 3, %s17
      %p115 = scmp.lt.s32.totalorder %s16, 1
      %s116 = scalar_select %p115, %s16, 1
      %p117 = scmp.lt.s32.totalorder %s114, 2
      %s118 = scalar_select %p117, %s114, 2
      %s119 = smul.addr %s116, 6
      %s120 = sadd.s32 %s118, %s119
      %s121 = smul.addr %s120, 4
      %s122 = scalar_lea.vmem %s0, %s121
      %p123 = pneg %p47
      %p124 = pneg %p44
      %p125 = pneg %p75
      %p126 = pneg %p72
      %p127 = scmp.lt.s32.totalorder %s16, 1
      %s128 = scalar_select %p127, %s16, 1
      %p129 = scmp.lt.s32.totalorder %s17, 0
      %s130 = scalar_select %p129, %s17, 0
      %s131 = smul.addr %s128, 2
      %s132 = sadd.s32 %s130, %s131
      %s133 = smul.addr %s132, 4
      %s134 = scalar_lea.vmem %s1, %s133
      %s135 = smul.u32 3, %s17
      %p136 = scmp.lt.s32.totalorder %s16, 1
      %s137 = scalar_select %p136, %s16, 1
      %p138 = scmp.lt.s32.totalorder %s135, 2
      %s139 = scalar_select %p138, %s135, 2
      %s140 = smul.addr %s137, 6
      %s141 = sadd.s32 %s139, %s140
      %s142 = smul.addr %s141, 4
      %s143 = scalar_lea.vmem %s0, %s142
      %s144 = smul.u32 3, %s17
      %p145 = scmp.lt.s32.totalorder %s16, 1
      %s146 = scalar_select %p145, %s16, 1
      %p147 = scmp.lt.s32.totalorder %s17, 0
      %s148 = scalar_select %p147, %s17, 0
      %s149 = smul.addr %s146, 2
      %s150 = sadd.s32 %s148, %s149
      %s151 = smul.addr %s150, 4
      %s152 = scalar_lea.vmem %s1, %s151
      %v154 = vld [vmem:[%s143] sm:$0xff]
      %v155 = vld [vmem:[%s143 + $0x8] sm:$0xf]
      %v156 = vld [vmem:[%s143 + $0xc] sm:$0xff]
      %v157 = vld [vmem:[%s143 + $0x14] sm:$0xf]
      %v158 = vlaneseq
      %v159 = vand.u32 %v158, 127
      %vm160 = vcmp.lt.s32.totalorder %v159, 5
      %v163 = vunpack.c.l.b16 %v154
      %v164 = vunpack.c.l.b16 %v156
      %v165 = vpack.c.b16 %v164, %v163
      %v166 = vunpack.c.h.b16 %v154
      %v167 = vunpack.c.h.b16 %v156
      %v168 = vpack.c.b16 %v167, %v166
      %vm169 = vcmask 523264
      %v171 = vsel %vm169, %v165, 0
      %v174 = vsel %vm169, %v168, 0
      %176 = vmatpush.bf16.xpose.msra.mxu0 0
      %177 = vmatpush.bf16.xpose.msra.mxu0 0
      %178 = vmatpush.bf16.xpose.msra.mxu0 0
      %179 = vmatpush.bf16.xpose.msra.mxu0 0
      %180 = vmatpush.bf16.xpose.msra.mxu0 0
      %181 = vmatpush.bf16.xpose.msra.mxu0 0
      %182 = vmatpush.bf16.xpose.msra.mxu0 0
      %183 = vmatpush.bf16.xpose.msra.mxu0 %v174
      %184 = vmatmul.bf16.gmra.mxu0 %v171
      %v185 = vpop.f32.mrf.mxu0
      %v186 = vadd.f32 0.0, %v185
      %v187 = vpop.f32.mrf.mxu0
      %v188 = vadd.f32 0.0, %v187
      %189 = vdwg.mxu0
      %v190 = vmul.f32 %v186, 0.125
      %v191 = vmul.f32 %v188, 0.125
      %v192 = vsel %vm160, 1, 0
      %vm193 = vcmp.eq.s32.totalorder %v192, 1
      %v194 = vsel %vm193, %v190, -1e+30
      %v195 = vsel %vm193, %v191, -1e+30
      %vm196 = vcmask 130048
      %v197 = vsel %vm196, %v194, -inf
      %198 = vmax.xlane.f32.xlu0 %v197
      %v199 = vpop.xlane.xlu0 %198
      %v200 = vsel %vm196, %v195, -inf
      %201 = vmax.xlane.f32.xlu0 %v200
      %v202 = vpop.xlane.xlu0 %201
      %v203 = vsub.f32 %v194, %v199
      %v204 = vsub.f32 %v195, %v202
      %v205 = vmul.f32 %v203, 1.442695
      %v206 = vpow.pop %v205
      %v207 = vmul.f32 %v204, 1.442695
      %v208 = vpow.pop %v207
      %v209 = vsel %vm196, %v206, 0.0
      %210 = vadd.xlane.f32.xlu0 %v209
      %v211 = vpop.xlane.xlu0 %210
      %v212 = vsel %vm196, %v208, 0.0
      %213 = vadd.xlane.f32.xlu0 %v212
      %v214 = vpop.xlane.xlu0 %213
      %v215 = vrcp.pop %v211
      %v216 = vmul.f32 %v211, %v215
      %v217 = vsub.f32 1.0, %v216
      %v218 = vmul.f32 %v215, %v217
      %v219 = vadd.f32 %v215, %v218
      %vm220 = vweird.f32 %v211
      %vm221 = vweird.f32 %v215
      %vm222 = vmor %vm220, %vm221
      %v223 = vsel %vm222, %v215, %v219
      %v224 = vand.u32 2147483647, %v211
      %vm225 = vcmp.eq.f32.partialorder %v224, 8.507059e+37
      %v226 = vand.u32 %v211, 2147483648
      %v227 = vor.u32 1.1754944e-38, %v226
      %v228 = vsel %vm225, %v227, %v223
      %v229 = vmul.f32 %v206, %v228
      %v230 = vrcp.pop %v214
      %v231 = vmul.f32 %v214, %v230
      %v232 = vsub.f32 1.0, %v231
      %v233 = vmul.f32 %v230, %v232
      %v234 = vadd.f32 %v230, %v233
      %vm235 = vweird.f32 %v214
      %vm236 = vweird.f32 %v230
      %vm237 = vmor %vm235, %vm236
      %v238 = vsel %vm237, %v230, %v234
      %v239 = vand.u32 2147483647, %v214
      %vm240 = vcmp.eq.f32.partialorder %v239, 8.507059e+37
      %v241 = vand.u32 %v214, 2147483648
      %v242 = vor.u32 1.1754944e-38, %v241
      %v243 = vsel %vm240, %v242, %v238
      %v244 = vmul.f32 %v208, %v243
      %v245 = vpack.c.bf16 %v244, %v229
      %v248 = vunpack.c.l.b16 %v155
      %v249 = vunpack.c.l.b16 %v157
      %v250 = vpack.c.b16 %v249, %v248
      %v253 = vsel %vm196, %v245, 0
      %255 = vmatpush.bf16.msra.mxu0 0
      %256 = vmatpush.bf16.msra.mxu0 0
      %257 = vmatpush.bf16.msra.mxu0 0
      %258 = vmatpush.bf16.msra.mxu0 0
      %259 = vmatpush.bf16.msra.mxu0 0
      %260 = vmatpush.bf16.msra.mxu0 0
      %261 = vmatpush.bf16.msra.mxu0 0
      %262 = vmatpush.bf16.msra.mxu0 %v250
      %263 = vmatmul.bf16.gmra.mxu0 %v253
      %v264 = vpop.f32.mrf.mxu0
      %v265 = vadd.f32 0.0, %v264
      %v266 = vpop.f32.mrf.mxu0
      %v267 = vadd.f32 0.0, %v266
      %268 = vdwg.mxu0
      %v269 = vpack.c.bf16 %v265, %v265
      %v270 = vpack.c.bf16 %v267, %v267
      %271 = vrot.lane.b32.xlu0 %v165, 64
      %v272 = vpop.permute.xlu0 %271
      %273 = vrot.lane.b32.xlu0 %v168, 64
      %v274 = vpop.permute.xlu0 %273
      %v276 = vsel %vm169, %v272, 0
      %v279 = vsel %vm169, %v274, 0
      %281 = vmatpush.bf16.xpose.msra.mxu0 0
      %282 = vmatpush.bf16.xpose.msra.mxu0 0
      %283 = vmatpush.bf16.xpose.msra.mxu0 0
      %284 = vmatpush.bf16.xpose.msra.mxu0 0
      %285 = vmatpush.bf16.xpose.msra.mxu0 0
      %286 = vmatpush.bf16.xpose.msra.mxu0 0
      %287 = vmatpush.bf16.xpose.msra.mxu0 0
      %288 = vmatpush.bf16.xpose.msra.mxu0 %v279
      %289 = vmatmul.bf16.gmra.mxu0 %v276
      %v290 = vpop.f32.mrf.mxu0
      %v291 = vadd.f32 0.0, %v290
      %v292 = vpop.f32.mrf.mxu0
      %v293 = vadd.f32 0.0, %v292
      %294 = vdwg.mxu0
      %v295 = vmul.f32 %v291, 0.125
      %v296 = vmul.f32 %v293, 0.125
      %v297 = vsel %vm193, %v295, -1e+30
      %v298 = vsel %vm193, %v296, -1e+30
      %v299 = vsel %vm196, %v297, -inf
      %300 = vmax.xlane.f32.xlu0 %v299
      %v301 = vpop.xlane.xlu0 %300
      %v302 = vsel %vm196, %v298, -inf
      %303 = vmax.xlane.f32.xlu0 %v302
      %v304 = vpop.xlane.xlu0 %303
      %v305 = vsub.f32 %v297, %v301
      %v306 = vsub.f32 %v298, %v304
      %v307 = vmul.f32 %v305, 1.442695
      %v308 = vpow.pop %v307
      %v309 = vmul.f32 %v306, 1.442695
      %v310 = vpow.pop %v309
      %v311 = vsel %vm196, %v308, 0.0
      %312 = vadd.xlane.f32.xlu0 %v311
      %v313 = vpop.xlane.xlu0 %312
      %v314 = vsel %vm196, %v310, 0.0
      %315 = vadd.xlane.f32.xlu0 %v314
      %v316 = vpop.xlane.xlu0 %315
      %v317 = vrcp.pop %v313
      %v318 = vmul.f32 %v313, %v317
      %v319 = vsub.f32 1.0, %v318
      %v320 = vmul.f32 %v317, %v319
      %v321 = vadd.f32 %v317, %v320
      %vm322 = vweird.f32 %v313
      %vm323 = vweird.f32 %v317
      %vm324 = vmor %vm322, %vm323
      %v325 = vsel %vm324, %v317, %v321
      %v326 = vand.u32 2147483647, %v313
      %vm327 = vcmp.eq.f32.partialorder %v326, 8.507059e+37
      %v328 = vand.u32 %v313, 2147483648
      %v329 = vor.u32 1.1754944e-38, %v328
      %v330 = vsel %vm327, %v329, %v325
      %v331 = vmul.f32 %v308, %v330
      %v332 = vrcp.pop %v316
      %v333 = vmul.f32 %v316, %v332
      %v334 = vsub.f32 1.0, %v333
      %v335 = vmul.f32 %v332, %v334
      %v336 = vadd.f32 %v332, %v335
      %vm337 = vweird.f32 %v316
      %vm338 = vweird.f32 %v332
      %vm339 = vmor %vm337, %vm338
      %v340 = vsel %vm339, %v332, %v336
      %v341 = vand.u32 2147483647, %v316
      %vm342 = vcmp.eq.f32.partialorder %v341, 8.507059e+37
      %v343 = vand.u32 %v316, 2147483648
      %v344 = vor.u32 1.1754944e-38, %v343
      %v345 = vsel %vm342, %v344, %v340
      %v346 = vmul.f32 %v310, %v345
      %v347 = vpack.c.bf16 %v346, %v331
      %348 = vrot.lane.b32.xlu0 %v250, 64
      %v349 = vpop.permute.xlu0 %348
      %v352 = vsel %vm196, %v347, 0
      %354 = vmatpush.bf16.msra.mxu0 0
      %355 = vmatpush.bf16.msra.mxu0 0
      %356 = vmatpush.bf16.msra.mxu0 0
      %357 = vmatpush.bf16.msra.mxu0 0
      %358 = vmatpush.bf16.msra.mxu0 0
      %359 = vmatpush.bf16.msra.mxu0 0
      %360 = vmatpush.bf16.msra.mxu0 0
      %361 = vmatpush.bf16.msra.mxu0 %v349
      %362 = vmatmul.bf16.gmra.mxu0 %v352
      %v363 = vpop.f32.mrf.mxu0
      %v364 = vadd.f32 0.0, %v363
      %v365 = vpop.f32.mrf.mxu0
      %v366 = vadd.f32 0.0, %v365
      %367 = vdwg.mxu0
      %v368 = vpack.c.bf16 %v364, %v364
      %v369 = vpack.c.bf16 %v366, %v366
      %v372 = vunpack.c.l.b16 %v269
      %v373 = vunpack.c.l.b16 %v270
      %v374 = vpack.c.b16 %v373, %v372
      %v377 = vunpack.c.l.b16 %v368
      %v378 = vunpack.c.l.b16 %v369
      %v379 = vpack.c.b16 %v378, %v377
      %380 = vrot.lane.b32.xlu0 %v379, 64
      %v381 = vpop.permute.xlu0 %380
      %v384 = vsel %vm169, %v374, %v381
      %v386 = vunpack.c.l.b16 %v384
      %v387 = vunpack.c.h.b16 %v384
      %v388 = vpack.c.b16 %v386, %v386
      %v389 = vpack.c.b16 %v387, %v387
      %392 = vst [vmem:[%s152] sm:$0xf] %v388
      %393 = vst [vmem:[%s152 + $0x4] sm:$0xf] %v389
      %p394 = scmp.lt.s32.totalorder %s16, 1
      %s395 = scalar_select %p394, %s16, 1
      %p396 = scmp.lt.s32.totalorder %s17, 0
      %s397 = scalar_select %p396, %s17, 0
      %s398 = smul.addr %s395, 2
      %s399 = sadd.s32 %s397, %s398
      %s400 = smul.addr %s399, 4
      %s401 = scalar_lea.vmem %s1, %s400
      // Predicated region
      $region25: #{bridgetower_vision_forward.15} parent=23 // pred_check
        %p402 = pneg %p72
      $region26: #{bridgetower_vision_forward.15} parent=23 // pred_check_branch
        %404 = sbr.rel (%p402) target = $region28
      $region27: #{bridgetower_vision_forward.15} parent=23 // pred_region
        _
      $region28: #{bridgetower_vision_forward.15} parent=23 // pred_fallthru
        _
    $region24: #{bridgetower_vision_forward.15} parent=5 // pred_fallthru
      _
    %p405 = scmp.le.s32.totalorder 2, %s7
    // Predicated region
    $region29: #{bridgetower_vision_forward.15} parent=5 // pred_check
      %p406 = pneg %p405
    $region30: #{bridgetower_vision_forward.15} parent=5 // pred_check_branch
      %408 = sbr.rel (%p406) target = $region32
    $region31: #{bridgetower_vision_forward.15} parent=5 // pred_region
      %s409 = ssub.s32 %s7, 2
      // Predicated region
      $region33: #{bridgetower_vision_forward.15} parent=31 // pred_check
        %p410 = pneg %p78
      $region34: #{bridgetower_vision_forward.15} parent=31 // pred_check_branch
        %412 = sbr.rel (%p410) target = $region36
      $region35: #{bridgetower_vision_forward.15} parent=31 // pred_region
        %p413 = scmp.lt.s32.totalorder %s18, 1
        %s414 = scalar_select %p413, %s18, 1
        %p415 = scmp.lt.s32.totalorder %s19, 0
        %s416 = scalar_select %p415, %s19, 0
        %s417 = smul.addr %s414, 2
        %s418 = sadd.s32 %s416, %s417
        %s419 = smul.addr %s418, 4
        %s420 = scalar_lea.vmem %s1, %s419
      $region36: #{bridgetower_vision_forward.15} parent=31 // pred_fallthru
        _
    $region32: #{bridgetower_vision_forward.15} parent=5 // pred_fallthru
      _
  $region6: #{bridgetower_vision_forward.15} parent=0 // loop_footer
    %s11 = sadd.s32 1, %s7
  $region7: #{bridgetower_vision_forward.15} parent=0 // loop_footer_branch
    %6 = sbr.rel target = $region3
  $region8: #{bridgetower_vision_forward.15} parent=0 // loop_exit
    _

// kernel: bridgetower_vision_forward.14
$region0: #{bridgetower_vision_forward.14}
  #allocation0 [shape = 'u32[]', space=smem, size = 0x4, offset = 0x4, fixed_abs, tag = 'smem constant byte address 0x4 - core index']
  #allocation1 [shape = 'u32[72,128]{1,0:T(1,128)}', space=vmem, size = 0x9000, scoped, tag = 'internal scratch']
  #allocation2 [shape = 'bf16[32,128]{1,0:T(8,128)(2,1)}', space=vmem, size = 0x2000, scoped, tag = 'scratch operand']
  %s0 = inlined_call_operand.vmem [shape: f32[32,128], index: 0, kind: input, shape index: {}]
  %s1 = inlined_call_operand.vmem [shape: bf16[128,384], index: 1, kind: input, shape index: {}]
  %s2 = inlined_call_operand.vmem [shape: f32[1,384], index: 2, kind: input, shape index: {}]
  %s3 = inlined_call_operand.vmem [shape: f32[1,128], index: 3, kind: input, shape index: {}]
  %s4 = inlined_call_operand.vmem [shape: f32[1,128], index: 4, kind: input, shape index: {}]
  %s5 = inlined_call_operand.vmem [shape: bf16[32,384], index: 5, kind: output, shape index: {}]
  %s6 = sld [smem:[#allocation0]]
  $region135: #{bridgetower_vision_forward.14} parent=0
    _
  %s8 = ssub.s32 1, %s6
  %s9 = scalar_select 0, %s8, %s6
  $region1: #{bridgetower_vision_forward.14} parent=0
    #allocation3 [shape = 'u8[65536]{0}', space=vmem, size = 0x10000, scoped, tag = 'input window, operand 1']
    #allocation4 [shape = 'u8[16384]{0}', space=vmem, size = 0x4000, scoped, tag = 'output window, operand 0']
    loop: start=0, step=1, limit=5
    $region2: #{bridgetower_vision_forward.14} parent=1 // loop_pre_header
      _
    $region3: #{bridgetower_vision_forward.14} parent=1 // loop_header
      %s11 = sphi 0, %s15
      %p12 = scmp.ge.s32.totalorder %s11, 5
      %s18 = sphi 0, %s30
      %s19 = sphi 0, %s26
      %s20 = sphi 0, %s18
      %s21 = sphi 0, %s19
      %s22 = sphi 0, %s20
      %s23 = sphi 0, %s21
      %s33 = sphi 0, %s35
      %s36 = sphi 0, %s33
      %s37 = sphi 0, %s36
      %s53 = sphi 0, %s37
      %s59 = sphi 0, %s61
      %s62 = sphi 0, %s59
      %s63 = sphi 0, %s62
      %s79 = sphi 0, %s63
      %s85 = sphi 0, %s87
      %s88 = sphi 0, %s85
      %s89 = sphi 0, %s88
      %s105 = sphi 0, %s89
      %s109 = sphi 0, %s109
      %s111 = sphi 0, %s109
      %s112 = sphi 0, %s111
      %s126 = sphi 0, %s112
      %s130 = sphi 0, %s130
      %s132 = sphi 0, %s130
      %s133 = sphi 0, %s132
      %s147 = sphi 0, %s133
      %s155 = sphi 0, %s157
      %s158 = sphi 0, %s155
      %s159 = sphi 0, %s158
      %s175 = sphi 0, %s159
    $region4: #{bridgetower_vision_forward.14} parent=1 // loop_header_branch
      %14 = sbr.rel (%p12) target = $region8
    $region5: #{bridgetower_vision_forward.14} parent=1 // loop_body
      %s16 = ssub.s32 %s11, 1
      %s17 = ssub.s32 %s11, 2
      %s24 = sadd.s32 1, %s19
      %p25 = scmp.ge.s32.totalorder %s24, 3
      %s26 = scalar_select %p25, 0, %s24
      %s27 = sadd.s32 1, %s18
      %s28 = scalar_select %p25, %s27, %s18
      %p29 = scmp.ge.s32.totalorder %s28, 1
      %s30 = scalar_select %p29, 0, %s28
      %s31 = ssub.s32 %s18, %s30
      %p32 = scmp.eq.s32.totalorder %s31, 0
      %s34 = sadd.s32 %s33, 1
      %s35 = scalar_select %p32, %s33, %s34
      %p38 = pneg %p32
      %p39 = scmp.eq.s32.totalorder %s11, 2
      %p40 = por %p38, %p39
      %p41 = scmp.ne.s32.totalorder %s33, %s36
      %p42 = scmp.eq.s32.totalorder %s11, 0
      %p43 = por %p41, %p42
      %p44 = scmp.ne.s32.totalorder %s33, %s36
      %p45 = scmp.eq.s32.totalorder %s16, 2
      %p46 = por %p44, %p45
      %p47 = scmp.ne.s32.totalorder %s36, %s37
      %p48 = scmp.eq.s32.totalorder %s16, 0
      %p49 = por %p47, %p48
      %p50 = scmp.ne.s32.totalorder %s36, %s37
      %p51 = scmp.eq.s32.totalorder %s17, 2
      %p52 = por %p50, %p51
      %p54 = scmp.ne.s32.totalorder %s37, %s53
      %p55 = scmp.eq.s32.totalorder %s17, 0
      %p56 = por %p54, %p55
      %s57 = ssub.s32 %s19, %s26
      %p58 = scmp.eq.s32.totalorder %s57, 0
      %s60 = sadd.s32 %s59, 1
      %s61 = scalar_select %p58, %s59, %s60
      %p64 = pneg %p58
      %p65 = scmp.eq.s32.totalorder %s11, 2
      %p66 = por %p64, %p65
      %p67 = scmp.ne.s32.totalorder %s59, %s62
      %p68 = scmp.eq.s32.totalorder %s11, 0
      %p69 = por %p67, %p68
      %p70 = scmp.ne.s32.totalorder %s59, %s62
      %p71 = scmp.eq.s32.totalorder %s16, 2
      %p72 = por %p70, %p71
      %p73 = scmp.ne.s32.totalorder %s62, %s63
      %p74 = scmp.eq.s32.totalorder %s16, 0
      %p75 = por %p73, %p74
      %p76 = scmp.ne.s32.totalorder %s62, %s63
      %p77 = scmp.eq.s32.totalorder %s17, 2
      %p78 = por %p76, %p77
      %p80 = scmp.ne.s32.totalorder %s63, %s79
      %p81 = scmp.eq.s32.totalorder %s17, 0
      %p82 = por %p80, %p81
      %s83 = ssub.s32 %s19, %s26
      %p84 = scmp.eq.s32.totalorder %s83, 0
      %s86 = sadd.s32 %s85, 1
      %s87 = scalar_select %p84, %s85, %s86
      %p90 = pneg %p84
      %p91 = scmp.eq.s32.totalorder %s11, 2
      %p92 = por %p90, %p91
      %p93 = scmp.ne.s32.totalorder %s85, %s88
      %p94 = scmp.eq.s32.totalorder %s11, 0
      %p95 = por %p93, %p94
      %p96 = scmp.ne.s32.totalorder %s85, %s88
      %p97 = scmp.eq.s32.totalorder %s16, 2
      %p98 = por %p96, %p97
      %p99 = scmp.ne.s32.totalorder %s88, %s89
      %p100 = scmp.eq.s32.totalorder %s16, 0
      %p101 = por %p99, %p100
      %p102 = scmp.ne.s32.totalorder %s88, %s89
      %p103 = scmp.eq.s32.totalorder %s17, 2
      %p104 = por %p102, %p103
      %p106 = scmp.ne.s32.totalorder %s89, %s105
      %p107 = scmp.eq.s32.totalorder %s17, 0
      %p108 = por %p106, %p107
      %s110 = sadd.s32 %s109, 1
      %p113 = scmp.eq.s32.totalorder %s11, 2
      %p114 = scmp.ne.s32.totalorder %s109, %s111
      %p115 = scmp.eq.s32.totalorder %s11, 0
      %p116 = por %p114, %p115
      %p117 = scmp.ne.s32.totalorder %s109, %s111
      %p118 = scmp.eq.s32.totalorder %s16, 2
      %p119 = por %p117, %p118
      %p120 = scmp.ne.s32.totalorder %s111, %s112
      %p121 = scmp.eq.s32.totalorder %s16, 0
      %p122 = por %p120, %p121
      %p123 = scmp.ne.s32.totalorder %s111, %s112
      %p124 = scmp.eq.s32.totalorder %s17, 2
      %p125 = por %p123, %p124
      %p127 = scmp.ne.s32.totalorder %s112, %s126
      %p128 = scmp.eq.s32.totalorder %s17, 0
      %p129 = por %p127, %p128
      %s131 = sadd.s32 %s130, 1
      %p134 = scmp.eq.s32.totalorder %s11, 2
      %p135 = scmp.ne.s32.totalorder %s130, %s132
      %p136 = scmp.eq.s32.totalorder %s11, 0
      %p137 = por %p135, %p136
      %p138 = scmp.ne.s32.totalorder %s130, %s132
      %p139 = scmp.eq.s32.totalorder %s16, 2
      %p140 = por %p138, %p139
      %p141 = scmp.ne.s32.totalorder %s132, %s133
      %p142 = scmp.eq.s32.totalorder %s16, 0
      %p143 = por %p141, %p142
      %p144 = scmp.ne.s32.totalorder %s132, %s133
      %p145 = scmp.eq.s32.totalorder %s17, 2
      %p146 = por %p144, %p145
      %p148 = scmp.ne.s32.totalorder %s133, %s147
      %p149 = scmp.eq.s32.totalorder %s17, 0
      %p150 = por %p148, %p149
      %s151 = ssub.s32 %s18, %s30
      %s152 = ssub.s32 %s19, %s26
      %s153 = sor.u32 %s151, %s152
      %p154 = scmp.eq.s32.totalorder %s153, 0
      %s156 = sadd.s32 %s155, 1
      %s157 = scalar_select %p154, %s155, %s156
      %p160 = pneg %p154
      %p161 = scmp.eq.s32.totalorder %s11, 2
      %p162 = por %p160, %p161
      %p163 = scmp.ne.s32.totalorder %s155, %s158
      %p164 = scmp.eq.s32.totalorder %s11, 0
      %p165 = por %p163, %p164
      %p166 = scmp.ne.s32.totalorder %s155, %s158
      %p167 = scmp.eq.s32.totalorder %s16, 2
      %p168 = por %p166, %p167
      %p169 = scmp.ne.s32.totalorder %s158, %s159
      %p170 = scmp.eq.s32.totalorder %s16, 0
      %p171 = por %p169, %p170
      %p172 = scmp.ne.s32.totalorder %s158, %s159
      %p173 = scmp.eq.s32.totalorder %s17, 2
      %p174 = por %p172, %p173
      %p176 = scmp.ne.s32.totalorder %s159, %s175
      %p177 = scmp.eq.s32.totalorder %s17, 0
      %p178 = por %p176, %p177
      %p179 = scmp.le.s32.totalorder 1, %s11
      %p180 = scmp.lt.s32.totalorder %s11, 4
      %p181 = pnand %p179, %p180
      %p182 = pneg %p181
      // Predicated region
      $region9: #{bridgetower_vision_forward.14} parent=5 // pred_check
        _
      $region10: #{bridgetower_vision_forward.14} parent=5 // pred_check_branch
        %184 = sbr.rel (%p181) target = $region12
      $region11: #{bridgetower_vision_forward.14} parent=5 // pred_region
        %s185 = ssub.s32 %s11, 1
        // Predicated region
        $region13: #{bridgetower_vision_forward.14} parent=11 // pred_check
          %p186 = pneg %p49
        $region14: #{bridgetower_vision_forward.14} parent=11 // pred_check_branch
          %188 = sbr.rel (%p186) target = $region16
        $region15: #{bridgetower_vision_forward.14} parent=11 // pred_region
          %s189 = smul.u32 4, %s20
          %p190 = scmp.lt.s32.totalorder %s189, 3
          %s191 = scalar_select %p190, %s189, 3
          %s192 = smul.addr %s191, 8
          %s193 = scalar_lea.vmem %s0, %s192
          %s194 = smul.u32 4, %s20
        $region16: #{bridgetower_vision_forward.14} parent=11 // pred_fallthru
          _
        // Predicated region
        $region17: #{bridgetower_vision_forward.14} parent=11 // pred_check
          %p195 = pneg %p122
        $region18: #{bridgetower_vision_forward.14} parent=11 // pred_check_branch
          %197 = sbr.rel (%p195) target = $region20
        $region19: #{bridgetower_vision_forward.14} parent=11 // pred_region
          _
        $region20: #{bridgetower_vision_forward.14} parent=11 // pred_fallthru
          _
        // Predicated region
        $region21: #{bridgetower_vision_forward.14} parent=11 // pred_check
          %p198 = pneg %p143
        $region22: #{bridgetower_vision_forward.14} parent=11 // pred_check_branch
          %200 = sbr.rel (%p198) target = $region24
        $region23: #{bridgetower_vision_forward.14} parent=11 // pred_region
          _
        $region24: #{bridgetower_vision_forward.14} parent=11 // pred_fallthru
          _
      $region12: #{bridgetower_vision_forward.14} parent=5 // pred_fallthru
        _
      %p201 = scmp.lt.s32.totalorder %s11, 3
      // Predicated region
      $region25: #{bridgetower_vision_forward.14} parent=5 // pred_check
        %p202 = pneg %p201
      $region26: #{bridgetower_vision_forward.14} parent=5 // pred_check_branch
        %204 = sbr.rel (%p202) target = $region28
      $region27: #{bridgetower_vision_forward.14} parent=5 // pred_region
        // Predicated region
        $region29: #{bridgetower_vision_forward.14} parent=27 // pred_check
          %p205 = pneg %p69
        $region30: #{bridgetower_vision_forward.14} parent=27 // pred_check_branch
          %207 = sbr.rel (%p205) target = $region32
        $region31: #{bridgetower_vision_forward.14} parent=27 // pred_region
          %s208 = sand.u32 %s59, 1
          %s209 = sand.u32 %s59, 1
          %s210 = smul.addr %s209, 64
          %s211 = scalar_lea.vmem [#allocation3], %s210
          %s212 = smul.addr %s19, 4
          %s213 = scalar_lea.vmem %s1, %s212
          // Predicated region
          $region33: #{bridgetower_vision_forward.14} parent=31 // pred_check
            _
          $region34: #{bridgetower_vision_forward.14} parent=31 // pred_check_branch
            %215 = sbr.rel (0) target = $region36
          $region35: #{bridgetower_vision_forward.14} parent=31 // pred_region
            // Predicated region
            $region37: #{bridgetower_vision_forward.14} parent=35 // pred_check
              _
            $region38: #{bridgetower_vision_forward.14} parent=35 // pred_check_branch
              %217 = sbr.rel target = $region40
            $region39: #{bridgetower_vision_forward.14} parent=35 // pred_region
              // Predicated region
              $region52: #{bridgetower_vision_forward.14} parent=39 // pred_check
                _
              $region53: #{bridgetower_vision_forward.14} parent=39 // pred_check_branch
                %263 = sbr.rel (0) target = $region55
              $region54: #{bridgetower_vision_forward.14} parent=39 // pred_region
                loop: start=0, step=1, limit=1
                $region56: #{bridgetower_vision_forward.14} parent=54 // loop_pre_header
                  _
                $region57: #{bridgetower_vision_forward.14} parent=54 // loop_header
                  %s265 = sphi 0, %s269
                  %p266 = scmp.ge.s32.totalorder %s265, 1
                  %s270 = sphi %s213, %s213
                  %s271 = sphi %s211, %s211
                $region58: #{bridgetower_vision_forward.14} parent=54 // loop_header_branch
                  %268 = sbr.rel (%p266) target = $region62
                $region59: #{bridgetower_vision_forward.14} parent=54 // loop_body
                  _
                $region60: #{bridgetower_vision_forward.14} parent=54 // loop_footer
                  %s269 = sadd.s32 1, %s265
                $region61: #{bridgetower_vision_forward.14} parent=54 // loop_footer_branch
                  %264 = sbr.rel target = $region57
                $region62: #{bridgetower_vision_forward.14} parent=54 // loop_exit
                  _
                %s273 = ssub.s32 16, 1
                loop: start=0, step=1, limit=1
                $region63: #{bridgetower_vision_forward.14} parent=54 // loop_pre_header
                  _
                $region64: #{bridgetower_vision_forward.14} parent=54 // loop_header
                  %s275 = sphi 0, %s279
                  %p276 = scmp.ge.s32.totalorder %s275, 1
                  %s280 = sphi %s213, %s213
                  %s281 = sphi %s211, %s211
                $region65: #{bridgetower_vision_forward.14} parent=54 // loop_header_branch
                  %278 = sbr.rel (%p276) target = $region69
                $region66: #{bridgetower_vision_forward.14} parent=54 // loop_body
                  %v282 = vld [vmem:[%s280] sm:%s273]
                  %283 = vst [vmem:[%s281] sm:%s273] %v282
                  %v284 = vld [vmem:[%s280 + $0xc] sm:%s273]
                  %285 = vst [vmem:[%s281 + $0x4] sm:%s273] %v284
                  %v286 = vld [vmem:[%s280 + $0x18] sm:%s273]
                  %287 = vst [vmem:[%s281 + $0x8] sm:%s273] %v286
                  %v288 = vld [vmem:[%s280 + $0x24] sm:%s273]
                  %289 = vst [vmem:[%s281 + $0xc] sm:%s273] %v288
                  %v290 = vld [vmem:[%s280 + $0x30] sm:%s273]
                  %291 = vst [vmem:[%s281 + $0x10] sm:%s273] %v290
                  %v292 = vld [vmem:[%s280 + $0x3c] sm:%s273]
                  %293 = vst [vmem:[%s281 + $0x14] sm:%s273] %v292
                  %v294 = vld [vmem:[%s280 + $0x48] sm:%s273]
                  %295 = vst [vmem:[%s281 + $0x18] sm:%s273] %v294
                  %v296 = vld [vmem:[%s280 + $0x54] sm:%s273]
                  %297 = vst [vmem:[%s281 + $0x1c] sm:%s273] %v296
                  %v298 = vld [vmem:[%s280 + $0x60] sm:%s273]
                  %299 = vst [vmem:[%s281 + $0x20] sm:%s273] %v298
                  %v300 = vld [vmem:[%s280 + $0x6c] sm:%s273]
                  %301 = vst [vmem:[%s281 + $0x24] sm:%s273] %v300
                  %v302 = vld [vmem:[%s280 + $0x78] sm:%s273]
                  %303 = vst [vmem:[%s281 + $0x28] sm:%s273] %v302
                  %v304 = vld [vmem:[%s280 + $0x84] sm:%s273]
                  %305 = vst [vmem:[%s281 + $0x2c] sm:%s273] %v304
                  %v306 = vld [vmem:[%s280 + $0x90] sm:%s273]
                  %307 = vst [vmem:[%s281 + $0x30] sm:%s273] %v306
                  %v308 = vld [vmem:[%s280 + $0x9c] sm:%s273]
                  %309 = vst [vmem:[%s281 + $0x34] sm:%s273] %v308
                  %v310 = vld [vmem:[%s280 + $0xa8] sm:%s273]
                  %311 = vst [vmem:[%s281 + $0x38] sm:%s273] %v310
                  %v312 = vld [vmem:[%s280 + $0xb4] sm:%s273]
                  %313 = vst [vmem:[%s281 + $0x3c] sm:%s273] %v312
                $region67: #{bridgetower_vision_forward.14} parent=54 // loop_footer
                  %s279 = sadd.s32 1, %s275
                $region68: #{bridgetower_vision_forward.14} parent=54 // loop_footer_branch
                  %274 = sbr.rel target = $region64
                $region69: #{bridgetower_vision_forward.14} parent=54 // loop_exit
                  _
              $region55: #{bridgetower_vision_forward.14} parent=39 // pred_fallthru
                _
            $region40: #{bridgetower_vision_forward.14} parent=35 // pred_fallthru
              _
            // Predicated region
            $region41: #{bridgetower_vision_forward.14} parent=35 // pred_check
              _
            $region42: #{bridgetower_vision_forward.14} parent=35 // pred_check_branch
              %219 = sbr.rel (0) target = $region44
            $region43: #{bridgetower_vision_forward.14} parent=35 // pred_region
              %s221 = ssub.s32 16, 1
              loop: start=0, step=1, limit=1
              $region45: #{bridgetower_vision_forward.14} parent=43 // loop_pre_header
                _
              $region46: #{bridgetower_vision_forward.14} parent=43 // loop_header
                %s223 = sphi 0, %s227
                %p224 = scmp.ge.s32.totalorder %s223, 1
                %s228 = sphi %s213, %s213
                %s229 = sphi %s211, %s211
              $region47: #{bridgetower_vision_forward.14} parent=43 // loop_header_branch
                %226 = sbr.rel (%p224) target = $region51
              $region48: #{bridgetower_vision_forward.14} parent=43 // loop_body
                %v230 = vld [vmem:[%s228] sm:%s221]
                %231 = vst [vmem:[%s229] sm:%s221] %v230
                %v232 = vld [vmem:[%s228 + $0xc] sm:%s221]
                %233 = vst [vmem:[%s229 + $0x4] sm:%s221] %v232
                %v234 = vld [vmem:[%s228 + $0x18] sm:%s221]
                %235 = vst [vmem:[%s229 + $0x8] sm:%s221] %v234
                %v236 = vld [vmem:[%s228 + $0x24] sm:%s221]
                %237 = vst [vmem:[%s229 + $0xc] sm:%s221] %v236
                %v238 = vld [vmem:[%s228 + $0x30] sm:%s221]
                %239 = vst [vmem:[%s229 + $0x10] sm:%s221] %v238
                %v240 = vld [vmem:[%s228 + $0x3c] sm:%s221]
                %241 = vst [vmem:[%s229 + $0x14] sm:%s221] %v240
                %v242 = vld [vmem:[%s228 + $0x48] sm:%s221]
                %243 = vst [vmem:[%s229 + $0x18] sm:%s221] %v242
                %v244 = vld [vmem:[%s228 + $0x54] sm:%s221]
                %245 = vst [vmem:[%s229 + $0x1c] sm:%s221] %v244
                %v246 = vld [vmem:[%s228 + $0x60] sm:%s221]
                %247 = vst [vmem:[%s229 + $0x20] sm:%s221] %v246
                %v248 = vld [vmem:[%s228 + $0x6c] sm:%s221]
                %249 = vst [vmem:[%s229 + $0x24] sm:%s221] %v248
                %v250 = vld [vmem:[%s228 + $0x78] sm:%s221]
                %251 = vst [vmem:[%s229 + $0x28] sm:%s221] %v250
                %v252 = vld [vmem:[%s228 + $0x84] sm:%s221]
                %253 = vst [vmem:[%s229 + $0x2c] sm:%s221] %v252
                %v254 = vld [vmem:[%s228 + $0x90] sm:%s221]
                %255 = vst [vmem:[%s229 + $0x30] sm:%s221] %v254
                %v256 = vld [vmem:[%s228 + $0x9c] sm:%s221]
                %257 = vst [vmem:[%s229 + $0x34] sm:%s221] %v256
                %v258 = vld [vmem:[%s228 + $0xa8] sm:%s221]
                %259 = vst [vmem:[%s229 + $0x38] sm:%s221] %v258
                %v260 = vld [vmem:[%s228 + $0xb4] sm:%s221]
                %261 = vst [vmem:[%s229 + $0x3c] sm:%s221] %v260
              $region49: #{bridgetower_vision_forward.14} parent=43 // loop_footer
                %s227 = sadd.s32 1, %s223
              $region50: #{bridgetower_vision_forward.14} parent=43 // loop_footer_branch
                %222 = sbr.rel target = $region46
              $region51: #{bridgetower_vision_forward.14} parent=43 // loop_exit
                _
            $region44: #{bridgetower_vision_forward.14} parent=35 // pred_fallthru
              _
          $region36: #{bridgetower_vision_forward.14} parent=31 // pred_fallthru
            _
          %314 = vnop
        $region32: #{bridgetower_vision_forward.14} parent=27 // pred_fallthru
          _
        // Predicated region
        $region70: #{bridgetower_vision_forward.14} parent=27 // pred_check
          %p315 = pneg %p95
        $region71: #{bridgetower_vision_forward.14} parent=27 // pred_check_branch
          %317 = sbr.rel (%p315) target = $region73
        $region72: #{bridgetower_vision_forward.14} parent=27 // pred_region
          %p318 = scmp.lt.s32.totalorder %s19, 2
          %s319 = scalar_select %p318, %s19, 2
          %s320 = scalar_lea.vmem %s2, %s319
        $region73: #{bridgetower_vision_forward.14} parent=27 // pred_fallthru
          _
      $region28: #{bridgetower_vision_forward.14} parent=5 // pred_fallthru
        _
      %p321 = scmp.le.s32.totalorder 1, %s11
      %p322 = scmp.lt.s32.totalorder %s11, 4
      %p323 = pnand %p321, %p322
      %p324 = pneg %p323
      // Predicated region
      $region74: #{bridgetower_vision_forward.14} parent=5 // pred_check
        _
      $region75: #{bridgetower_vision_forward.14} parent=5 // pred_check_branch
        %326 = sbr.rel (%p323) target = $region77
      $region76: #{bridgetower_vision_forward.14} parent=5 // pred_region
        %s327 = ssub.s32 %s11, 1
        %s328 = sand.u32 %s62, 1
        %s329 = sand.u32 %s62, 1
        %s330 = smul.addr %s329, 64
        %s331 = scalar_lea.vmem [#allocation3], %s330
        // Predicated region
        $region78: #{bridgetower_vision_forward.14} parent=76 // pred_check
          %p332 = pneg %p75
        $region79: #{bridgetower_vision_forward.14} parent=76 // pred_check_branch
          %334 = sbr.rel (%p332) target = $region81
        $region80: #{bridgetower_vision_forward.14} parent=76 // pred_region
          _
        $region81: #{bridgetower_vision_forward.14} parent=76 // pred_fallthru
          _
        %s335 = smul.u32 4, %s20
        %p336 = scmp.lt.s32.totalorder %s335, 3
        %s337 = scalar_select %p336, %s335, 3
        %s338 = smul.addr %s337, 8
        %s339 = scalar_lea.vmem %s0, %s338
        %p340 = pneg %p49
        %p341 = pneg %p46
        %s342 = sand.u32 %s62, 1
        %s343 = sand.u32 %s62, 1
        %s344 = smul.addr %s343, 64
        %s345 = scalar_lea.vmem [#allocation3], %s344
        %p346 = pneg %p75
        %p347 = pneg %p72
        %p348 = scmp.lt.s32.totalorder %s21, 2
        %s349 = scalar_select %p348, %s21, 2
        %s350 = scalar_lea.vmem %s2, %s349
        %p351 = pneg %p101
        %p352 = pneg %p98
        %p353 = pneg %p122
        %p354 = pneg %p119
        %p355 = pneg %p143
        %p356 = pneg %p140
        %p357 = pneg %p171
        %p358 = pneg %p168
        %s359 = sand.u32 %s158, 1
        %s360 = sand.u32 %s158, 1
        %s361 = smul.addr %s360, 16
        %s362 = scalar_lea.vmem [#allocation4], %s361
        %s363 = smul.u32 4, %s20
        %p364 = scmp.lt.s32.totalorder %s363, 3
        %s365 = scalar_select %p364, %s363, 3
        %s366 = smul.addr %s365, 8
        %s367 = scalar_lea.vmem %s0, %s366
        %s368 = smul.u32 4, %s20
        %p369 = scmp.lt.s32.totalorder %s21, 2
        %s370 = scalar_select %p369, %s21, 2
        %s371 = scalar_lea.vmem %s2, %s370
        %s372 = smul.u32 4, %s20
        %p373 = scmp.eq.s32.totalorder %s21, 0
        // Predicated region
        $region82: #{bridgetower_vision_forward.14} parent=76 // pred_check
          %p374 = pneg %p373
        $region83: #{bridgetower_vision_forward.14} parent=76 // pred_check_branch
          %376 = sbr.rel (%p374) target = $region85
        $region84: #{bridgetower_vision_forward.14} parent=76 // pred_region
          %v377 = vld [vmem:[%s367] sm:$0xff]
          %v378 = vld [vmem:[%s367 + $0x8] sm:$0xff]
          %v379 = vld [vmem:[%s367 + $0x10] sm:$0xff]
          %v380 = vld [vmem:[%s367 + $0x18] sm:$0xff]
          %381 = vadd.xlane.f32.xlu0 %v377
          %v382 = vpop.xlane.xlu0 %381
          %383 = vadd.xlane.f32.xlu0 %v378
          %v384 = vpop.xlane.xlu0 %383
          %385 = vadd.xlane.f32.xlu0 %v379
          %v386 = vpop.xlane.xlu0 %385
          %387 = vadd.xlane.f32.xlu0 %v380
          %v388 = vpop.xlane.xlu0 %387
          %v389 = vrcp.pop 128.0
          %v390 = vmul.f32 128.0, %v389
          %v391 = vsub.f32 1.0, %v390
          %v392 = vmul.f32 %v389, %v391
          %v393 = vadd.f32 %v389, %v392
          %vm394 = vweird.f32 %v389
          %v395 = vsel %vm394, %v389, %v393
          %v396 = vmul.f32 %v382, %v395
          %v397 = vmul.f32 %v384, %v395
          %v398 = vmul.f32 %v386, %v395
          %v399 = vmul.f32 %v388, %v395
          %v400 = vsub.f32 %v377, %v396
          %v401 = vsub.f32 %v378, %v397
          %v402 = vsub.f32 %v379, %v398
          %v403 = vsub.f32 %v380, %v399
          %v404 = vmul.f32 %v400, %v400
          %v405 = vmul.f32 %v401, %v401
          %v406 = vmul.f32 %v402, %v402
          %v407 = vmul.f32 %v403, %v403
          %408 = vadd.xlane.f32.xlu0 %v404
          %v409 = vpop.xlane.xlu0 %408
          %410 = vadd.xlane.f32.xlu0 %v405
          %v411 = vpop.xlane.xlu0 %410
          %412 = vadd.xlane.f32.xlu0 %v406
          %v413 = vpop.xlane.xlu0 %412
          %414 = vadd.xlane.f32.xlu0 %v407
          %v415 = vpop.xlane.xlu0 %414
          %v416 = vmul.f32 %v409, %v395
          %v417 = vmul.f32 %v411, %v395
          %v418 = vmul.f32 %v413, %v395
          %v419 = vmul.f32 %v415, %v395
          %v420 = vadd.f32 %v416, 1e-05
          %v421 = vadd.f32 %v417, 1e-05
          %v422 = vadd.f32 %v418, 1e-05
          %v423 = vadd.f32 %v419, 1e-05
          %v424 = vrsqrt.pop %v420
          %v425 = vmul.f32 %v424, %v420
          %v426 = vmul.f32 %v425, %v424
          %v427 = vmul.f32 0.5, %v426
          %v428 = vsub.f32 1.5, %v427
          %v429 = vmul.f32 %v424, %v428
          %vm430 = vweird.f32 %v420
          %vm431 = vweird.f32 %v424
          %vm432 = vmor %vm430, %vm431
          %v433 = vsel %vm432, %v424, %v429
          %v434 = vrsqrt.pop %v421
          %v435 = vmul.f32 %v434, %v421
          %v436 = vmul.f32 %v435, %v434
          %v437 = vmul.f32 0.5, %v436
          %v438 = vsub.f32 1.5, %v437
          %v439 = vmul.f32 %v434, %v438
          %vm440 = vweird.f32 %v421
          %vm441 = vweird.f32 %v434
          %vm442 = vmor %vm440, %vm441
          %v443 = vsel %vm442, %v434, %v439
          %v444 = vrsqrt.pop %v422
          %v445 = vmul.f32 %v444, %v422
          %v446 = vmul.f32 %v445, %v444
          %v447 = vmul.f32 0.5, %v446
          %v448 = vsub.f32 1.5, %v447
          %v449 = vmul.f32 %v444, %v448
          %vm450 = vweird.f32 %v422
          %vm451 = vweird.f32 %v444
          %vm452 = vmor %vm450, %vm451
          %v453 = vsel %vm452, %v444, %v449
          %v454 = vrsqrt.pop %v423
          %v455 = vmul.f32 %v454, %v423
          %v456 = vmul.f32 %v455, %v454
          %v457 = vmul.f32 0.5, %v456
          %v458 = vsub.f32 1.5, %v457
          %v459 = vmul.f32 %v454, %v458
          %vm460 = vweird.f32 %v423
          %vm461 = vweird.f32 %v454
          %vm462 = vmor %vm460, %vm461
          %v463 = vsel %vm462, %v454, %v459
          %v464 = vmul.f32 %v400, %v433
          %v465 = vmul.f32 %v401, %v443
          %v466 = vmul.f32 %v402, %v453
          %v467 = vmul.f32 %v403, %v463
          %v468 = vld [vmem:[%s3] sm:$0x1]
          %v470 = vperm.slane %v468, 0
          %v472 = vmul.f32 %v464, %v470
          %v473 = vmul.f32 %v465, %v470
          %v474 = vmul.f32 %v466, %v470
          %v475 = vmul.f32 %v467, %v470
          %v476 = vld [vmem:[%s4] sm:$0x1]
          %v478 = vperm.slane %v476, 0
          %v480 = vadd.f32 %v472, %v478
          %v481 = vadd.f32 %v473, %v478
          %v482 = vadd.f32 %v474, %v478
          %v483 = vadd.f32 %v475, %v478
          %v484 = vpack.c.bf16 %v480, %v480
          %v485 = vpack.c.bf16 %v481, %v481
          %v486 = vpack.c.bf16 %v482, %v482
          %v487 = vpack.c.bf16 %v483, %v483
          %488 = vst [vmem:[#allocation2] sm:$0xf] %v484
          %489 = vst [vmem:[#allocation2 + $0x4] sm:$0xf] %v485
          %490 = vst [vmem:[#allocation2 + $0x8] sm:$0xf] %v486
          %491 = vst [vmem:[#allocation2 + $0xc] sm:$0xf] %v487
        $region85: #{bridgetower_vision_forward.14} parent=76 // pred_fallthru
          _
        %v492 = vld [vmem:[#allocation2] sm:$0xf]
        %v493 = vld [vmem:[#allocation2 + $0x4] sm:$0xf]
        %v494 = vld [vmem:[#allocation2 + $0x8] sm:$0xf]
        %v495 = vld [vmem:[#allocation2 + $0xc] sm:$0xf]
        %v496 = vld [vmem:[%s331] sm:$0xf]
        %v497 = vld [vmem:[%s331 + $0x4] sm:$0xf]
        %v498 = vld [vmem:[%s331 + $0x8] sm:$0xf]
        %v499 = vld [vmem:[%s331 + $0xc] sm:$0xf]
        %v500 = vld [vmem:[%s331 + $0x10] sm:$0xf]
        %v501 = vld [vmem:[%s331 + $0x14] sm:$0xf]
        %v502 = vld [vmem:[%s331 + $0x18] sm:$0xf]
        %v503 = vld [vmem:[%s331 + $0x1c] sm:$0xf]
        %v504 = vld [vmem:[%s331 + $0x20] sm:$0xf]
        %v505 = vld [vmem:[%s331 + $0x24] sm:$0xf]
        %v506 = vld [vmem:[%s331 + $0x28] sm:$0xf]
        %v507 = vld [vmem:[%s331 + $0x2c] sm:$0xf]
        %v508 = vld [vmem:[%s331 + $0x30] sm:$0xf]
        %v509 = vld [vmem:[%s331 + $0x34] sm:$0xf]
        %v510 = vld [vmem:[%s331 + $0x38] sm:$0xf]
        %v511 = vld [vmem:[%s331 + $0x3c] sm:$0xf]
        %v512 = vld [vmem:[%s371] sm:$0x1]
        %v514 = vperm.slane %v512, 0
        %v520 = vunpack.c.l.b16 %v492
        %v521 = vunpack.c.l.b16 %v493
        %v522 = vunpack.c.l.b16 %v494
        %v523 = vunpack.c.l.b16 %v495
        %v524 = vpack.c.b16 %v521, %v520
        %v525 = vpack.c.b16 %v523, %v522
        %v544 = vunpack.c.l.b16 %v496
        %v545 = vunpack.c.l.b16 %v497
        %v546 = vunpack.c.l.b16 %v498
        %v547 = vunpack.c.l.b16 %v499
        %v548 = vunpack.c.l.b16 %v500
        %v549 = vunpack.c.l.b16 %v501
        %v550 = vunpack.c.l.b16 %v502
        %v551 = vunpack.c.l.b16 %v503
        %v552 = vunpack.c.l.b16 %v504
        %v553 = vunpack.c.l.b16 %v505
        %v554 = vunpack.c.l.b16 %v506
        %v555 = vunpack.c.l.b16 %v507
        %v556 = vunpack.c.l.b16 %v508
        %v557 = vunpack.c.l.b16 %v509
        %v558 = vunpack.c.l.b16 %v510
        %v559 = vunpack.c.l.b16 %v511
        %v560 = vpack.c.b16 %v545, %v544
        %v561 = vpack.c.b16 %v547, %v546
        %v562 = vpack.c.b16 %v549, %v548
        %v563 = vpack.c.b16 %v551, %v550
        %v564 = vpack.c.b16 %v553, %v552
        %v565 = vpack.c.b16 %v555, %v554
        %v566 = vpack.c.b16 %v557, %v556
        %v567 = vpack.c.b16 %v559, %v558
        %576 = vmatpush.bf16.msra.mxu0 %v567
        %577 = vmatpush.bf16.msra.mxu0 %v566
        %578 = vmatpush.bf16.msra.mxu0 %v565
        %579 = vmatpush.bf16.msra.mxu0 %v564
        %580 = vmatpush.bf16.msra.mxu0 %v563
        %581 = vmatpush.bf16.msra.mxu0 %v562
        %582 = vmatpush.bf16.msra.mxu0 %v561
        %583 = vmatpush.bf16.msra.mxu0 %v560
        %584 = vmatmul.bf16.gmra.mxu0 %v524
        %v585 = vpop.f32.mrf.mxu0
        %v586 = vadd.f32 %v514, %v585
        %v587 = vpop.f32.mrf.mxu0
        %v588 = vadd.f32 %v514, %v587
        %589 = vmatmul.bf16.gmra.mxu0 %v525
        %v590 = vpop.f32.mrf.mxu0
        %v591 = vadd.f32 %v514, %v590
        %v592 = vpop.f32.mrf.mxu0
        %v593 = vadd.f32 %v514, %v592
        %594 = vdwg.mxu0
        %v595 = vpack.c.bf16 %v586, %v586
        %v596 = vpack.c.bf16 %v588, %v588
        %v597 = vpack.c.bf16 %v591, %v591
        %v598 = vpack.c.bf16 %v593, %v593
        %599 = vst [vmem:[%s362] sm:$0xf] %v595
        %600 = vst [vmem:[%s362 + $0x4] sm:$0xf] %v596
        %601 = vst [vmem:[%s362 + $0x8] sm:$0xf] %v597
        %602 = vst [vmem:[%s362 + $0xc] sm:$0xf] %v598
        %s603 = sand.u32 %s158, 1
        %s604 = sand.u32 %s158, 1
        %s605 = smul.addr %s604, 16
        %s606 = scalar_lea.vmem [#allocation4], %s605
        // Predicated region
        $region86: #{bridgetower_vision_forward.14} parent=76 // pred_check
          %p607 = pneg %p168
        $region87: #{bridgetower_vision_forward.14} parent=76 // pred_check_branch
          %609 = sbr.rel (%p607) target = $region89
        $region88: #{bridgetower_vision_forward.14} parent=76 // pred_region
          %s610 = smul.u32 4, %s20
          %s611 = smul.addr %s610, 3
          %s612 = sadd.s32 %s21, %s611
          %s613 = smul.addr %s612, 4
          %s614 = scalar_lea.vmem %s5, %s613
          // Predicated region
          $region90: #{bridgetower_vision_forward.14} parent=88 // pred_check
            _
          $region91: #{bridgetower_vision_forward.14} parent=88 // pred_check_branch
            %616 = sbr.rel (0) target = $region93
          $region92: #{bridgetower_vision_forward.14} parent=88 // pred_region
            // Predicated region
            $region94: #{bridgetower_vision_forward.14} parent=92 // pred_check
              _
            $region95: #{bridgetower_vision_forward.14} parent=92 // pred_check_branch
              %618 = sbr.rel target = $region97
            $region96: #{bridgetower_vision_forward.14} parent=92 // pred_region
              // Predicated region
              $region109: #{bridgetower_vision_forward.14} parent=96 // pred_check
                _
              $region110: #{bridgetower_vision_forward.14} parent=96 // pred_check_branch
                %640 = sbr.rel (0) target = $region112
              $region111: #{bridgetower_vision_forward.14} parent=96 // pred_region
                loop: start=0, step=1, limit=1
                $region113: #{bridgetower_vision_forward.14} parent=111 // loop_pre_header
                  _
                $region114: #{bridgetower_vision_forward.14} parent=111 // loop_header
                  %s642 = sphi 0, %s646
                  %p643 = scmp.ge.s32.totalorder %s642, 1
                  %s647 = sphi %s606, %s606
                  %s648 = sphi %s614, %s614
                $region115: #{bridgetower_vision_forward.14} parent=111 // loop_header_branch
                  %645 = sbr.rel (%p643) target = $region119
                $region116: #{bridgetower_vision_forward.14} parent=111 // loop_body
                  _
                $region117: #{bridgetower_vision_forward.14} parent=111 // loop_footer
                  %s646 = sadd.s32 1, %s642
                $region118: #{bridgetower_vision_forward.14} parent=111 // loop_footer_branch
                  %641 = sbr.rel target = $region114
                $region119: #{bridgetower_vision_forward.14} parent=111 // loop_exit
                  _
                %s650 = ssub.s32 16, 1
                loop: start=0, step=1, limit=1
                $region120: #{bridgetower_vision_forward.14} parent=111 // loop_pre_header
                  _
                $region121: #{bridgetower_vision_forward.14} parent=111 // loop_header
                  %s652 = sphi 0, %s656
                  %p653 = scmp.ge.s32.totalorder %s652, 1
                  %s657 = sphi %s606, %s606
                  %s658 = sphi %s614, %s614
                $region122: #{bridgetower_vision_forward.14} parent=111 // loop_header_branch
                  %655 = sbr.rel (%p653) target = $region126
                $region123: #{bridgetower_vision_forward.14} parent=111 // loop_body
                  %v659 = vld [vmem:[%s657] sm:%s650]
                  %660 = vst [vmem:[%s658] sm:%s650] %v659
                  %v661 = vld [vmem:[%s657 + $0x4] sm:%s650]
                  %662 = vst [vmem:[%s658 + $0xc] sm:%s650] %v661
                  %v663 = vld [vmem:[%s657 + $0x8] sm:%s650]
                  %664 = vst [vmem:[%s658 + $0x18] sm:%s650] %v663
                  %v665 = vld [vmem:[%s657 + $0xc] sm:%s650]
                  %666 = vst [vmem:[%s658 + $0x24] sm:%s650] %v665
                $region124: #{bridgetower_vision_forward.14} parent=111 // loop_footer
                  %s656 = sadd.s32 1, %s652
                $region125: #{bridgetower_vision_forward.14} parent=111 // loop_footer_branch
                  %651 = sbr.rel target = $region121
                $region126: #{bridgetower_vision_forward.14} parent=111 // loop_exit
                  _
              $region112: #{bridgetower_vision_forward.14} parent=96 // pred_fallthru
                _
            $region97: #{bridgetower_vision_forward.14} parent=92 // pred_fallthru
              _
            // Predicated region
            $region98: #{bridgetower_vision_forward.14} parent=92 // pred_check
              _
            $region99: #{bridgetower_vision_forward.14} parent=92 // pred_check_branch
              %620 = sbr.rel (0) target = $region101
            $region100: #{bridgetower_vision_forward.14} parent=92 // pred_region
              %s622 = ssub.s32 16, 1
              loop: start=0, step=1, limit=1
              $region102: #{bridgetower_vision_forward.14} parent=100 // loop_pre_header
                _
              $region103: #{bridgetower_vision_forward.14} parent=100 // loop_header
                %s624 = sphi 0, %s628
                %p625 = scmp.ge.s32.totalorder %s624, 1
                %s629 = sphi %s606, %s606
                %s630 = sphi %s614, %s614
              $region104: #{bridgetower_vision_forward.14} parent=100 // loop_header_branch
                %627 = sbr.rel (%p625) target = $region108
              $region105: #{bridgetower_vision_forward.14} parent=100 // loop_body
                %v631 = vld [vmem:[%s629] sm:%s622]
                %632 = vst [vmem:[%s630] sm:%s622] %v631
                %v633 = vld [vmem:[%s629 + $0x4] sm:%s622]
                %634 = vst [vmem:[%s630 + $0xc] sm:%s622] %v633
                %v635 = vld [vmem:[%s629 + $0x8] sm:%s622]
                %636 = vst [vmem:[%s630 + $0x18] sm:%s622] %v635
                %v637 = vld [vmem:[%s629 + $0xc] sm:%s622]
                %638 = vst [vmem:[%s630 + $0x24] sm:%s622] %v637
              $region106: #{bridgetower_vision_forward.14} parent=100 // loop_footer
                %s628 = sadd.s32 1, %s624
              $region107: #{bridgetower_vision_forward.14} parent=100 // loop_footer_branch
                %623 = sbr.rel target = $region103
              $region108: #{bridgetower_vision_forward.14} parent=100 // loop_exit
                _
            $region101: #{bridgetower_vision_forward.14} parent=92 // pred_fallthru
              _
          $region93: #{bridgetower_vision_forward.14} parent=88 // pred_fallthru
            _
          %667 = vnop
        $region89: #{bridgetower_vision_forward.14} parent=76 // pred_fallthru
          _
      $region77: #{bridgetower_vision_forward.14} parent=5 // pred_fallthru
        _
      %p668 = scmp.le.s32.totalorder 2, %s11
      // Predicated region
      $region127: #{bridgetower_vision_forward.14} parent=5 // pred_check
        %p669 = pneg %p668
      $region128: #{bridgetower_vision_forward.14} parent=5 // pred_check_branch
        %671 = sbr.rel (%p669) target = $region130
      $region129: #{bridgetower_vision_forward.14} parent=5 // pred_region
        %s672 = ssub.s32 %s11, 2
        // Predicated region
        $region131: #{bridgetower_vision_forward.14} parent=129 // pred_check
          %p673 = pneg %p174
        $region132: #{bridgetower_vision_forward.14} parent=129 // pred_check_branch
          %675 = sbr.rel (%p673) target = $region134
        $region133: #{bridgetower_vision_forward.14} parent=129 // pred_region
          %s676 = sand.u32 %s159, 1
          %s677 = sand.u32 %s159, 1
          %s678 = smul.addr %s677, 16
          %s679 = scalar_lea.vmem [#allocation4], %s678
        $region134: #{bridgetower_vision_forward.14} parent=129 // pred_fallthru
          _
      $region130: #{bridgetower_vision_forward.14} parent=5 // pred_fallthru
        _
    $region6: #{bridgetower_vision_forward.14} parent=1 // loop_footer
      %s15 = sadd.s32 1, %s11
    $region7: #{bridgetower_vision_forward.14} parent=1 // loop_footer_branch
      %10 = sbr.rel target = $region3
    $region8: #{bridgetower_vision_forward.14} parent=1 // loop_exit
      _

// kernel: bridgetower_vision_forward.16
$region0: #{bridgetower_vision_forward.16}
  #allocation0 [shape = 'u32[]', space=smem, size = 0x4, offset = 0x4, fixed_abs, tag = 'smem constant byte address 0x4 - core index']
  #allocation1 [shape = 'u32[72,128]{1,0:T(1,128)}', space=vmem, size = 0x9000, scoped, tag = 'internal scratch']
  %s0 = inlined_call_operand.vmem [shape: bf16[32,128], index: 0, kind: input, shape index: {}]
  %s1 = inlined_call_operand.vmem [shape: bf16[128,128], index: 1, kind: input, shape index: {}]
  %s2 = inlined_call_operand.vmem [shape: f32[1,128], index: 2, kind: input, shape index: {}]
  %s3 = inlined_call_operand.vmem [shape: f32[32,128], index: 3, kind: input, shape index: {}]
  %s4 = inlined_call_operand.vmem [shape: f32[32,128], index: 4, kind: output, shape index: {}]
  %s5 = sld [smem:[#allocation0]]
  $region26: #{bridgetower_vision_forward.16} parent=0
    _
  %s7 = ssub.s32 1, %s5
  %s8 = scalar_select 0, %s7, %s5
  // Predicated region
  $region2: #{bridgetower_vision_forward.16} parent=0 // pred_check
    _
  $region3: #{bridgetower_vision_forward.16} parent=0 // pred_check_branch
    %10 = sbr.rel (0) target = $region5
  $region4: #{bridgetower_vision_forward.16} parent=0 // pred_region
    _
  $region5: #{bridgetower_vision_forward.16} parent=0 // pred_fallthru
    _
  // Predicated region
  $region6: #{bridgetower_vision_forward.16} parent=0 // pred_check
    _
  $region7: #{bridgetower_vision_forward.16} parent=0 // pred_check_branch
    %12 = sbr.rel (0) target = $region9
  $region8: #{bridgetower_vision_forward.16} parent=0 // pred_region
    _
  $region9: #{bridgetower_vision_forward.16} parent=0 // pred_fallthru
    _
  // Predicated region
  $region10: #{bridgetower_vision_forward.16} parent=0 // pred_check
    _
  $region11: #{bridgetower_vision_forward.16} parent=0 // pred_check_branch
    %14 = sbr.rel (0) target = $region13
  $region12: #{bridgetower_vision_forward.16} parent=0 // pred_region
    _
  $region13: #{bridgetower_vision_forward.16} parent=0 // pred_fallthru
    _
  // Predicated region
  $region14: #{bridgetower_vision_forward.16} parent=0 // pred_check
    _
  $region15: #{bridgetower_vision_forward.16} parent=0 // pred_check_branch
    %16 = sbr.rel (0) target = $region17
  $region16: #{bridgetower_vision_forward.16} parent=0 // pred_region
    _
  $region17: #{bridgetower_vision_forward.16} parent=0 // pred_fallthru
    _
  %v17 = vld [vmem:[%s0] sm:$0xf]
  %v18 = vld [vmem:[%s0 + $0x4] sm:$0xf]
  %v19 = vld [vmem:[%s0 + $0x8] sm:$0xf]
  %v20 = vld [vmem:[%s0 + $0xc] sm:$0xf]
  %v21 = vld [vmem:[%s1] sm:$0xf]
  %v22 = vld [vmem:[%s1 + $0x4] sm:$0xf]
  %v23 = vld [vmem:[%s1 + $0x8] sm:$0xf]
  %v24 = vld [vmem:[%s1 + $0xc] sm:$0xf]
  %v25 = vld [vmem:[%s1 + $0x10] sm:$0xf]
  %v26 = vld [vmem:[%s1 + $0x14] sm:$0xf]
  %v27 = vld [vmem:[%s1 + $0x18] sm:$0xf]
  %v28 = vld [vmem:[%s1 + $0x1c] sm:$0xf]
  %v29 = vld [vmem:[%s1 + $0x20] sm:$0xf]
  %v30 = vld [vmem:[%s1 + $0x24] sm:$0xf]
  %v31 = vld [vmem:[%s1 + $0x28] sm:$0xf]
  %v32 = vld [vmem:[%s1 + $0x2c] sm:$0xf]
  %v33 = vld [vmem:[%s1 + $0x30] sm:$0xf]
  %v34 = vld [vmem:[%s1 + $0x34] sm:$0xf]
  %v35 = vld [vmem:[%s1 + $0x38] sm:$0xf]
  %v36 = vld [vmem:[%s1 + $0x3c] sm:$0xf]
  %v37 = vld [vmem:[%s2] sm:$0x1]
  %v39 = vperm.slane %v37, 0
  %v45 = vunpack.c.l.b16 %v17
  %v46 = vunpack.c.l.b16 %v18
  %v47 = vunpack.c.l.b16 %v19
  %v48 = vunpack.c.l.b16 %v20
  %v49 = vpack.c.b16 %v46, %v45
  %v50 = vpack.c.b16 %v48, %v47
  %v69 = vunpack.c.l.b16 %v21
  %v70 = vunpack.c.l.b16 %v22
  %v71 = vunpack.c.l.b16 %v23
  %v72 = vunpack.c.l.b16 %v24
  %v73 = vunpack.c.l.b16 %v25
  %v74 = vunpack.c.l.b16 %v26
  %v75 = vunpack.c.l.b16 %v27
  %v76 = vunpack.c.l.b16 %v28
  %v77 = vunpack.c.l.b16 %v29
  %v78 = vunpack.c.l.b16 %v30
  %v79 = vunpack.c.l.b16 %v31
  %v80 = vunpack.c.l.b16 %v32
  %v81 = vunpack.c.l.b16 %v33
  %v82 = vunpack.c.l.b16 %v34
  %v83 = vunpack.c.l.b16 %v35
  %v84 = vunpack.c.l.b16 %v36
  %v85 = vpack.c.b16 %v70, %v69
  %v86 = vpack.c.b16 %v72, %v71
  %v87 = vpack.c.b16 %v74, %v73
  %v88 = vpack.c.b16 %v76, %v75
  %v89 = vpack.c.b16 %v78, %v77
  %v90 = vpack.c.b16 %v80, %v79
  %v91 = vpack.c.b16 %v82, %v81
  %v92 = vpack.c.b16 %v84, %v83
  %101 = vmatpush.bf16.msra.mxu0 %v92
  %102 = vmatpush.bf16.msra.mxu0 %v91
  %103 = vmatpush.bf16.msra.mxu0 %v90
  %104 = vmatpush.bf16.msra.mxu0 %v89
  %105 = vmatpush.bf16.msra.mxu0 %v88
  %106 = vmatpush.bf16.msra.mxu0 %v87
  %107 = vmatpush.bf16.msra.mxu0 %v86
  %108 = vmatpush.bf16.msra.mxu0 %v85
  %109 = vmatmul.bf16.gmra.mxu0 %v49
  %v110 = vpop.f32.mrf.mxu0
  %v111 = vadd.f32 %v39, %v110
  %v112 = vpop.f32.mrf.mxu0
  %v113 = vadd.f32 %v39, %v112
  %114 = vmatmul.bf16.gmra.mxu0 %v50
  %v115 = vpop.f32.mrf.mxu0
  %v116 = vadd.f32 %v39, %v115
  %v117 = vpop.f32.mrf.mxu0
  %v118 = vadd.f32 %v39, %v117
  %119 = vdwg.mxu0
  %v120 = vld [vmem:[%s3] sm:$0xff]
  %v121 = vld [vmem:[%s3 + $0x8] sm:$0xff]
  %v122 = vld [vmem:[%s3 + $0x10] sm:$0xff]
  %v123 = vld [vmem:[%s3 + $0x18] sm:$0xff]
  %v124 = vadd.f32 %v111, %v120
  %v125 = vadd.f32 %v113, %v121
  %v126 = vadd.f32 %v116, %v122
  %v127 = vadd.f32 %v118, %v123
  %128 = vst [vmem:[%s4] sm:$0xff] %v124
  %129 = vst [vmem:[%s4 + $0x8] sm:$0xff] %v125
  %130 = vst [vmem:[%s4 + $0x10] sm:$0xff] %v126
  %131 = vst [vmem:[%s4 + $0x18] sm:$0xff] %v127
  // Predicated region
  $region18: #{bridgetower_vision_forward.16} parent=0 // pred_check
    _
  $region19: #{bridgetower_vision_forward.16} parent=0 // pred_check_branch
    %133 = sbr.rel (0) target = $region21
  $region20: #{bridgetower_vision_forward.16} parent=0 // pred_region
    _
  $region21: #{bridgetower_vision_forward.16} parent=0 // pred_fallthru
    _
  // Predicated region
  $region22: #{bridgetower_vision_forward.16} parent=0 // pred_check
    _
  $region23: #{bridgetower_vision_forward.16} parent=0 // pred_check_branch
    %135 = sbr.rel (0) target = $region25
  $region24: #{bridgetower_vision_forward.16} parent=0 // pred_region
    _
  $region25: #{bridgetower_vision_forward.16} parent=0 // pred_fallthru
    _

// kernel: bridgetower_vision_forward.23
$region0: #{bridgetower_vision_forward.23}
  #allocation0 [shape = 'u32[]', space=smem, size = 0x4, offset = 0x4, fixed_abs, tag = 'smem constant byte address 0x4 - core index']
  #allocation1 [shape = 'u32[72,128]{1,0:T(1,128)}', space=vmem, size = 0x9000, scoped, tag = 'internal scratch']
  %s0 = inlined_call_operand.vmem [shape: f32[32,128], index: 0, kind: input, shape index: {}]
  %s1 = inlined_call_operand.vmem [shape: f32[1,128], index: 1, kind: input, shape index: {}]
  %s2 = inlined_call_operand.vmem [shape: f32[1,128], index: 2, kind: input, shape index: {}]
  %s3 = inlined_call_operand.vmem [shape: f32[32,128], index: 3, kind: output, shape index: {}]
  %s4 = sld [smem:[#allocation0]]
  $region22: #{bridgetower_vision_forward.23} parent=0
    _
  %s6 = ssub.s32 1, %s4
  %s7 = scalar_select 0, %s6, %s4
  // Predicated region
  $region2: #{bridgetower_vision_forward.23} parent=0 // pred_check
    _
  $region3: #{bridgetower_vision_forward.23} parent=0 // pred_check_branch
    %9 = sbr.rel (0) target = $region5
  $region4: #{bridgetower_vision_forward.23} parent=0 // pred_region
    _
  $region5: #{bridgetower_vision_forward.23} parent=0 // pred_fallthru
    _
  // Predicated region
  $region6: #{bridgetower_vision_forward.23} parent=0 // pred_check
    _
  $region7: #{bridgetower_vision_forward.23} parent=0 // pred_check_branch
    %11 = sbr.rel (0) target = $region9
  $region8: #{bridgetower_vision_forward.23} parent=0 // pred_region
    _
  $region9: #{bridgetower_vision_forward.23} parent=0 // pred_fallthru
    _
  // Predicated region
  $region10: #{bridgetower_vision_forward.23} parent=0 // pred_check
    _
  $region11: #{bridgetower_vision_forward.23} parent=0 // pred_check_branch
    %13 = sbr.rel (0) target = $region13
  $region12: #{bridgetower_vision_forward.23} parent=0 // pred_region
    _
  $region13: #{bridgetower_vision_forward.23} parent=0 // pred_fallthru
    _
  %v14 = vld [vmem:[%s0] sm:$0xff]
  %v15 = vld [vmem:[%s0 + $0x8] sm:$0xff]
  %v16 = vld [vmem:[%s0 + $0x10] sm:$0xff]
  %v17 = vld [vmem:[%s0 + $0x18] sm:$0xff]
  %18 = vadd.xlane.f32.xlu0 %v14
  %v19 = vpop.xlane.xlu0 %18
  %20 = vadd.xlane.f32.xlu0 %v15
  %v21 = vpop.xlane.xlu0 %20
  %22 = vadd.xlane.f32.xlu0 %v16
  %v23 = vpop.xlane.xlu0 %22
  %24 = vadd.xlane.f32.xlu0 %v17
  %v25 = vpop.xlane.xlu0 %24
  %v26 = vrcp.pop 128.0
  %v27 = vmul.f32 128.0, %v26
  %v28 = vsub.f32 1.0, %v27
  %v29 = vmul.f32 %v26, %v28
  %v30 = vadd.f32 %v26, %v29
  %vm31 = vweird.f32 %v26
  %v32 = vsel %vm31, %v26, %v30
  %v33 = vmul.f32 %v19, %v32
  %v34 = vmul.f32 %v21, %v32
  %v35 = vmul.f32 %v23, %v32
  %v36 = vmul.f32 %v25, %v32
  %v37 = vsub.f32 %v14, %v33
  %v38 = vsub.f32 %v15, %v34
  %v39 = vsub.f32 %v16, %v35
  %v40 = vsub.f32 %v17, %v36
  %v41 = vmul.f32 %v37, %v37
  %v42 = vmul.f32 %v38, %v38
  %v43 = vmul.f32 %v39, %v39
  %v44 = vmul.f32 %v40, %v40
  %45 = vadd.xlane.f32.xlu0 %v41
  %v46 = vpop.xlane.xlu0 %45
  %47 = vadd.xlane.f32.xlu0 %v42
  %v48 = vpop.xlane.xlu0 %47
  %49 = vadd.xlane.f32.xlu0 %v43
  %v50 = vpop.xlane.xlu0 %49
  %51 = vadd.xlane.f32.xlu0 %v44
  %v52 = vpop.xlane.xlu0 %51
  %v53 = vmul.f32 %v46, %v32
  %v54 = vmul.f32 %v48, %v32
  %v55 = vmul.f32 %v50, %v32
  %v56 = vmul.f32 %v52, %v32
  %v57 = vadd.f32 %v53, 1e-05
  %v58 = vadd.f32 %v54, 1e-05
  %v59 = vadd.f32 %v55, 1e-05
  %v60 = vadd.f32 %v56, 1e-05
  %v61 = vrsqrt.pop %v57
  %v62 = vmul.f32 %v61, %v57
  %v63 = vmul.f32 %v62, %v61
  %v64 = vmul.f32 0.5, %v63
  %v65 = vsub.f32 1.5, %v64
  %v66 = vmul.f32 %v61, %v65
  %vm67 = vweird.f32 %v57
  %vm68 = vweird.f32 %v61
  %vm69 = vmor %vm67, %vm68
  %v70 = vsel %vm69, %v61, %v66
  %v71 = vrsqrt.pop %v58
  %v72 = vmul.f32 %v71, %v58
  %v73 = vmul.f32 %v72, %v71
  %v74 = vmul.f32 0.5, %v73
  %v75 = vsub.f32 1.5, %v74
  %v76 = vmul.f32 %v71, %v75
  %vm77 = vweird.f32 %v58
  %vm78 = vweird.f32 %v71
  %vm79 = vmor %vm77, %vm78
  %v80 = vsel %vm79, %v71, %v76
  %v81 = vrsqrt.pop %v59
  %v82 = vmul.f32 %v81, %v59
  %v83 = vmul.f32 %v82, %v81
  %v84 = vmul.f32 0.5, %v83
  %v85 = vsub.f32 1.5, %v84
  %v86 = vmul.f32 %v81, %v85
  %vm87 = vweird.f32 %v59
  %vm88 = vweird.f32 %v81
  %vm89 = vmor %vm87, %vm88
  %v90 = vsel %vm89, %v81, %v86
  %v91 = vrsqrt.pop %v60
  %v92 = vmul.f32 %v91, %v60
  %v93 = vmul.f32 %v92, %v91
  %v94 = vmul.f32 0.5, %v93
  %v95 = vsub.f32 1.5, %v94
  %v96 = vmul.f32 %v91, %v95
  %vm97 = vweird.f32 %v60
  %vm98 = vweird.f32 %v91
  %vm99 = vmor %vm97, %vm98
  %v100 = vsel %vm99, %v91, %v96
  %v101 = vmul.f32 %v37, %v70
  %v102 = vmul.f32 %v38, %v80
  %v103 = vmul.f32 %v39, %v90
  %v104 = vmul.f32 %v40, %v100
  %v105 = vld [vmem:[%s1] sm:$0x1]
  %v107 = vperm.slane %v105, 0
  %v109 = vmul.f32 %v101, %v107
  %v110 = vmul.f32 %v102, %v107
  %v111 = vmul.f32 %v103, %v107
  %v112 = vmul.f32 %v104, %v107
  %v113 = vld [vmem:[%s2] sm:$0x1]
  %v115 = vperm.slane %v113, 0
  %v117 = vadd.f32 %v109, %v115
  %v118 = vadd.f32 %v110, %v115
  %v119 = vadd.f32 %v111, %v115
  %v120 = vadd.f32 %v112, %v115
  %121 = vst [vmem:[%s3] sm:$0xff] %v117
  %122 = vst [vmem:[%s3 + $0x8] sm:$0xff] %v118
  %123 = vst [vmem:[%s3 + $0x10] sm:$0xff] %v119
  %124 = vst [vmem:[%s3 + $0x18] sm:$0xff] %v120
  // Predicated region
  $region14: #{bridgetower_vision_forward.23} parent=0 // pred_check
    _
  $region15: #{bridgetower_vision_forward.23} parent=0 // pred_check_branch
    %126 = sbr.rel (0) target = $region17
  $region16: #{bridgetower_vision_forward.23} parent=0 // pred_region
    _
  $region17: #{bridgetower_vision_forward.23} parent=0 // pred_fallthru
    _
  // Predicated region
  $region18: #{bridgetower_vision_forward.23} parent=0 // pred_check
    _
  $region19: #{bridgetower_vision_forward.23} parent=0 // pred_check_branch
    %128 = sbr.rel (0) target = $region21
  $region20: #{bridgetower_vision_forward.23} parent=0 // pred_region
    _
  $region21: #{bridgetower_vision_forward.23} parent=0 // pred_fallthru
    _

// kernel: bridgetower_vision_forward.17
$region0: #{bridgetower_vision_forward.17}
  #allocation0 [shape = 'u32[]', space=smem, size = 0x4, offset = 0x4, fixed_abs, tag = 'smem constant byte address 0x4 - core index']
  #allocation1 [shape = 'u32[72,128]{1,0:T(1,128)}', space=vmem, size = 0x9000, scoped, tag = 'internal scratch']
  #allocation2 [shape = 'bf16[32,128]{1,0:T(8,128)(2,1)}', space=vmem, size = 0x2000, scoped, tag = 'scratch operand']
  #allocation3 [shape = 'f32[32,128]{1,0:T(8,128)}', space=vmem, size = 0x4000, scoped, tag = 'scratch operand']
  %s0 = inlined_call_operand.vmem [shape: f32[32,128], index: 0, kind: input, shape index: {}]
  %s1 = inlined_call_operand.vmem [shape: f32[1,128], index: 1, kind: input, shape index: {}]
  %s2 = inlined_call_operand.vmem [shape: f32[1,128], index: 2, kind: input, shape index: {}]
  %s3 = inlined_call_operand.vmem [shape: bf16[128,512], index: 3, kind: input, shape index: {}]
  %s4 = inlined_call_operand.vmem [shape: f32[1,512], index: 4, kind: input, shape index: {}]
  %s5 = inlined_call_operand.vmem [shape: bf16[512,128], index: 5, kind: input, shape index: {}]
  %s6 = inlined_call_operand.vmem [shape: f32[1,128], index: 6, kind: input, shape index: {}]
  %s7 = inlined_call_operand.vmem [shape: f32[32,128], index: 7, kind: output, shape index: {}]
  %s8 = sld [smem:[#allocation0]]
  $region107: #{bridgetower_vision_forward.17} parent=0
    _
  %s10 = ssub.s32 1, %s8
  %s11 = scalar_select 0, %s10, %s8
  $region1: #{bridgetower_vision_forward.17} parent=0
    #allocation4 [shape = 'u8[131072]{0}', space=vmem, size = 0x20000, scoped, tag = 'input window, operand 3']
    loop: start=0, step=1, limit=4
    $region2: #{bridgetower_vision_forward.17} parent=1 // loop_pre_header
      _
    $region3: #{bridgetower_vision_forward.17} parent=1 // loop_header
      %s13 = sphi 0, %s17
      %p14 = scmp.ge.s32.totalorder %s13, 4
      %s20 = sphi 0, %s32
      %s21 = sphi 0, %s28
      %s22 = sphi 0, %s20
      %s23 = sphi 0, %s21
      %s24 = sphi 0, %s22
      %s25 = sphi 0, %s23
      %s35 = sphi 0, %s37
      %s38 = sphi 0, %s35
      %s39 = sphi 0, %s38
      %s55 = sphi 0, %s39
      %s59 = sphi 0, %s59
      %s61 = sphi 0, %s59
      %s62 = sphi 0, %s61
      %s76 = sphi 0, %s62
      %s80 = sphi 0, %s80
      %s82 = sphi 0, %s80
      %s83 = sphi 0, %s82
      %s97 = sphi 0, %s83
      %s103 = sphi 0, %s105
      %s106 = sphi 0, %s103
      %s107 = sphi 0, %s106
      %s123 = sphi 0, %s107
      %s129 = sphi 0, %s131
      %s132 = sphi 0, %s129
      %s133 = sphi 0, %s132
      %s149 = sphi 0, %s133
      %s155 = sphi 0, %s157
      %s158 = sphi 0, %s155
      %s159 = sphi 0, %s158
      %s175 = sphi 0, %s159
      %s179 = sphi 0, %s179
      %s181 = sphi 0, %s179
      %s182 = sphi 0, %s181
      %s196 = sphi 0, %s182
      %s202 = sphi 0, %s204
      %s205 = sphi 0, %s202
      %s206 = sphi 0, %s205
      %s222 = sphi 0, %s206
    $region4: #{bridgetower_vision_forward.17} parent=1 // loop_header_branch
      %16 = sbr.rel (%p14) target = $region8
    $region5: #{bridgetower_vision_forward.17} parent=1 // loop_body
      %s18 = ssub.s32 %s13, 1
      %s19 = ssub.s32 %s13, 2
      %s26 = sadd.s32 1, %s21
      %p27 = scmp.ge.s32.totalorder %s26, 2
      %s28 = scalar_select %p27, 0, %s26
      %s29 = sadd.s32 1, %s20
      %s30 = scalar_select %p27, %s29, %s20
      %p31 = scmp.ge.s32.totalorder %s30, 1
      %s32 = scalar_select %p31, 0, %s30
      %s33 = ssub.s32 %s20, %s32
      %p34 = scmp.eq.s32.totalorder %s33, 0
      %s36 = sadd.s32 %s35, 1
      %s37 = scalar_select %p34, %s35, %s36
      %p40 = pneg %p34
      %p41 = scmp.eq.s32.totalorder %s13, 1
      %p42 = por %p40, %p41
      %p43 = scmp.ne.s32.totalorder %s35, %s38
      %p44 = scmp.eq.s32.totalorder %s13, 0
      %p45 = por %p43, %p44
      %p46 = scmp.ne.s32.totalorder %s35, %s38
      %p47 = scmp.eq.s32.totalorder %s18, 1
      %p48 = por %p46, %p47
      %p49 = scmp.ne.s32.totalorder %s38, %s39
      %p50 = scmp.eq.s32.totalorder %s18, 0
      %p51 = por %p49, %p50
      %p52 = scmp.ne.s32.totalorder %s38, %s39
      %p53 = scmp.eq.s32.totalorder %s19, 1
      %p54 = por %p52, %p53
      %p56 = scmp.ne.s32.totalorder %s39, %s55
      %p57 = scmp.eq.s32.totalorder %s19, 0
      %p58 = por %p56, %p57
      %s60 = sadd.s32 %s59, 1
      %p63 = scmp.eq.s32.totalorder %s13, 1
      %p64 = scmp.ne.s32.totalorder %s59, %s61
      %p65 = scmp.eq.s32.totalorder %s13, 0
      %p66 = por %p64, %p65
      %p67 = scmp.ne.s32.totalorder %s59, %s61
      %p68 = scmp.eq.s32.totalorder %s18, 1
      %p69 = por %p67, %p68
      %p70 = scmp.ne.s32.totalorder %s61, %s62
      %p71 = scmp.eq.s32.totalorder %s18, 0
      %p72 = por %p70, %p71
      %p73 = scmp.ne.s32.totalorder %s61, %s62
      %p74 = scmp.eq.s32.totalorder %s19, 1
      %p75 = por %p73, %p74
      %p77 = scmp.ne.s32.totalorder %s62, %s76
      %p78 = scmp.eq.s32.totalorder %s19, 0
      %p79 = por %p77, %p78
      %s81 = sadd.s32 %s80, 1
      %p84 = scmp.eq.s32.totalorder %s13, 1
      %p85 = scmp.ne.s32.totalorder %s80, %s82
      %p86 = scmp.eq.s32.totalorder %s13, 0
      %p87 = por %p85, %p86
      %p88 = scmp.ne.s32.totalorder %s80, %s82
      %p89 = scmp.eq.s32.totalorder %s18, 1
      %p90 = por %p88, %p89
      %p91 = scmp.ne.s32.totalorder %s82, %s83
      %p92 = scmp.eq.s32.totalorder %s18, 0
      %p93 = por %p91, %p92
      %p94 = scmp.ne.s32.totalorder %s82, %s83
      %p95 = scmp.eq.s32.totalorder %s19, 1
      %p96 = por %p94, %p95
      %p98 = scmp.ne.s32.totalorder %s83, %s97
      %p99 = scmp.eq.s32.totalorder %s19, 0
      %p100 = por %p98, %p99
      %s101 = ssub.s32 %s21, %s28
      %p102 = scmp.eq.s32.totalorder %s101, 0
      %s104 = sadd.s32 %s103, 1
      %s105 = scalar_select %p102, %s103, %s104
      %p108 = pneg %p102
      %p109 = scmp.eq.s32.totalorder %s13, 1
      %p110 = por %p108, %p109
      %p111 = scmp.ne.s32.totalorder %s103, %s106
      %p112 = scmp.eq.s32.totalorder %s13, 0
      %p113 = por %p111, %p112
      %p114 = scmp.ne.s32.totalorder %s103, %s106
      %p115 = scmp.eq.s32.totalorder %s18, 1
      %p116 = por %p114, %p115
      %p117 = scmp.ne.s32.totalorder %s106, %s107
      %p118 = scmp.eq.s32.totalorder %s18, 0
      %p119 = por %p117, %p118
      %p120 = scmp.ne.s32.totalorder %s106, %s107
      %p121 = scmp.eq.s32.totalorder %s19, 1
      %p122 = por %p120, %p121
      %p124 = scmp.ne.s32.totalorder %s107, %s123
      %p125 = scmp.eq.s32.totalorder %s19, 0
      %p126 = por %p124, %p125
      %s127 = ssub.s32 %s21, %s28
      %p128 = scmp.eq.s32.totalorder %s127, 0
      %s130 = sadd.s32 %s129, 1
      %s131 = scalar_select %p128, %s129, %s130
      %p134 = pneg %p128
      %p135 = scmp.eq.s32.totalorder %s13, 1
      %p136 = por %p134, %p135
      %p137 = scmp.ne.s32.totalorder %s129, %s132
      %p138 = scmp.eq.s32.totalorder %s13, 0
      %p139 = por %p137, %p138
      %p140 = scmp.ne.s32.totalorder %s129, %s132
      %p141 = scmp.eq.s32.totalorder %s18, 1
      %p142 = por %p140, %p141
      %p143 = scmp.ne.s32.totalorder %s132, %s133
      %p144 = scmp.eq.s32.totalorder %s18, 0
      %p145 = por %p143, %p144
      %p146 = scmp.ne.s32.totalorder %s132, %s133
      %p147 = scmp.eq.s32.totalorder %s19, 1
      %p148 = por %p146, %p147
      %p150 = scmp.ne.s32.totalorder %s133, %s149
      %p151 = scmp.eq.s32.totalorder %s19, 0
      %p152 = por %p150, %p151
      %s153 = ssub.s32 %s21, %s28
      %p154 = scmp.eq.s32.totalorder %s153, 0
      %s156 = sadd.s32 %s155, 1
      %s157 = scalar_select %p154, %s155, %s156
      %p160 = pneg %p154
      %p161 = scmp.eq.s32.totalorder %s13, 1
      %p162 = por %p160, %p161
      %p163 = scmp.ne.s32.totalorder %s155, %s158
      %p164 = scmp.eq.s32.totalorder %s13, 0
      %p165 = por %p163, %p164
      %p166 = scmp.ne.s32.totalorder %s155, %s158
      %p167 = scmp.eq.s32.totalorder %s18, 1
      %p168 = por %p166, %p167
      %p169 = scmp.ne.s32.totalorder %s158, %s159
      %p170 = scmp.eq.s32.totalorder %s18, 0
      %p171 = por %p169, %p170
      %p172 = scmp.ne.s32.totalorder %s158, %s159
      %p173 = scmp.eq.s32.totalorder %s19, 1
      %p174 = por %p172, %p173
      %p176 = scmp.ne.s32.totalorder %s159, %s175
      %p177 = scmp.eq.s32.totalorder %s19, 0
      %p178 = por %p176, %p177
      %s180 = sadd.s32 %s179, 1
      %p183 = scmp.eq.s32.totalorder %s13, 1
      %p184 = scmp.ne.s32.totalorder %s179, %s181
      %p185 = scmp.eq.s32.totalorder %s13, 0
      %p186 = por %p184, %p185
      %p187 = scmp.ne.s32.totalorder %s179, %s181
      %p188 = scmp.eq.s32.totalorder %s18, 1
      %p189 = por %p187, %p188
      %p190 = scmp.ne.s32.totalorder %s181, %s182
      %p191 = scmp.eq.s32.totalorder %s18, 0
      %p192 = por %p190, %p191
      %p193 = scmp.ne.s32.totalorder %s181, %s182
      %p194 = scmp.eq.s32.totalorder %s19, 1
      %p195 = por %p193, %p194
      %p197 = scmp.ne.s32.totalorder %s182, %s196
      %p198 = scmp.eq.s32.totalorder %s19, 0
      %p199 = por %p197, %p198
      %s200 = ssub.s32 %s20, %s32
      %p201 = scmp.eq.s32.totalorder %s200, 0
      %s203 = sadd.s32 %s202, 1
      %s204 = scalar_select %p201, %s202, %s203
      %p207 = pneg %p201
      %p208 = scmp.eq.s32.totalorder %s13, 1
      %p209 = por %p207, %p208
      %p210 = scmp.ne.s32.totalorder %s202, %s205
      %p211 = scmp.eq.s32.totalorder %s13, 0
      %p212 = por %p210, %p211
      %p213 = scmp.ne.s32.totalorder %s202, %s205
      %p214 = scmp.eq.s32.totalorder %s18, 1
      %p215 = por %p213, %p214
      %p216 = scmp.ne.s32.totalorder %s205, %s206
      %p217 = scmp.eq.s32.totalorder %s18, 0
      %p218 = por %p216, %p217
      %p219 = scmp.ne.s32.totalorder %s205, %s206
      %p220 = scmp.eq.s32.totalorder %s19, 1
      %p221 = por %p219, %p220
      %p223 = scmp.ne.s32.totalorder %s206, %s222
      %p224 = scmp.eq.s32.totalorder %s19, 0
      %p225 = por %p223, %p224
      %p226 = scmp.le.s32.totalorder 1, %s13
      %p227 = scmp.lt.s32.totalorder %s13, 3
      %p228 = pnand %p226, %p227
      %p229 = pneg %p228
      // Predicated region
      $region9: #{bridgetower_vision_forward.17} parent=5 // pred_check
        _
      $region10: #{bridgetower_vision_forward.17} parent=5 // pred_check_branch
        %231 = sbr.rel (%p228) target = $region12
      $region11: #{bridgetower_vision_forward.17} parent=5 // pred_region
        %s232 = ssub.s32 %s13, 1
        // Predicated region
        $region13: #{bridgetower_vision_forward.17} parent=11 // pred_check
          %p233 = pneg %p51
        $region14: #{bridgetower_vision_forward.17} parent=11 // pred_check_branch
          %235 = sbr.rel (%p233) target = $region16
        $region15: #{bridgetower_vision_forward.17} parent=11 // pred_region
          %s236 = smul.u32 4, %s22
          %p237 = scmp.lt.s32.totalorder %s236, 3
          %s238 = scalar_select %p237, %s236, 3
          %s239 = smul.addr %s238, 8
          %s240 = scalar_lea.vmem %s0, %s239
          %s241 = smul.u32 4, %s22
        $region16: #{bridgetower_vision_forward.17} parent=11 // pred_fallthru
          _
        // Predicated region
        $region17: #{bridgetower_vision_forward.17} parent=11 // pred_check
          %p242 = pneg %p72
        $region18: #{bridgetower_vision_forward.17} parent=11 // pred_check_branch
          %244 = sbr.rel (%p242) target = $region20
        $region19: #{bridgetower_vision_forward.17} parent=11 // pred_region
          _
        $region20: #{bridgetower_vision_forward.17} parent=11 // pred_fallthru
          _
        // Predicated region
        $region21: #{bridgetower_vision_forward.17} parent=11 // pred_check
          %p245 = pneg %p93
        $region22: #{bridgetower_vision_forward.17} parent=11 // pred_check_branch
          %247 = sbr.rel (%p245) target = $region24
        $region23: #{bridgetower_vision_forward.17} parent=11 // pred_region
          _
        $region24: #{bridgetower_vision_forward.17} parent=11 // pred_fallthru
          _
        // Predicated region
        $region25: #{bridgetower_vision_forward.17} parent=11 // pred_check
          %p248 = pneg %p192
        $region26: #{bridgetower_vision_forward.17} parent=11 // pred_check_branch
          %250 = sbr.rel (%p248) target = $region28
        $region27: #{bridgetower_vision_forward.17} parent=11 // pred_region
          _
        $region28: #{bridgetower_vision_forward.17} parent=11 // pred_fallthru
          _
      $region12: #{bridgetower_vision_forward.17} parent=5 // pred_fallthru
        _
      %p251 = scmp.lt.s32.totalorder %s13, 2
      // Predicated region
      $region29: #{bridgetower_vision_forward.17} parent=5 // pred_check
        %p252 = pneg %p251
      $region30: #{bridgetower_vision_forward.17} parent=5 // pred_check_branch
        %254 = sbr.rel (%p252) target = $region32
      $region31: #{bridgetower_vision_forward.17} parent=5 // pred_region
        // Predicated region
        $region33: #{bridgetower_vision_forward.17} parent=31 // pred_check
          %p255 = pneg %p113
        $region34: #{bridgetower_vision_forward.17} parent=31 // pred_check_branch
          %257 = sbr.rel (%p255) target = $region36
        $region35: #{bridgetower_vision_forward.17} parent=31 // pred_region
          %s258 = sand.u32 %s103, 1
          %s259 = sand.u32 %s103, 1
          %s260 = smul.addr %s259, 128
          %s261 = scalar_lea.vmem [#allocation4], %s260
          %s262 = smul.u32 2, %s21
          %s263 = smul.addr %s262, 4
          %s264 = scalar_lea.vmem %s3, %s263
          // Predicated region
          $region37: #{bridgetower_vision_forward.17} parent=35 // pred_check
            _
          $region38: #{bridgetower_vision_forward.17} parent=35 // pred_check_branch
            %266 = sbr.rel (0) target = $region40
          $region39: #{bridgetower_vision_forward.17} parent=35 // pred_region
            // Predicated region
            $region41: #{bridgetower_vision_forward.17} parent=39 // pred_check
              _
            $region42: #{bridgetower_vision_forward.17} parent=39 // pred_check_branch
              %268 = sbr.rel (0) target = $region44
            $region43: #{bridgetower_vision_forward.17} parent=39 // pred_region
              // Predicated region
              $region56: #{bridgetower_vision_forward.17} parent=43 // pred_check
                _
              $region57: #{bridgetower_vision_forward.17} parent=43 // pred_check_branch
                %314 = sbr.rel (0) target = $region59
              $region58: #{bridgetower_vision_forward.17} parent=43 // pred_region
                loop: start=0, step=1, limit=1
                $region60: #{bridgetower_vision_forward.17} parent=58 // loop_pre_header
                  _
                $region61: #{bridgetower_vision_forward.17} parent=58 // loop_header
                  %s316 = sphi 0, %s320
                  %p317 = scmp.ge.s32.totalorder %s316, 1
                  %s321 = sphi %s264, %s264
                  %s322 = sphi %s261, %s261
                $region62: #{bridgetower_vision_forward.17} parent=58 // loop_header_branch
                  %319 = sbr.rel (%p317) target = $region66
                $region63: #{bridgetower_vision_forward.17} parent=58 // loop_body
                  %v323 = vld [vmem:[%s321] sm:$0xff]
                  %324 = vst [vmem:[%s322] sm:$0xff] %v323
                  %v325 = vld [vmem:[%s321 + $0x10] sm:$0xff]
                  %326 = vst [vmem:[%s322 + $0x8] sm:$0xff] %v325
                  %v327 = vld [vmem:[%s321 + $0x20] sm:$0xff]
                  %328 = vst [vmem:[%s322 + $0x10] sm:$0xff] %v327
                  %v329 = vld [vmem:[%s321 + $0x30] sm:$0xff]
                  %330 = vst [vmem:[%s322 + $0x18] sm:$0xff] %v329
                  %v331 = vld [vmem:[%s321 + $0x40] sm:$0xff]
                  %332 = vst [vmem:[%s322 + $0x20] sm:$0xff] %v331
                  %v333 = vld [vmem:[%s321 + $0x50] sm:$0xff]
                  %334 = vst [vmem:[%s322 + $0x28] sm:$0xff] %v333
                  %v335 = vld [vmem:[%s321 + $0x60] sm:$0xff]
                  %336 = vst [vmem:[%s322 + $0x30] sm:$0xff] %v335
                  %v337 = vld [vmem:[%s321 + $0x70] sm:$0xff]
                  %338 = vst [vmem:[%s322 + $0x38] sm:$0xff] %v337
                  %v339 = vld [vmem:[%s321 + $0x80] sm:$0xff]
                  %340 = vst [vmem:[%s322 + $0x40] sm:$0xff] %v339
                  %v341 = vld [vmem:[%s321 + $0x90] sm:$0xff]
                  %342 = vst [vmem:[%s322 + $0x48] sm:$0xff] %v341
                  %v343 = vld [vmem:[%s321 + $0xa0] sm:$0xff]
                  %344 = vst [vmem:[%s322 + $0x50] sm:$0xff] %v343
                  %v345 = vld [vmem:[%s321 + $0xb0] sm:$0xff]
                  %346 = vst [vmem:[%s322 + $0x58] sm:$0xff] %v345
                  %v347 = vld [vmem:[%s321 + $0xc0] sm:$0xff]
                  %348 = vst [vmem:[%s322 + $0x60] sm:$0xff] %v347
                  %v349 = vld [vmem:[%s321 + $0xd0] sm:$0xff]
                  %350 = vst [vmem:[%s322 + $0x68] sm:$0xff] %v349
                  %v351 = vld [vmem:[%s321 + $0xe0] sm:$0xff]
                  %352 = vst [vmem:[%s322 + $0x70] sm:$0xff] %v351
                  %v353 = vld [vmem:[%s321 + $0xf0] sm:$0xff]
                  %354 = vst [vmem:[%s322 + $0x78] sm:$0xff] %v353
                $region64: #{bridgetower_vision_forward.17} parent=58 // loop_footer
                  %s320 = sadd.s32 1, %s316
                $region65: #{bridgetower_vision_forward.17} parent=58 // loop_footer_branch
                  %315 = sbr.rel target = $region61
                $region66: #{bridgetower_vision_forward.17} parent=58 // loop_exit
                  _
              $region59: #{bridgetower_vision_forward.17} parent=43 // pred_fallthru
                _
              // Predicated region
              $region67: #{bridgetower_vision_forward.17} parent=43 // pred_check
                _
              $region68: #{bridgetower_vision_forward.17} parent=43 // pred_check_branch
                %356 = sbr.rel target = $region70
              $region69: #{bridgetower_vision_forward.17} parent=43 // pred_region
                _
              $region70: #{bridgetower_vision_forward.17} parent=43 // pred_fallthru
                _
            $region44: #{bridgetower_vision_forward.17} parent=39 // pred_fallthru
              _
            // Predicated region
            $region45: #{bridgetower_vision_forward.17} parent=39 // pred_check
              _
            $region46: #{bridgetower_vision_forward.17} parent=39 // pred_check_branch
              %270 = sbr.rel target = $region48
            $region47: #{bridgetower_vision_forward.17} parent=39 // pred_region
              %s272 = ssub.s32 256, 1
              loop: start=0, step=1, limit=1
              $region49: #{bridgetower_vision_forward.17} parent=47 // loop_pre_header
                _
              $region50: #{bridgetower_vision_forward.17} parent=47 // loop_header
                %s274 = sphi 0, %s278
                %p275 = scmp.ge.s32.totalorder %s274, 1
                %s279 = sphi %s264, %s264
                %s280 = sphi %s261, %s261
              $region51: #{bridgetower_vision_forward.17} parent=47 // loop_header_branch
                %277 = sbr.rel (%p275) target = $region55
              $region52: #{bridgetower_vision_forward.17} parent=47 // loop_body
                %v281 = vld [vmem:[%s279] sm:%s272]
                %282 = vst [vmem:[%s280] sm:%s272] %v281
                %v283 = vld [vmem:[%s279 + $0x10] sm:%s272]
                %284 = vst [vmem:[%s280 + $0x8] sm:%s272] %v283
                %v285 = vld [vmem:[%s279 + $0x20] sm:%s272]
                %286 = vst [vmem:[%s280 + $0x10] sm:%s272] %v285
                %v287 = vld [vmem:[%s279 + $0x30] sm:%s272]
                %288 = vst [vmem:[%s280 + $0x18] sm:%s272] %v287
                %v289 = vld [vmem:[%s279 + $0x40] sm:%s272]
                %290 = vst [vmem:[%s280 + $0x20] sm:%s272] %v289
                %v291 = vld [vmem:[%s279 + $0x50] sm:%s272]
                %292 = vst [vmem:[%s280 + $0x28] sm:%s272] %v291
                %v293 = vld [vmem:[%s279 + $0x60] sm:%s272]
                %294 = vst [vmem:[%s280 + $0x30] sm:%s272] %v293
                %v295 = vld [vmem:[%s279 + $0x70] sm:%s272]
                %296 = vst [vmem:[%s280 + $0x38] sm:%s272] %v295
                %v297 = vld [vmem:[%s279 + $0x80] sm:%s272]
                %298 = vst [vmem:[%s280 + $0x40] sm:%s272] %v297
                %v299 = vld [vmem:[%s279 + $0x90] sm:%s272]
                %300 = vst [vmem:[%s280 + $0x48] sm:%s272] %v299
                %v301 = vld [vmem:[%s279 + $0xa0] sm:%s272]
                %302 = vst [vmem:[%s280 + $0x50] sm:%s272] %v301
                %v303 = vld [vmem:[%s279 + $0xb0] sm:%s272]
                %304 = vst [vmem:[%s280 + $0x58] sm:%s272] %v303
                %v305 = vld [vmem:[%s279 + $0xc0] sm:%s272]
                %306 = vst [vmem:[%s280 + $0x60] sm:%s272] %v305
                %v307 = vld [vmem:[%s279 + $0xd0] sm:%s272]
                %308 = vst [vmem:[%s280 + $0x68] sm:%s272] %v307
                %v309 = vld [vmem:[%s279 + $0xe0] sm:%s272]
                %310 = vst [vmem:[%s280 + $0x70] sm:%s272] %v309
                %v311 = vld [vmem:[%s279 + $0xf0] sm:%s272]
                %312 = vst [vmem:[%s280 + $0x78] sm:%s272] %v311
              $region53: #{bridgetower_vision_forward.17} parent=47 // loop_footer
                %s278 = sadd.s32 1, %s274
              $region54: #{bridgetower_vision_forward.17} parent=47 // loop_footer_branch
                %273 = sbr.rel target = $region50
              $region55: #{bridgetower_vision_forward.17} parent=47 // loop_exit
                _
            $region48: #{bridgetower_vision_forward.17} parent=39 // pred_fallthru
              _
          $region40: #{bridgetower_vision_forward.17} parent=35 // pred_fallthru
            _
          %357 = vnop
        $region36: #{bridgetower_vision_forward.17} parent=31 // pred_fallthru
          _
        // Predicated region
        $region71: #{bridgetower_vision_forward.17} parent=31 // pred_check
          %p358 = pneg %p139
        $region72: #{bridgetower_vision_forward.17} parent=31 // pred_check_branch
          %360 = sbr.rel (%p358) target = $region74
        $region73: #{bridgetower_vision_forward.17} parent=31 // pred_region
          %s361 = smul.u32 2, %s21
          %p362 = scmp.lt.s32.totalorder %s361, 3
          %s363 = scalar_select %p362, %s361, 3
          %s364 = scalar_lea.vmem %s4, %s363
          %s365 = smul.u32 2, %s21
        $region74: #{bridgetower_vision_forward.17} parent=31 // pred_fallthru
          _
        // Predicated region
        $region75: #{bridgetower_vision_forward.17} parent=31 // pred_check
          %p366 = pneg %p165
        $region76: #{bridgetower_vision_forward.17} parent=31 // pred_check_branch
          %368 = sbr.rel (%p366) target = $region78
        $region77: #{bridgetower_vision_forward.17} parent=31 // pred_region
          %s369 = smul.u32 32, %s21
          %p370 = scmp.lt.s32.totalorder %s369, 63
          %s371 = scalar_select %p370, %s369, 63
          %s372 = smul.addr %s371, 4
          %s373 = scalar_lea.vmem %s5, %s372
          %s374 = smul.u32 32, %s21
        $region78: #{bridgetower_vision_forward.17} parent=31 // pred_fallthru
          _
      $region32: #{bridgetower_vision_forward.17} parent=5 // pred_fallthru
        _
      %p375 = scmp.le.s32.totalorder 1, %s13
      %p376 = scmp.lt.s32.totalorder %s13, 3
      %p377 = pnand %p375, %p376
      %p378 = pneg %p377
      // Predicated region
      $region79: #{bridgetower_vision_forward.17} parent=5 // pred_check
        _
      $region80: #{bridgetower_vision_forward.17} parent=5 // pred_check_branch
        %380 = sbr.rel (%p377) target = $region82
      $region81: #{bridgetower_vision_forward.17} parent=5 // pred_region
        %s381 = ssub.s32 %s13, 1
        %s382 = sand.u32 %s106, 1
        %s383 = sand.u32 %s106, 1
        %s384 = smul.addr %s383, 128
        %s385 = scalar_lea.vmem [#allocation4], %s384
        // Predicated region
        $region83: #{bridgetower_vision_forward.17} parent=81 // pred_check
          %p386 = pneg %p119
        $region84: #{bridgetower_vision_forward.17} parent=81 // pred_check_branch
          %388 = sbr.rel (%p386) target = $region86
        $region85: #{bridgetower_vision_forward.17} parent=81 // pred_region
          _
        $region86: #{bridgetower_vision_forward.17} parent=81 // pred_fallthru
          _
        %s389 = smul.u32 4, %s22
        %p390 = scmp.lt.s32.totalorder %s389, 3
        %s391 = scalar_select %p390, %s389, 3
        %s392 = smul.addr %s391, 8
        %s393 = scalar_lea.vmem %s0, %s392
        %p394 = pneg %p51
        %p395 = pneg %p48
        %p396 = pneg %p72
        %p397 = pneg %p69
        %p398 = pneg %p93
        %p399 = pneg %p90
        %s400 = sand.u32 %s106, 1
        %s401 = sand.u32 %s106, 1
        %s402 = smul.addr %s401, 128
        %s403 = scalar_lea.vmem [#allocation4], %s402
        %p404 = pneg %p119
        %p405 = pneg %p116
        %s406 = smul.u32 2, %s23
        %p407 = scmp.lt.s32.totalorder %s406, 3
        %s408 = scalar_select %p407, %s406, 3
        %s409 = scalar_lea.vmem %s4, %s408
        %p410 = pneg %p145
        %p411 = pneg %p142
        %s412 = smul.u32 32, %s23
        %p413 = scmp.lt.s32.totalorder %s412, 63
        %s414 = scalar_select %p413, %s412, 63
        %s415 = smul.addr %s414, 4
        %s416 = scalar_lea.vmem %s5, %s415
        %p417 = pneg %p171
        %p418 = pneg %p168
        %p419 = pneg %p192
        %p420 = pneg %p189
        %p421 = pneg %p218
        %p422 = pneg %p215
        %s423 = smul.u32 4, %s22
        %p424 = scmp.lt.s32.totalorder %s423, 3
        %s425 = scalar_select %p424, %s423, 3
        %s426 = smul.addr %s425, 8
        %s427 = scalar_lea.vmem %s7, %s426
        %s428 = smul.u32 4, %s22
        %p429 = scmp.lt.s32.totalorder %s428, 3
        %s430 = scalar_select %p429, %s428, 3
        %s431 = smul.addr %s430, 8
        %s432 = scalar_lea.vmem %s0, %s431
        %s433 = smul.u32 4, %s22
        %s434 = smul.u32 2, %s23
        %s435 = smul.u32 2, %s23
        %p436 = scmp.lt.s32.totalorder %s435, 3
        %s437 = scalar_select %p436, %s435, 3
        %s438 = scalar_lea.vmem %s4, %s437
        %s439 = smul.u32 2, %s23
        %s440 = smul.u32 32, %s23
        %p441 = scmp.lt.s32.totalorder %s440, 63
        %s442 = scalar_select %p441, %s440, 63
        %s443 = smul.addr %s442, 4
        %s444 = scalar_lea.vmem %s5, %s443
        %s445 = smul.u32 32, %s23
        %s446 = smul.u32 4, %s22
        %p447 = scmp.lt.s32.totalorder %s446, 3
        %s448 = scalar_select %p447, %s446, 3
        %s449 = smul.addr %s448, 8
        %s450 = scalar_lea.vmem %s7, %s449
        %s451 = smul.u32 4, %s22
        %p452 = scmp.eq.s32.totalorder %s23, 0
        // Predicated region
        $region87: #{bridgetower_vision_forward.17} parent=81 // pred_check
          %p453 = pneg %p452
        $region88: #{bridgetower_vision_forward.17} parent=81 // pred_check_branch
          %455 = sbr.rel (%p453) target = $region90
        $region89: #{bridgetower_vision_forward.17} parent=81 // pred_region
          %v456 = vld [vmem:[%s432] sm:$0xff]
          %v457 = vld [vmem:[%s432 + $0x8] sm:$0xff]
          %v458 = vld [vmem:[%s432 + $0x10] sm:$0xff]
          %v459 = vld [vmem:[%s432 + $0x18] sm:$0xff]
          %460 = vadd.xlane.f32.xlu0 %v456
          %v461 = vpop.xlane.xlu0 %460
          %462 = vadd.xlane.f32.xlu0 %v457
          %v463 = vpop.xlane.xlu0 %462
          %464 = vadd.xlane.f32.xlu0 %v458
          %v465 = vpop.xlane.xlu0 %464
          %466 = vadd.xlane.f32.xlu0 %v459
          %v467 = vpop.xlane.xlu0 %466
          %v468 = vrcp.pop 128.0
          %v469 = vmul.f32 128.0, %v468
          %v470 = vsub.f32 1.0, %v469
          %v471 = vmul.f32 %v468, %v470
          %v472 = vadd.f32 %v468, %v471
          %vm473 = vweird.f32 %v468
          %v474 = vsel %vm473, %v468, %v472
          %v475 = vmul.f32 %v461, %v474
          %v476 = vmul.f32 %v463, %v474
          %v477 = vmul.f32 %v465, %v474
          %v478 = vmul.f32 %v467, %v474
          %v479 = vsub.f32 %v456, %v475
          %v480 = vsub.f32 %v457, %v476
          %v481 = vsub.f32 %v458, %v477
          %v482 = vsub.f32 %v459, %v478
          %v483 = vmul.f32 %v479, %v479
          %v484 = vmul.f32 %v480, %v480
          %v485 = vmul.f32 %v481, %v481
          %v486 = vmul.f32 %v482, %v482
          %487 = vadd.xlane.f32.xlu0 %v483
          %v488 = vpop.xlane.xlu0 %487
          %489 = vadd.xlane.f32.xlu0 %v484
          %v490 = vpop.xlane.xlu0 %489
          %491 = vadd.xlane.f32.xlu0 %v485
          %v492 = vpop.xlane.xlu0 %491
          %493 = vadd.xlane.f32.xlu0 %v486
          %v494 = vpop.xlane.xlu0 %493
          %v495 = vmul.f32 %v488, %v474
          %v496 = vmul.f32 %v490, %v474
          %v497 = vmul.f32 %v492, %v474
          %v498 = vmul.f32 %v494, %v474
          %v499 = vadd.f32 %v495, 1e-05
          %v500 = vadd.f32 %v496, 1e-05
          %v501 = vadd.f32 %v497, 1e-05
          %v502 = vadd.f32 %v498, 1e-05
          %v503 = vrsqrt.pop %v499
          %v504 = vmul.f32 %v503, %v499
          %v505 = vmul.f32 %v504, %v503
          %v506 = vmul.f32 0.5, %v505
          %v507 = vsub.f32 1.5, %v506
          %v508 = vmul.f32 %v503, %v507
          %vm509 = vweird.f32 %v499
          %vm510 = vweird.f32 %v503
          %vm511 = vmor %vm509, %vm510
          %v512 = vsel %vm511, %v503, %v508
          %v513 = vrsqrt.pop %v500
          %v514 = vmul.f32 %v513, %v500
          %v515 = vmul.f32 %v514, %v513
          %v516 = vmul.f32 0.5, %v515
          %v517 = vsub.f32 1.5, %v516
          %v518 = vmul.f32 %v513, %v517
          %vm519 = vweird.f32 %v500
          %vm520 = vweird.f32 %v513
          %vm521 = vmor %vm519, %vm520
          %v522 = vsel %vm521, %v513, %v518
          %v523 = vrsqrt.pop %v501
          %v524 = vmul.f32 %v523, %v501
          %v525 = vmul.f32 %v524, %v523
          %v526 = vmul.f32 0.5, %v525
          %v527 = vsub.f32 1.5, %v526
          %v528 = vmul.f32 %v523, %v527
          %vm529 = vweird.f32 %v501
          %vm530 = vweird.f32 %v523
          %vm531 = vmor %vm529, %vm530
          %v532 = vsel %vm531, %v523, %v528
          %v533 = vrsqrt.pop %v502
          %v534 = vmul.f32 %v533, %v502
          %v535 = vmul.f32 %v534, %v533
          %v536 = vmul.f32 0.5, %v535
          %v537 = vsub.f32 1.5, %v536
          %v538 = vmul.f32 %v533, %v537
          %vm539 = vweird.f32 %v502
          %vm540 = vweird.f32 %v533
          %vm541 = vmor %vm539, %vm540
          %v542 = vsel %vm541, %v533, %v538
          %v543 = vmul.f32 %v479, %v512
          %v544 = vmul.f32 %v480, %v522
          %v545 = vmul.f32 %v481, %v532
          %v546 = vmul.f32 %v482, %v542
          %v547 = vld [vmem:[%s1] sm:$0x1]
          %v549 = vperm.slane %v547, 0
          %v551 = vmul.f32 %v543, %v549
          %v552 = vmul.f32 %v544, %v549
          %v553 = vmul.f32 %v545, %v549
          %v554 = vmul.f32 %v546, %v549
          %v555 = vld [vmem:[%s2] sm:$0x1]
          %v557 = vperm.slane %v555, 0
          %v559 = vadd.f32 %v551, %v557
          %v560 = vadd.f32 %v552, %v557
          %v561 = vadd.f32 %v553, %v557
          %v562 = vadd.f32 %v554, %v557
          %v563 = vpack.c.bf16 %v559, %v559
          %v564 = vpack.c.bf16 %v560, %v560
          %v565 = vpack.c.bf16 %v561, %v561
          %v566 = vpack.c.bf16 %v562, %v562
          %567 = vst [vmem:[#allocation2] sm:$0xf] %v563
          %568 = vst [vmem:[#allocation2 + $0x4] sm:$0xf] %v564
          %569 = vst [vmem:[#allocation2 + $0x8] sm:$0xf] %v565
          %570 = vst [vmem:[#allocation2 + $0xc] sm:$0xf] %v566
          %571 = vst [vmem:[#allocation3] sm:$0xff] 0.0
          %572 = vst [vmem:[#allocation3 + $0x8] sm:$0xff] 0.0
          %573 = vst [vmem:[#allocation3 + $0x10] sm:$0xff] 0.0
          %574 = vst [vmem:[#allocation3 + $0x18] sm:$0xff] 0.0
        $region90: #{bridgetower_vision_forward.17} parent=81 // pred_fallthru
          _
        %v575 = vld [vmem:[#allocation2] sm:$0xf]
        %v576 = vld [vmem:[#allocation2 + $0x4] sm:$0xf]
        %v577 = vld [vmem:[#allocation2 + $0x8] sm:$0xf]
        %v578 = vld [vmem:[#allocation2 + $0xc] sm:$0xf]
        %v579 = vld [vmem:[%s385] sm:$0xff]
        %v580 = vld [vmem:[%s385 + $0x8] sm:$0xff]
        %v581 = vld [vmem:[%s385 + $0x10] sm:$0xff]
        %v582 = vld [vmem:[%s385 + $0x18] sm:$0xff]
        %v583 = vld [vmem:[%s385 + $0x20] sm:$0xff]
        %v584 = vld [vmem:[%s385 + $0x28] sm:$0xff]
        %v585 = vld [vmem:[%s385 + $0x30] sm:$0xff]
        %v586 = vld [vmem:[%s385 + $0x38] sm:$0xff]
        %v587 = vld [vmem:[%s385 + $0x40] sm:$0xff]
        %v588 = vld [vmem:[%s385 + $0x48] sm:$0xff]
        %v589 = vld [vmem:[%s385 + $0x50] sm:$0xff]
        %v590 = vld [vmem:[%s385 + $0x58] sm:$0xff]
        %v591 = vld [vmem:[%s385 + $0x60] sm:$0xff]
        %v592 = vld [vmem:[%s385 + $0x68] sm:$0xff]
        %v593 = vld [vmem:[%s385 + $0x70] sm:$0xff]
        %v594 = vld [vmem:[%s385 + $0x78] sm:$0xff]
        %v595 = vld [vmem:[%s438] sm:$0x3]
        %v597 = vperm.slane %v595, 0
        %v598 = vperm.slane %v595, 1
        %v605 = vunpack.c.l.b16 %v575
        %v606 = vunpack.c.l.b16 %v576
        %v607 = vunpack.c.l.b16 %v577
        %v608 = vunpack.c.l.b16 %v578
        %v609 = vpack.c.b16 %v606, %v605
        %v610 = vpack.c.b16 %v608, %v607
        %v629 = vunpack.c.l.b16 %v579
        %v630 = vunpack.c.h.b16 %v579
        %v631 = vunpack.c.l.b16 %v580
        %v632 = vunpack.c.h.b16 %v580
        %v633 = vunpack.c.l.b16 %v581
        %v634 = vunpack.c.h.b16 %v581
        %v635 = vunpack.c.l.b16 %v582
        %v636 = vunpack.c.h.b16 %v582
        %v637 = vunpack.c.l.b16 %v583
        %v638 = vunpack.c.h.b16 %v583
        %v639 = vunpack.c.l.b16 %v584
        %v640 = vunpack.c.h.b16 %v584
        %v641 = vunpack.c.l.b16 %v585
        %v642 = vunpack.c.h.b16 %v585
        %v643 = vunpack.c.l.b16 %v586
        %v644 = vunpack.c.h.b16 %v586
        %v645 = vunpack.c.l.b16 %v587
        %v646 = vunpack.c.h.b16 %v587
        %v647 = vunpack.c.l.b16 %v588
        %v648 = vunpack.c.h.b16 %v588
        %v649 = vunpack.c.l.b16 %v589
        %v650 = vunpack.c.h.b16 %v589
        %v651 = vunpack.c.l.b16 %v590
        %v652 = vunpack.c.h.b16 %v590
        %v653 = vunpack.c.l.b16 %v591
        %v654 = vunpack.c.h.b16 %v591
        %v655 = vunpack.c.l.b16 %v592
        %v656 = vunpack.c.h.b16 %v592
        %v657 = vunpack.c.l.b16 %v593
        %v658 = vunpack.c.h.b16 %v593
        %v659 = vunpack.c.l.b16 %v594
        %v660 = vunpack.c.h.b16 %v594
        %v661 = vpack.c.b16 %v631, %v629
        %v662 = vpack.c.b16 %v632, %v630
        %v663 = vpack.c.b16 %v635, %v633
        %v664 = vpack.c.b16 %v636, %v634
        %v665 = vpack.c.b16 %v639, %v637
        %v666 = vpack.c.b16 %v640, %v638
        %v667 = vpack.c.b16 %v643, %v641
        %v668 = vpack.c.b16 %v644, %v642
        %v669 = vpack.c.b16 %v647, %v645
        %v670 = vpack.c.b16 %v648, %v646
        %v671 = vpack.c.b16 %v651, %v649
        %v672 = vpack.c.b16 %v652, %v650
        %v673 = vpack.c.b16 %v655, %v653
        %v674 = vpack.c.b16 %v656, %v654
        %v675 = vpack.c.b16 %v659, %v657
        %v676 = vpack.c.b16 %v660, %v658
        %693 = vmatpush.bf16.msra.mxu0 %v675
        %694 = vmatpush.bf16.msra.mxu0 %v673
        %695 = vmatpush.bf16.msra.mxu0 %v671
        %696 = vmatpush.bf16.msra.mxu0 %v669
        %697 = vmatpush.bf16.msra.mxu0 %v667
        %698 = vmatpush.bf16.msra.mxu0 %v665
        %699 = vmatpush.bf16.msra.mxu0 %v663
        %700 = vmatpush.bf16.msra.mxu0 %v661
        %701 = vmatmul.bf16.gmra.mxu0 %v609
        %v702 = vpop.f32.mrf.mxu0
        %v703 = vadd.f32 %v597, %v702
        %v704 = vpop.f32.mrf.mxu0
        %v705 = vadd.f32 %v597, %v704
        %706 = vmatmul.bf16.gmra.mxu0 %v610
        %v707 = vpop.f32.mrf.mxu0
        %v708 = vadd.f32 %v597, %v707
        %v709 = vpop.f32.mrf.mxu0
        %v710 = vadd.f32 %v597, %v709
        %711 = vdwg.mxu0
        %712 = vmatpush.bf16.msra.mxu0 %v676
        %713 = vmatpush.bf16.msra.mxu0 %v674
        %714 = vmatpush.bf16.msra.mxu0 %v672
        %715 = vmatpush.bf16.msra.mxu0 %v670
        %716 = vmatpush.bf16.msra.mxu0 %v668
        %717 = vmatpush.bf16.msra.mxu0 %v666
        %718 = vmatpush.bf16.msra.mxu0 %v664
        %719 = vmatpush.bf16.msra.mxu0 %v662
        %720 = vmatmul.bf16.gmra.mxu0 %v609
        %v721 = vpop.f32.mrf.mxu0
        %v722 = vadd.f32 %v598, %v721
        %v723 = vpop.f32.mrf.mxu0
        %v724 = vadd.f32 %v598, %v723
        %725 = vmatmul.bf16.gmra.mxu0 %v610
        %v726 = vpop.f32.mrf.mxu0
        %v727 = vadd.f32 %v598, %v726
        %v728 = vpop.f32.mrf.mxu0
        %v729 = vadd.f32 %v598, %v728
        %730 = vdwg.mxu0
        %v731 = vmul.f32 %v703, 1.702
        %v732 = vmul.f32 %v722, 1.702
        %v733 = vmul.f32 %v705, 1.702
        %v734 = vmul.f32 %v724, 1.702
        %v735 = vmul.f32 %v708, 1.702
        %v736 = vmul.f32 %v727, 1.702
        %v737 = vmul.f32 %v710, 1.702
        %v738 = vmul.f32 %v729, 1.702
        %v739 = vxor.u32 %v731, 2147483648
        %v740 = vxor.u32 %v732, 2147483648
        %v741 = vxor.u32 %v733, 2147483648
        %v742 = vxor.u32 %v734, 2147483648
        %v743 = vxor.u32 %v735, 2147483648
        %v744 = vxor.u32 %v736, 2147483648
        %v745 = vxor.u32 %v737, 2147483648
        %v746 = vxor.u32 %v738, 2147483648
        %v747 = vmul.f32 %v739, 1.442695
        %v748 = vpow.pop %v747
        %v749 = vmul.f32 %v740, 1.442695
        %v750 = vpow.pop %v749
        %v751 = vmul.f32 %v741, 1.442695
        %v752 = vpow.pop %v751
        %v753 = vmul.f32 %v742, 1.442695
        %v754 = vpow.pop %v753
        %v755 = vmul.f32 %v743, 1.442695
        %v756 = vpow.pop %v755
        %v757 = vmul.f32 %v744, 1.442695
        %v758 = vpow.pop %v757
        %v759 = vmul.f32 %v745, 1.442695
        %v760 = vpow.pop %v759
        %v761 = vmul.f32 %v746, 1.442695
        %v762 = vpow.pop %v761
        %v763 = vadd.f32 %v748, 1.0
        %v764 = vadd.f32 %v750, 1.0
        %v765 = vadd.f32 %v752, 1.0
        %v766 = vadd.f32 %v754, 1.0
        %v767 = vadd.f32 %v756, 1.0
        %v768 = vadd.f32 %v758, 1.0
        %v769 = vadd.f32 %v760, 1.0
        %v770 = vadd.f32 %v762, 1.0
        %v771 = vrcp.pop %v763
        %v772 = vmul.f32 %v763, %v771
        %v773 = vsub.f32 1.0, %v772
        %v774 = vmul.f32 %v771, %v773
        %v775 = vadd.f32 %v771, %v774
        %vm776 = vweird.f32 %v763
        %vm777 = vweird.f32 %v771
        %vm778 = vmor %vm776, %vm777
        %v779 = vsel %vm778, %v771, %v775
        %v780 = vand.u32 2147483647, %v763
        %vm781 = vcmp.eq.f32.partialorder %v780, 8.507059e+37
        %v782 = vand.u32 %v763, 2147483648
        %v783 = vor.u32 1.1754944e-38, %v782
        %v784 = vsel %vm781, %v783, %v779
        %v785 = vmul.f32 1.0, %v784
        %v786 = vrcp.pop %v764
        %v787 = vmul.f32 %v764, %v786
        %v788 = vsub.f32 1.0, %v787
        %v789 = vmul.f32 %v786, %v788
        %v790 = vadd.f32 %v786, %v789
        %vm791 = vweird.f32 %v764
        %vm792 = vweird.f32 %v786
        %vm793 = vmor %vm791, %vm792
        %v794 = vsel %vm793, %v786, %v790
        %v795 = vand.u32 2147483647, %v764
        %vm796 = vcmp.eq.f32.partialorder %v795, 8.507059e+37
        %v797 = vand.u32 %v764, 2147483648
        %v798 = vor.u32 1.1754944e-38, %v797
        %v799 = vsel %vm796, %v798, %v794
        %v800 = vmul.f32 1.0, %v799
        %v801 = vrcp.pop %v765
        %v802 = vmul.f32 %v765, %v801
        %v803 = vsub.f32 1.0, %v802
        %v804 = vmul.f32 %v801, %v803
        %v805 = vadd.f32 %v801, %v804
        %vm806 = vweird.f32 %v765
        %vm807 = vweird.f32 %v801
        %vm808 = vmor %vm806, %vm807
        %v809 = vsel %vm808, %v801, %v805
        %v810 = vand.u32 2147483647, %v765
        %vm811 = vcmp.eq.f32.partialorder %v810, 8.507059e+37
        %v812 = vand.u32 %v765, 2147483648
        %v813 = vor.u32 1.1754944e-38, %v812
        %v814 = vsel %vm811, %v813, %v809
        %v815 = vmul.f32 1.0, %v814
        %v816 = vrcp.pop %v766
        %v817 = vmul.f32 %v766, %v816
        %v818 = vsub.f32 1.0, %v817
        %v819 = vmul.f32 %v816, %v818
        %v820 = vadd.f32 %v816, %v819
        %vm821 = vweird.f32 %v766
        %vm822 = vweird.f32 %v816
        %vm823 = vmor %vm821, %vm822
        %v824 = vsel %vm823, %v816, %v820
        %v825 = vand.u32 2147483647, %v766
        %vm826 = vcmp.eq.f32.partialorder %v825, 8.507059e+37
        %v827 = vand.u32 %v766, 2147483648
        %v828 = vor.u32 1.1754944e-38, %v827
        %v829 = vsel %vm826, %v828, %v824
        %v830 = vmul.f32 1.0, %v829
        %v831 = vrcp.pop %v767
        %v832 = vmul.f32 %v767, %v831
        %v833 = vsub.f32 1.0, %v832
        %v834 = vmul.f32 %v831, %v833
        %v835 = vadd.f32 %v831, %v834
        %vm836 = vweird.f32 %v767
        %vm837 = vweird.f32 %v831
        %vm838 = vmor %vm836, %vm837
        %v839 = vsel %vm838, %v831, %v835
        %v840 = vand.u32 2147483647, %v767
        %vm841 = vcmp.eq.f32.partialorder %v840, 8.507059e+37
        %v842 = vand.u32 %v767, 2147483648
        %v843 = vor.u32 1.1754944e-38, %v842
        %v844 = vsel %vm841, %v843, %v839
        %v845 = vmul.f32 1.0, %v844
        %v846 = vrcp.pop %v768
        %v847 = vmul.f32 %v768, %v846
        %v848 = vsub.f32 1.0, %v847
        %v849 = vmul.f32 %v846, %v848
        %v850 = vadd.f32 %v846, %v849
        %vm851 = vweird.f32 %v768
        %vm852 = vweird.f32 %v846
        %vm853 = vmor %vm851, %vm852
        %v854 = vsel %vm853, %v846, %v850
        %v855 = vand.u32 2147483647, %v768
        %vm856 = vcmp.eq.f32.partialorder %v855, 8.507059e+37
        %v857 = vand.u32 %v768, 2147483648
        %v858 = vor.u32 1.1754944e-38, %v857
        %v859 = vsel %vm856, %v858, %v854
        %v860 = vmul.f32 1.0, %v859
        %v861 = vrcp.pop %v769
        %v862 = vmul.f32 %v769, %v861
        %v863 = vsub.f32 1.0, %v862
        %v864 = vmul.f32 %v861, %v863
        %v865 = vadd.f32 %v861, %v864
        %vm866 = vweird.f32 %v769
        %vm867 = vweird.f32 %v861
        %vm868 = vmor %vm866, %vm867
        %v869 = vsel %vm868, %v861, %v865
        %v870 = vand.u32 2147483647, %v769
        %vm871 = vcmp.eq.f32.partialorder %v870, 8.507059e+37
        %v872 = vand.u32 %v769, 2147483648
        %v873 = vor.u32 1.1754944e-38, %v872
        %v874 = vsel %vm871, %v873, %v869
        %v875 = vmul.f32 1.0, %v874
        %v876 = vrcp.pop %v770
        %v877 = vmul.f32 %v770, %v876
        %v878 = vsub.f32 1.0, %v877
        %v879 = vmul.f32 %v876, %v878
        %v880 = vadd.f32 %v876, %v879
        %vm881 = vweird.f32 %v770
        %vm882 = vweird.f32 %v876
        %vm883 = vmor %vm881, %vm882
        %v884 = vsel %vm883, %v876, %v880
        %v885 = vand.u32 2147483647, %v770
        %vm886 = vcmp.eq.f32.partialorder %v885, 8.507059e+37
        %v887 = vand.u32 %v770, 2147483648
        %v888 = vor.u32 1.1754944e-38, %v887
        %v889 = vsel %vm886, %v888, %v884
        %v890 = vmul.f32 1.0, %v889
        %v891 = vmul.f32 %v703, %v785
        %v892 = vmul.f32 %v722, %v800
        %v893 = vmul.f32 %v705, %v815
        %v894 = vmul.f32 %v724, %v830
        %v895 = vmul.f32 %v708, %v845
        %v896 = vmul.f32 %v727, %v860
        %v897 = vmul.f32 %v710, %v875
        %v898 = vmul.f32 %v729, %v890
        %v899 = vld [vmem:[#allocation3] sm:$0xff]
        %v900 = vld [vmem:[#allocation3 + $0x8] sm:$0xff]
        %v901 = vld [vmem:[#allocation3 + $0x10] sm:$0xff]
        %v902 = vld [vmem:[#allocation3 + $0x18] sm:$0xff]
        %v903 = vpack.c.bf16 %v893, %v891
        %v904 = vpack.c.bf16 %v894, %v892
        %v905 = vpack.c.bf16 %v897, %v895
        %v906 = vpack.c.bf16 %v898, %v896
        %v907 = vld [vmem:[%s444] sm:$0xf]
        %v908 = vld [vmem:[%s444 + $0x4] sm:$0xf]
        %v909 = vld [vmem:[%s444 + $0x8] sm:$0xf]
        %v910 = vld [vmem:[%s444 + $0xc] sm:$0xf]
        %v911 = vld [vmem:[%s444 + $0x10] sm:$0xf]
        %v912 = vld [vmem:[%s444 + $0x14] sm:$0xf]
        %v913 = vld [vmem:[%s444 + $0x18] sm:$0xf]
        %v914 = vld [vmem:[%s444 + $0x1c] sm:$0xf]
        %v915 = vld [vmem:[%s444 + $0x20] sm:$0xf]
        %v916 = vld [vmem:[%s444 + $0x24] sm:$0xf]
        %v917 = vld [vmem:[%s444 + $0x28] sm:$0xf]
        %v918 = vld [vmem:[%s444 + $0x2c] sm:$0xf]
        %v919 = vld [vmem:[%s444 + $0x30] sm:$0xf]
        %v920 = vld [vmem:[%s444 + $0x34] sm:$0xf]
        %v921 = vld [vmem:[%s444 + $0x38] sm:$0xf]
        %v922 = vld [vmem:[%s444 + $0x3c] sm:$0xf]
        %v923 = vld [vmem:[%s444 + $0x40] sm:$0xf]
        %v924 = vld [vmem:[%s444 + $0x44] sm:$0xf]
        %v925 = vld [vmem:[%s444 + $0x48] sm:$0xf]
        %v926 = vld [vmem:[%s444 + $0x4c] sm:$0xf]
        %v927 = vld [vmem:[%s444 + $0x50] sm:$0xf]
        %v928 = vld [vmem:[%s444 + $0x54] sm:$0xf]
        %v929 = vld [vmem:[%s444 + $0x58] sm:$0xf]
        %v930 = vld [vmem:[%s444 + $0x5c] sm:$0xf]
        %v931 = vld [vmem:[%s444 + $0x60] sm:$0xf]
        %v932 = vld [vmem:[%s444 + $0x64] sm:$0xf]
        %v933 = vld [vmem:[%s444 + $0x68] sm:$0xf]
        %v934 = vld [vmem:[%s444 + $0x6c] sm:$0xf]
        %v935 = vld [vmem:[%s444 + $0x70] sm:$0xf]
        %v936 = vld [vmem:[%s444 + $0x74] sm:$0xf]
        %v937 = vld [vmem:[%s444 + $0x78] sm:$0xf]
        %v938 = vld [vmem:[%s444 + $0x7c] sm:$0xf]
        %v971 = vunpack.c.l.b16 %v907
        %v972 = vunpack.c.l.b16 %v908
        %v973 = vunpack.c.l.b16 %v909
        %v974 = vunpack.c.l.b16 %v910
        %v975 = vunpack.c.l.b16 %v911
        %v976 = vunpack.c.l.b16 %v912
        %v977 = vunpack.c.l.b16 %v913
        %v978 = vunpack.c.l.b16 %v914
        %v979 = vunpack.c.l.b16 %v915
        %v980 = vunpack.c.l.b16 %v916
        %v981 = vunpack.c.l.b16 %v917
        %v982 = vunpack.c.l.b16 %v918
        %v983 = vunpack.c.l.b16 %v919
        %v984 = vunpack.c.l.b16 %v920
        %v985 = vunpack.c.l.b16 %v921
        %v986 = vunpack.c.l.b16 %v922
        %v987 = vunpack.c.l.b16 %v923
        %v988 = vunpack.c.l.b16 %v924
        %v989 = vunpack.c.l.b16 %v925
        %v990 = vunpack.c.l.b16 %v926
        %v991 = vunpack.c.l.b16 %v927
        %v992 = vunpack.c.l.b16 %v928
        %v993 = vunpack.c.l.b16 %v929
        %v994 = vunpack.c.l.b16 %v930
        %v995 = vunpack.c.l.b16 %v931
        %v996 = vunpack.c.l.b16 %v932
        %v997 = vunpack.c.l.b16 %v933
        %v998 = vunpack.c.l.b16 %v934
        %v999 = vunpack.c.l.b16 %v935
        %v1000 = vunpack.c.l.b16 %v936
        %v1001 = vunpack.c.l.b16 %v937
        %v1002 = vunpack.c.l.b16 %v938
        %v1003 = vpack.c.b16 %v972, %v971
        %v1004 = vpack.c.b16 %v974, %v973
        %v1005 = vpack.c.b16 %v976, %v975
        %v1006 = vpack.c.b16 %v978, %v977
        %v1007 = vpack.c.b16 %v980, %v979
        %v1008 = vpack.c.b16 %v982, %v981
        %v1009 = vpack.c.b16 %v984, %v983
        %v1010 = vpack.c.b16 %v986, %v985
        %v1011 = vpack.c.b16 %v988, %v987
        %v1012 = vpack.c.b16 %v990, %v989
        %v1013 = vpack.c.b16 %v992, %v991
        %v1014 = vpack.c.b16 %v994, %v993
        %v1015 = vpack.c.b16 %v996, %v995
        %v1016 = vpack.c.b16 %v998, %v997
        %v1017 = vpack.c.b16 %v1000, %v999
        %v1018 = vpack.c.b16 %v1002, %v1001
        %1035 = vmatpush.bf16.msra.mxu0 %v1010
        %1036 = vmatpush.bf16.msra.mxu0 %v1009
        %1037 = vmatpush.bf16.msra.mxu0 %v1008
        %1038 = vmatpush.bf16.msra.mxu0 %v1007
        %1039 = vmatpush.bf16.msra.mxu0 %v1006
        %1040 = vmatpush.bf16.msra.mxu0 %v1005
        %1041 = vmatpush.bf16.msra.mxu0 %v1004
        %1042 = vmatpush.bf16.msra.mxu0 %v1003
        %1043 = vmatmul.bf16.gmra.mxu0 %v903
        %v1044 = vpop.f32.mrf.mxu0
        %v1045 = vadd.f32 0.0, %v1044
        %v1046 = vpop.f32.mrf.mxu0
        %v1047 = vadd.f32 0.0, %v1046
        %1048 = vmatmul.bf16.gmra.mxu0 %v905
        %v1049 = vpop.f32.mrf.mxu0
        %v1050 = vadd.f32 0.0, %v1049
        %v1051 = vpop.f32.mrf.mxu0
        %v1052 = vadd.f32 0.0, %v1051
        %1053 = vdwg.mxu0
        %1054 = vmatpush.bf16.msra.mxu0 %v1018
        %1055 = vmatpush.bf16.msra.mxu0 %v1017
        %1056 = vmatpush.bf16.msra.mxu0 %v1016
        %1057 = vmatpush.bf16.msra.mxu0 %v1015
        %1058 = vmatpush.bf16.msra.mxu0 %v1014
        %1059 = vmatpush.bf16.msra.mxu0 %v1013
        %1060 = vmatpush.bf16.msra.mxu0 %v1012
        %1061 = vmatpush.bf16.msra.mxu0 %v1011
        %1062 = vmatmul.bf16.gmra.mxu0 %v904
        %v1063 = vpop.f32.mrf.mxu0
        %v1064 = vadd.f32 %v1045, %v1063
        %v1065 = vpop.f32.mrf.mxu0
        %v1066 = vadd.f32 %v1047, %v1065
        %1067 = vmatmul.bf16.gmra.mxu0 %v906
        %v1068 = vpop.f32.mrf.mxu0
        %v1069 = vadd.f32 %v1050, %v1068
        %v1070 = vpop.f32.mrf.mxu0
        %v1071 = vadd.f32 %v1052, %v1070
        %1072 = vdwg.mxu0
        %v1073 = vadd.f32 %v899, %v1064
        %v1074 = vadd.f32 %v900, %v1066
        %v1075 = vadd.f32 %v901, %v1069
        %v1076 = vadd.f32 %v902, %v1071
        %1077 = vst [vmem:[#allocation3] sm:$0xff] %v1073
        %1078 = vst [vmem:[#allocation3 + $0x8] sm:$0xff] %v1074
        %1079 = vst [vmem:[#allocation3 + $0x10] sm:$0xff] %v1075
        %1080 = vst [vmem:[#allocation3 + $0x18] sm:$0xff] %v1076
        %p1081 = scmp.eq.s32.totalorder %s23, 1
        // Predicated region
        $region91: #{bridgetower_vision_forward.17} parent=81 // pred_check
          %p1082 = pneg %p1081
        $region92: #{bridgetower_vision_forward.17} parent=81 // pred_check_branch
          %1084 = sbr.rel (%p1082) target = $region94
        $region93: #{bridgetower_vision_forward.17} parent=81 // pred_region
          %v1085 = vld [vmem:[#allocation3] sm:$0xff]
          %v1086 = vld [vmem:[#allocation3 + $0x8] sm:$0xff]
          %v1087 = vld [vmem:[#allocation3 + $0x10] sm:$0xff]
          %v1088 = vld [vmem:[#allocation3 + $0x18] sm:$0xff]
          %v1089 = vld [vmem:[%s6] sm:$0x1]
          %v1091 = vperm.slane %v1089, 0
          %v1093 = vadd.f32 %v1085, %v1091
          %v1094 = vadd.f32 %v1086, %v1091
          %v1095 = vadd.f32 %v1087, %v1091
          %v1096 = vadd.f32 %v1088, %v1091
          %v1097 = vld [vmem:[%s432] sm:$0xff]
          %v1098 = vld [vmem:[%s432 + $0x8] sm:$0xff]
          %v1099 = vld [vmem:[%s432 + $0x10] sm:$0xff]
          %v1100 = vld [vmem:[%s432 + $0x18] sm:$0xff]
          %v1101 = vadd.f32 %v1093, %v1097
          %v1102 = vadd.f32 %v1094, %v1098
          %v1103 = vadd.f32 %v1095, %v1099
          %v1104 = vadd.f32 %v1096, %v1100
          %1105 = vst [vmem:[%s450] sm:$0xff] %v1101
          %1106 = vst [vmem:[%s450 + $0x8] sm:$0xff] %v1102
          %1107 = vst [vmem:[%s450 + $0x10] sm:$0xff] %v1103
          %1108 = vst [vmem:[%s450 + $0x18] sm:$0xff] %v1104
        $region94: #{bridgetower_vision_forward.17} parent=81 // pred_fallthru
          _
        %s1109 = smul.u32 4, %s22
        %p1110 = scmp.lt.s32.totalorder %s1109, 3
        %s1111 = scalar_select %p1110, %s1109, 3
        %s1112 = smul.addr %s1111, 8
        %s1113 = scalar_lea.vmem %s7, %s1112
        // Predicated region
        $region95: #{bridgetower_vision_forward.17} parent=81 // pred_check
          %p1114 = pneg %p215
        $region96: #{bridgetower_vision_forward.17} parent=81 // pred_check_branch
          %1116 = sbr.rel (%p1114) target = $region98
        $region97: #{bridgetower_vision_forward.17} parent=81 // pred_region
          %s1117 = smul.u32 4, %s22
        $region98: #{bridgetower_vision_forward.17} parent=81 // pred_fallthru
          _
        // Predicated region
        $region99: #{bridgetower_vision_forward.17} parent=81 // pred_check
          %p1118 = pneg %p215
        $region100: #{bridgetower_vision_forward.17} parent=81 // pred_check_branch
          %1120 = sbr.rel (%p1118) target = $region102
        $region101: #{bridgetower_vision_forward.17} parent=81 // pred_region
          %s1121 = smul.u32 4, %s22
          %p1122 = scmp.lt.s32.totalorder %s1121, 3
          %s1123 = scalar_select %p1122, %s1121, 3
          %s1124 = smul.addr %s1123, 8
          %s1125 = scalar_lea.vmem %s7, %s1124
        $region102: #{bridgetower_vision_forward.17} parent=81 // pred_fallthru
          _
      $region82: #{bridgetower_vision_forward.17} parent=5 // pred_fallthru
        _
      %p1126 = scmp.le.s32.totalorder 2, %s13
      // Predicated region
      $region103: #{bridgetower_vision_forward.17} parent=5 // pred_check
        %p1127 = pneg %p1126
      $region104: #{bridgetower_vision_forward.17} parent=5 // pred_check_branch
        %1129 = sbr.rel (%p1127) target = $region106
      $region105: #{bridgetower_vision_forward.17} parent=5 // pred_region
        %s1130 = ssub.s32 %s13, 2
      $region106: #{bridgetower_vision_forward.17} parent=5 // pred_fallthru
        _
    $region6: #{bridgetower_vision_forward.17} parent=1 // loop_footer
      %s17 = sadd.s32 1, %s13
    $region7: #{bridgetower_vision_forward.17} parent=1 // loop_footer_branch
      %12 = sbr.rel target = $region3
    $region8: #{bridgetower_vision_forward.17} parent=1 // loop_exit
      _

</llo_original>
